<compile_context>
chip_gen: v5e
topology: v5e:2x2
jax: 0.10.0
libtpu: 0.0.40
codegen_flags: <defaults>
</compile_context>

<pallas_src>
import functools

import jax
import jax.numpy as jnp
from jax import lax
from jax.experimental import pallas as pl
from jax.experimental.pallas import tpu as pltpu


def _round_up(x, m):
    return ((x + m - 1) // m) * m


# ----------------------------------------------------------------------------
# Pallas kernel
# ----------------------------------------------------------------------------
def _encoder_kernel(
    x_ref,                                      # (Tc*Bs, I)  input chunk (time-major within shard)
    wih1_ref, whh1_ref, bias1_ref, bhn1_ref,    # GRU1: (I,3Hg), (Hg,3Hg), (1,3Hg), (1,Hg)
    wc_ref, bc_ref, whh2_ref, bhn2_ref,         # Lin1+GRU2-in fused: (Hg,3Hg),(1,3Hg); GRU2: (Hg,3Hg),(1,Hg)
    wlin2_ref, blin2_ref,                       # Linear2 (lane padded): (Hg,Opad), (1,Opad)
    out_ref,                                    # (Tc*Bs, Opad)
    gx_ref,                                     # scratch (Tc*Bs, 3*Hg)  fused gate projections
    hseq_ref,                                   # scratch (Tc*Bs, Hg)    h sequence (GRU1 then GRU2)
    h1_ref, h2_ref,                             # scratch (Bs, Hg)       carried hidden states
    *, Tc, Bs, Hg, unroll,
):
    f32 = jnp.float32

    # Hidden state is carried across time chunks (grid axis 1, "arbitrary").
    # Re-initialized at the first chunk of every batch shard.
    @pl.when(pl.program_id(1) == 0)
    def _init():
        h1_ref[...] = jnp.zeros_like(h1_ref)
        h2_ref[...] = jnp.zeros_like(h2_ref)

    def run_gru(h0, whh_ref, bhn_row):
        # Only h @ W_hh_fused remains per step (one MXU push/pop); gate input
        # projections come from the pre-computed lane-dense gx slab.  All gate
        # slices fall on 128-lane boundaries; all row slices are 8-aligned.
        b_hn = jnp.broadcast_to(bhn_row, (Bs, Hg))          # hoisted out of the loop

        def step(t, h):
            off = pl.multiple_of(t * Bs, 8)
            g = gx_ref[pl.ds(off, Bs), :]                                   # (Bs, 3*Hg)
            gh = jnp.dot(h, whh_ref[...], preferred_element_type=f32)       # fused gates
            r = jax.nn.sigmoid(g[:, 0:Hg] + gh[:, 0:Hg])
            z = jax.nn.sigmoid(g[:, Hg:2 * Hg] + gh[:, Hg:2 * Hg])
            n = jnp.tanh(g[:, 2 * Hg:3 * Hg] + r * (gh[:, 2 * Hg:3 * Hg] + b_hn))
            h_new = (1.0 - z) * n + z * h
            hseq_ref[pl.ds(off, Bs), :] = h_new
            return h_new

        return lax.fori_loop(0, Tc, step, h0, unroll=unroll)

    # Phase A: GRU1 gate-fused input projection (one lane-dense batched matmul).
    gx_ref[...] = (
        jnp.dot(x_ref[...], wih1_ref[...], preferred_element_type=f32) + bias1_ref[...]
    )
    # Phase B: GRU1 recurrence (serial over time).
    h1_ref[...] = run_gru(h1_ref[...], whh1_ref, bhn1_ref[...])
    # Phase C: Linear1 fused with GRU2's gate input projection (single matmul).
    gx_ref[...] = (
        jnp.dot(hseq_ref[...], wc_ref[...], preferred_element_type=f32) + bc_ref[...]
    )
    # Phase D: GRU2 recurrence (overwrites hseq with the GRU2 output sequence).
    h2_ref[...] = run_gru(h2_ref[...], whh2_ref, bhn2_ref[...])
    # Phase E: Linear2, single lane-dense output store.
    out_ref[...] = (
        jnp.dot(hseq_ref[...], wlin2_ref[...], preferred_element_type=f32)
        + blin2_ref[...]
    ).astype(out_ref.dtype)


# ----------------------------------------------------------------------------
# Parameter prep: gate-fused, lane-aligned weights; r/z biases folded;
# Linear1 folded into GRU2's input projection; Linear2 lane-padded.
# ----------------------------------------------------------------------------
def _prep_kernel_params(params, Hg, Opad):
    H = params["w_hh1"].shape[0]
    O = params["w_lin2"].shape[1]
    padH = Hg - H

    def pad_gate_cols(w):          # (..., 3H) -> (..., 3*Hg): gates on 128-lane boundaries
        pads = [(0, 0)] * (w.ndim - 1)
        return jnp.concatenate(
            [jnp.pad(w[..., g * H:(g + 1) * H], pads + [(0, padH)]) for g in range(3)],
            axis=-1,
        )

    def pad_rows(w):               # (H, N) -> (Hg, N), zero rows (h padded lanes are zero)
        return jnp.pad(w, ((0, padH), (0, 0)))

    def fused_bias(b_ih, b_hh):    # (1,3H)x2 -> (1,3*Hg): r/z folded, n-gate = b_in only
        folded = jnp.concatenate(
            [b_ih[:, 0:2 * H] + b_hh[:, 0:2 * H], b_ih[:, 2 * H:3 * H]], axis=-1
        )
        return pad_gate_cols(folded)

    def hidden_n_bias(b_hh):       # b_hn, applied inside r * (h@W_hn + b_hn)
        return jnp.pad(b_hh[:, 2 * H:3 * H], ((0, 0), (0, padH)))

    # GRU1
    wih1_f = pad_gate_cols(params["w_ih1"])                       # (I, 3Hg)
    whh1_f = pad_rows(pad_gate_cols(params["w_hh1"]))             # (Hg, 3Hg)
    bias1_f = fused_bias(params["b_ih1"], params["b_hh1"])        # (1, 3Hg)
    bhn1 = hidden_n_bias(params["b_hh1"])                         # (1, Hg)

    # Linear1 folded into GRU2 input projection (exact linear fusion).
    wih2_f = pad_gate_cols(params["w_ih2"])                       # (2H, 3Hg)
    bias2_f = fused_bias(params["b_ih2"], params["b_hh2"])        # (1, 3Hg)
    wc = pad_rows(params["w_lin1"] @ wih2_f)                      # (Hg, 3Hg)
    bc = params["b_lin1"] @ wih2_f + bias2_f                      # (1, 3Hg)
    whh2_f = pad_rows(pad_gate_cols(params["w_hh2"]))             # (Hg, 3Hg)
    bhn2 = hidden_n_bias(params["b_hh2"])                         # (1, Hg)

    # Linear2 lane padded.
    wlin2_p = jnp.pad(params["w_lin2"], ((0, padH), (0, Opad - O)))   # (Hg, Opad)
    blin2_p = jnp.pad(params["b_lin2"], ((0, 0), (0, Opad - O)))      # (1, Opad)

    return (wih1_f, whh1_f, bias1_f, bhn1, wc, bc, whh2_f, bhn2, wlin2_p, blin2_p)


# ----------------------------------------------------------------------------
# Hardware-aware sizing helpers
# ----------------------------------------------------------------------------
def _vmem_capacity_bytes():
    try:
        cap = int(pltpu.get_tpu_info().vmem_capacity_bytes)
        if cap > 0:
            return cap
    except Exception:
        pass
    return 64 * 1024 * 1024     # conservative default (v7x: 64 MiB per TensorCore)


def _num_tensorcores():
    try:
        info = pltpu.get_tpu_info()
        for name in ("num_cores", "num_tensorcores", "tensor_cores", "cores_per_chip"):
            v = getattr(info, name, None)
            if v:
                return int(v)
        return int(getattr(jax.devices()[0], "num_cores", 1) or 1)
    except Exception:
        return 1


def _choose_time_chunk(T, Bs, I, Hg, Opad, weight_bytes, budget_bytes, max_rows=1024):
    """Largest divisor of T whose per-chunk VMEM footprint fits the budget."""
    Ip = _round_up(I, 128)
    per_row = 4 * (2 * Ip + 2 * Opad + 3 * Hg + Hg)   # in/out double-buffered + gx + hseq
    fixed = weight_bytes + 4 * 2 * Bs * Hg            # weights + carried hidden states
    cap = max(1, max_rows // Bs)                      # keep batched-phase operands modest
    best = 1
    for Tc in range(1, min(T, cap) + 1):
        if T % Tc == 0 and fixed + Tc * Bs * per_row <= budget_bytes:
            best = Tc
    return best


# ----------------------------------------------------------------------------
# Wrapper
# ----------------------------------------------------------------------------
def encoder_forward(x, params, *, time_chunk=None, batch_shards=None):
    """x: (T, B, input_size) float32; returns (T, B, output_size)."""
    T, B, I = x.shape
    H = params["w_hh1"].shape[0]
    O = params["w_lin2"].shape[1]

    Hg = _round_up(H, 128)          # lane-aligned per-gate width
    Opad = _round_up(O, 128)        # lane-dense output store
    Bp = _round_up(B, 8)            # sublane-aligned batch

    # Batch sharding across TensorCores (v7x): the per-batch recurrences are
    # independent, so each core runs its own serial time loop on half the batch.
    if batch_shards is None:
        batch_shards = 2 if (_num_tensorcores() >= 2 and Bp % 16 == 0) else 1
    S = batch_shards
    assert Bp % (8 * S) == 0, "each batch shard must keep a multiple of 8 rows"
    Bs = Bp // S

    kparams = _prep_kernel_params(params, Hg, Opad)
    weight_bytes = 4 * sum(int(p.size) for p in kparams)

    # Generation-aware VMEM budgeting (64 MiB on v7x vs 128 MiB on v5e/v6e).
    vmem_cap = _vmem_capacity_bytes()
    if time_chunk is None:
        Tc = _choose_time_chunk(T, Bs, I, Hg, Opad, weight_bytes, int(vmem_cap * 0.5))
    else:
        Tc = time_chunk
    assert T % Tc == 0, "sequence length must be divisible by the time chunk"
    num_chunks = T // Tc
    rows = Tc * Bs
    unroll = max(1, min(Tc, 8))     # bounded unroll of the recurrent loop

    # Layout: (shard, time*batch_within_shard, feature), time-major per shard.
    if Bp != B:
        x = jnp.pad(x, ((0, 0), (0, Bp - B), (0, 0)))
    x3d = x.reshape(T, S, Bs, I).transpose(1, 0, 2, 3).reshape(S, T * Bs, I)

    def weight_spec():
        # Grid-invariant: untiled, VMEM-resident, single copy (no double buffer).
        return pl.BlockSpec(memory_space=pltpu.MemorySpace.VMEM)

    grid_spec = pltpu.PrefetchScalarGridSpec(
        num_scalar_prefetch=0,
        grid=(S, num_chunks),
        in_specs=[pl.BlockSpec((None, rows, I), lambda s, c: (s, c, 0))]
        + [weight_spec() for _ in kparams],
        out_specs=pl.BlockSpec((None, rows, Opad), lambda s, c: (s, c, 0)),
        scratch_shapes=[
            pltpu.VMEM((rows, 3 * Hg), jnp.float32),   # fused gate projections (gx slab)
            pltpu.VMEM((rows, Hg), jnp.float32),       # hidden sequence (GRU1 then GRU2)
            pltpu.VMEM((Bs, Hg), jnp.float32),         # h1 carried across time chunks
            pltpu.VMEM((Bs, Hg), jnp.float32),         # h2 carried across time chunks
        ],
    )

    flops = 2 * T * Bp * (I * 3 * Hg + 3 * (Hg * 3 * Hg) + Hg * Opad)
    bytes_accessed = 4 * (int(x3d.size) + S * T * Bs * Opad) + weight_bytes

    out3d = pl.pallas_call(
        functools.partial(_encoder_kernel, Tc=Tc, Bs=Bs, Hg=Hg, unroll=unroll),
        out_shape=jax.ShapeDtypeStruct((S, T * Bs, Opad), jnp.float32),
        grid_spec=grid_spec,
        compiler_params=pltpu.CompilerParams(
            # Shard axis is independent ("parallel", splittable across cores);
            # the time axis carries hidden state in scratch -> must be "arbitrary".
            dimension_semantics=("parallel", "arbitrary"),
            vmem_limit_bytes=int(vmem_cap * 0.75),
        ),
        cost_estimate=pl.CostEstimate(
            flops=flops,
            transcendentals=T * Bp * 6 * Hg,
            bytes_accessed=bytes_accessed,
        ),
    )(x3d, *kparams)

    out = out3d.reshape(S, T, Bs, Opad).transpose(1, 0, 2, 3).reshape(T, Bp, Opad)
    # TODO(synk): for production sizes with O << 128, pack 128//O rows per output
    # row (block-diagonal Linear2) instead of lane-padding O -> 128 to avoid the
    # ~16x output HBM write amplification.
    return out[:, :B, :O]


# ----------------------------------------------------------------------------
# Deterministic parameter init (PyTorch nn.GRU / nn.Linear shapes, stored
# transposed so kernels right-multiply).
# ----------------------------------------------------------------------------
def init_params(key, input_size, hidden_size, output_size):
    H = hidden_size
    scale = 1.0 / jnp.sqrt(jnp.float32(H))
    names_shapes = [
        ("w_ih1", (input_size, 3 * H)),
        ("w_hh1", (H, 3 * H)),
        ("b_ih1", (1, 3 * H)),
        ("b_hh1", (1, 3 * H)),
        ("w_lin1", (H, 2 * H)),
        ("b_lin1", (1, 2 * H)),
        ("w_ih2", (2 * H, 3 * H)),
        ("w_hh2", (H, 3 * H)),
        ("b_ih2", (1, 3 * H)),
        ("b_hh2", (1, 3 * H)),
        ("w_lin2", (H, output_size)),
        ("b_lin2", (1, output_size)),
    ]
    keys = jax.random.split(key, len(names_shapes))
    params = {}
    for k, (name, shape) in zip(keys, names_shapes):
        params[name] = jax.random.uniform(
            k, shape, dtype=jnp.float32, minval=-scale, maxval=scale
        )
    return params


# ----------------------------------------------------------------------------
# Pure-JAX reference (PyTorch GRU semantics) for correctness check
# ----------------------------------------------------------------------------
def encoder_reference(x, params):
    H = params["w_hh1"].shape[0]
    B = x.shape[1]

    def gru_scan(xs, w_ih, w_hh, b_ih, b_hh):
        def step(h, x_t):
            gx = x_t @ w_ih + b_ih
            gh = h @ w_hh + b_hh
            r = jax.nn.sigmoid(gx[:, 0:H] + gh[:, 0:H])
            z = jax.nn.sigmoid(gx[:, H:2 * H] + gh[:, H:2 * H])
            n = jnp.tanh(gx[:, 2 * H:3 * H] + r * gh[:, 2 * H:3 * H])
            h_new = (1.0 - z) * n + z * h
            return h_new, h_new

        h0 = jnp.zeros((B, H), jnp.float32)
        _, ys = lax.scan(step, h0, xs)
        return ys

    out = gru_scan(x, params["w_ih1"], params["w_hh1"],
                   params["b_ih1"], params["b_hh1"])
    out = out @ params["w_lin1"] + params["b_lin1"]
    out = gru_scan(out, params["w_ih2"], params["w_hh2"],
                   params["b_ih2"], params["b_hh2"])
    out = out @ params["w_lin2"] + params["b_lin2"]
    return out


# ----------------------------------------------------------------------------
if __name__ == "__main__":
    input_size, hidden_size, output_size = 16, 32, 8
    T, B = 8, 4   # sequence length, batch (PyTorch GRU default layout: (T, B, F))

    key = jax.random.PRNGKey(0)
    k_x, k_p = jax.random.split(key)
    x = jax.random.normal(k_x, (T, B, input_size), dtype=jnp.float32)
    params = init_params(k_p, input_size, hidden_size, output_size)

    out = jax.block_until_ready(encoder_forward(x, params))
    ref = jax.block_until_ready(encoder_reference(x, params))
    assert out.shape == (T, B, output_size)
    assert jnp.allclose(out, ref, atol=1e-4, rtol=1e-4), "mismatch vs reference"

    # Also exercise the time-chunked + batch-sharded path (hidden-state carry
    # across grid steps, 2 independent shards — maps to 2 TensorCores on v7x).
    x2 = jax.random.normal(k_x, (T, 16, input_size), dtype=jnp.float32)
    out2 = jax.block_until_ready(
        encoder_forward(x2, params, time_chunk=4, batch_shards=2)
    )
    ref2 = jax.block_until_ready(encoder_reference(x2, params))
    assert jnp.allclose(out2, ref2, atol=1e-4, rtol=1e-4), "mismatch vs reference (sharded)"

    print("KERNEL_OK")
</pallas_src>

<mosaic_0001>
module attributes {stable_mosaic.version = 11 : i64} {
  func.func @_encoder_kernel(%arg0: i32, %arg1: i32, %arg2: memref<1x64x16xf32, #tpu.memory_space<vmem>>, %arg3: memref<16x384xf32, #tpu.memory_space<vmem>>, %arg4: memref<128x384xf32, #tpu.memory_space<vmem>>, %arg5: memref<1x384xf32, #tpu.memory_space<vmem>>, %arg6: memref<1x128xf32, #tpu.memory_space<vmem>>, %arg7: memref<128x384xf32, #tpu.memory_space<vmem>>, %arg8: memref<1x384xf32, #tpu.memory_space<vmem>>, %arg9: memref<128x384xf32, #tpu.memory_space<vmem>>, %arg10: memref<1x128xf32, #tpu.memory_space<vmem>>, %arg11: memref<128x128xf32, #tpu.memory_space<vmem>>, %arg12: memref<1x128xf32, #tpu.memory_space<vmem>>, %arg13: memref<1x64x128xf32, #tpu.memory_space<vmem>>, %arg14: memref<64x384xf32, #tpu.memory_space<vmem>>, %arg15: memref<64x128xf32, #tpu.memory_space<vmem>>, %arg16: memref<8x128xf32, #tpu.memory_space<vmem>>, %arg17: memref<8x128xf32, #tpu.memory_space<vmem>>) attributes {dimension_semantics = [#tpu.dimension_semantics<parallel>, #tpu.dimension_semantics<arbitrary>], iteration_bounds = array<i64: 1, 1>, scalar_prefetch = 0 : i64, scratch_operands = 4 : i64, tpu.core_type = #tpu.core_type<tc>, window_params = [{transform_indices = @transform_0, window_bounds = array<i64: 1, 64, 16>}, {pipeline_mode = #tpu.pipeline_mode<synchronous>, transform_indices = @transform_1, window_bounds = array<i64: 16, 384>}, {pipeline_mode = #tpu.pipeline_mode<synchronous>, transform_indices = @transform_2, window_bounds = array<i64: 128, 384>}, {pipeline_mode = #tpu.pipeline_mode<synchronous>, transform_indices = @transform_3, window_bounds = array<i64: 1, 384>}, {pipeline_mode = #tpu.pipeline_mode<synchronous>, transform_indices = @transform_4, window_bounds = array<i64: 1, 128>}, {pipeline_mode = #tpu.pipeline_mode<synchronous>, transform_indices = @transform_5, window_bounds = array<i64: 128, 384>}, {pipeline_mode = #tpu.pipeline_mode<synchronous>, transform_indices = @transform_6, window_bounds = array<i64: 1, 384>}, {pipeline_mode = #tpu.pipeline_mode<synchronous>, transform_indices = @transform_7, window_bounds = array<i64: 128, 384>}, {pipeline_mode = #tpu.pipeline_mode<synchronous>, transform_indices = @transform_8, window_bounds = array<i64: 1, 128>}, {pipeline_mode = #tpu.pipeline_mode<synchronous>, transform_indices = @transform_9, window_bounds = array<i64: 128, 128>}, {pipeline_mode = #tpu.pipeline_mode<synchronous>, transform_indices = @transform_10, window_bounds = array<i64: 1, 128>}, {transform_indices = @transform_11, window_bounds = array<i64: 1, 64, 128>}]} {
    %c0_i32 = arith.constant 0 : i32
    %0 = arith.cmpi eq, %arg1, %c0_i32 : i32
    %1 = arith.extui %0 : i1 to i32
    %c0_i32_0 = arith.constant 0 : i32
    %2 = arith.cmpi ne, %1, %c0_i32_0 : i32
    scf.if %2 {
      %cst_194 = arith.constant 0.000000e+00 : f32
      %597 = vector.broadcast %cst_194 : f32 to vector<8x128xf32>
      %c0_195 = arith.constant 0 : index
      %c0_196 = arith.constant 0 : index
      %598 = vector.load %arg16[%c0_195, %c0_196] : memref<8x128xf32, #tpu.memory_space<vmem>>, vector<8x128xf32>
      tpu.vector_store %arg16[%c0_195, %c0_196], %597 {strides = array<i32>} : memref<8x128xf32, #tpu.memory_space<vmem>>, vector<8x128xf32>,
      %cst_197 = arith.constant 0.000000e+00 : f32
      %599 = vector.broadcast %cst_197 : f32 to vector<8x128xf32>
      %c0_198 = arith.constant 0 : index
      %c0_199 = arith.constant 0 : index
      %600 = vector.load %arg17[%c0_198, %c0_199] : memref<8x128xf32, #tpu.memory_space<vmem>>, vector<8x128xf32>
      tpu.vector_store %arg17[%c0_198, %c0_199], %599 {strides = array<i32>} : memref<8x128xf32, #tpu.memory_space<vmem>>, vector<8x128xf32>,
    } else {
    }
    %c0 = arith.constant 0 : index
    %c0_1 = arith.constant 0 : index
    %c0_2 = arith.constant 0 : index
    %3 = vector.load %arg2[%c0, %c0_1, %c0_2] : memref<1x64x16xf32, #tpu.memory_space<vmem>>, vector<1x64x16xf32>
    %4 = vector.shape_cast %3 : vector<1x64x16xf32> to vector<64x16xf32>
    %c0_3 = arith.constant 0 : index
    %c0_4 = arith.constant 0 : index
    %5 = vector.load %arg3[%c0_3, %c0_4] : memref<16x384xf32, #tpu.memory_space<vmem>>, vector<16x384xf32>
    %cst = arith.constant dense<0.000000e+00> : vector<64x384xf32>
    %6 = tpu.matmul %4, %5, %cst {dimension_numbers = #tpu.dot_dimension_numbers<[1], [0], [0], [1], [0, 0, 1, 1], [], []>} : vector<64x16xf32>, vector<16x384xf32>, vector<64x384xf32> -> vector<64x384xf32>
    %c0_5 = arith.constant 0 : index
    %c0_6 = arith.constant 0 : index
    %7 = vector.load %arg5[%c0_5, %c0_6] : memref<1x384xf32, #tpu.memory_space<vmem>>, vector<1x384xf32>
    %8 = vector.broadcast %7 : vector<1x384xf32> to vector<64x384xf32>
    %9 = arith.addf %6, %8 : vector<64x384xf32>
    %c0_7 = arith.constant 0 : index
    %c0_8 = arith.constant 0 : index
    %10 = vector.load %arg14[%c0_7, %c0_8] : memref<64x384xf32, #tpu.memory_space<vmem>>, vector<64x384xf32>
    tpu.vector_store %arg14[%c0_7, %c0_8], %9 {strides = array<i32>} : memref<64x384xf32, #tpu.memory_space<vmem>>, vector<64x384xf32>,
    %c0_9 = arith.constant 0 : index
    %c0_10 = arith.constant 0 : index
    %11 = vector.load %arg16[%c0_9, %c0_10] : memref<8x128xf32, #tpu.memory_space<vmem>>, vector<8x128xf32>
    %c0_11 = arith.constant 0 : index
    %c0_12 = arith.constant 0 : index
    %12 = vector.load %arg6[%c0_11, %c0_12] : memref<1x128xf32, #tpu.memory_space<vmem>>, vector<1x128xf32>
    %13 = vector.shape_cast %12 : vector<1x128xf32> to vector<1x128xf32>
    %14 = vector.broadcast %13 : vector<1x128xf32> to vector<8x128xf32>
    %c0_i32_13 = arith.constant 0 : i32
    %c8_i32 = arith.constant 8 : i32
    %15 = arith.muli %c0_i32_13, %c8_i32 : i32
    %16 = tpu.assume_multiple %15, 8 : i32
    %17 = arith.index_cast %16 : i32 to index
    %c0_14 = arith.constant 0 : index
    %18 = vector.load %arg14[%17, %c0_14] : memref<64x384xf32, #tpu.memory_space<vmem>>, vector<8x384xf32>
    %c0_15 = arith.constant 0 : index
    %c0_16 = arith.constant 0 : index
    %19 = vector.load %arg4[%c0_15, %c0_16] : memref<128x384xf32, #tpu.memory_space<vmem>>, vector<128x384xf32>
    %cst_17 = arith.constant dense<0.000000e+00> : vector<8x384xf32>
    %20 = tpu.matmul %11, %19, %cst_17 {dimension_numbers = #tpu.dot_dimension_numbers<[1], [0], [0], [1], [0, 0, 1, 1], [], []>} : vector<8x128xf32>, vector<128x384xf32>, vector<8x384xf32> -> vector<8x384xf32>
    %21 = vector.extract_strided_slice %18 {offsets = [0, 0], sizes = [8, 128], strides = [1, 1]} : vector<8x384xf32> to vector<8x128xf32>
    %22 = vector.extract_strided_slice %20 {offsets = [0, 0], sizes = [8, 128], strides = [1, 1]} : vector<8x384xf32> to vector<8x128xf32>
    %23 = arith.addf %21, %22 : vector<8x128xf32>
    %24 = arith.negf %23 : vector<8x128xf32>
    %25 = math.exp %24 : vector<8x128xf32>
    %cst_18 = arith.constant 1.000000e+00 : f32
    %26 = vector.broadcast %cst_18 : f32 to vector<8x128xf32>
    %27 = arith.addf %26, %25 : vector<8x128xf32>
    %28 = arith.divf %26, %27 : vector<8x128xf32>
    %29 = vector.extract_strided_slice %18 {offsets = [0, 128], sizes = [8, 128], strides = [1, 1]} : vector<8x384xf32> to vector<8x128xf32>
    %30 = vector.extract_strided_slice %20 {offsets = [0, 128], sizes = [8, 128], strides = [1, 1]} : vector<8x384xf32> to vector<8x128xf32>
    %31 = arith.addf %29, %30 : vector<8x128xf32>
    %32 = arith.negf %31 : vector<8x128xf32>
    %33 = math.exp %32 : vector<8x128xf32>
    %cst_19 = arith.constant 1.000000e+00 : f32
    %34 = vector.broadcast %cst_19 : f32 to vector<8x128xf32>
    %35 = arith.addf %34, %33 : vector<8x128xf32>
    %36 = arith.divf %34, %35 : vector<8x128xf32>
    %37 = vector.extract_strided_slice %18 {offsets = [0, 256], sizes = [8, 128], strides = [1, 1]} : vector<8x384xf32> to vector<8x128xf32>
    %38 = vector.extract_strided_slice %20 {offsets = [0, 256], sizes = [8, 128], strides = [1, 1]} : vector<8x384xf32> to vector<8x128xf32>
    %39 = arith.addf %38, %14 : vector<8x128xf32>
    %40 = arith.mulf %28, %39 : vector<8x128xf32>
    %41 = arith.addf %37, %40 : vector<8x128xf32>
    %42 = math.tanh %41 : vector<8x128xf32>
    %cst_20 = arith.constant 1.000000e+00 : f32
    %43 = vector.broadcast %cst_20 : f32 to vector<8x128xf32>
    %44 = arith.subf %43, %36 : vector<8x128xf32>
    %45 = arith.mulf %44, %42 : vector<8x128xf32>
    %46 = arith.mulf %36, %11 : vector<8x128xf32>
    %47 = arith.addf %45, %46 : vector<8x128xf32>
    %48 = arith.index_cast %16 : i32 to index
    %c0_21 = arith.constant 0 : index
    %49 = vector.load %arg15[%48, %c0_21] : memref<64x128xf32, #tpu.memory_space<vmem>>, vector<8x128xf32>
    tpu.vector_store %arg15[%48, %c0_21], %47 {strides = array<i32>} : memref<64x128xf32, #tpu.memory_space<vmem>>, vector<8x128xf32>,
    %c1_i32 = arith.constant 1 : i32
    %c8_i32_22 = arith.constant 8 : i32
    %50 = arith.muli %c1_i32, %c8_i32_22 : i32
    %51 = tpu.assume_multiple %50, 8 : i32
    %52 = arith.index_cast %51 : i32 to index
    %c0_23 = arith.constant 0 : index
    %53 = vector.load %arg14[%52, %c0_23] : memref<64x384xf32, #tpu.memory_space<vmem>>, vector<8x384xf32>
    %c0_24 = arith.constant 0 : index
    %c0_25 = arith.constant 0 : index
    %54 = vector.load %arg4[%c0_24, %c0_25] : memref<128x384xf32, #tpu.memory_space<vmem>>, vector<128x384xf32>
    %cst_26 = arith.constant dense<0.000000e+00> : vector<8x384xf32>
    %55 = tpu.matmul %47, %54, %cst_26 {dimension_numbers = #tpu.dot_dimension_numbers<[1], [0], [0], [1], [0, 0, 1, 1], [], []>} : vector<8x128xf32>, vector<128x384xf32>, vector<8x384xf32> -> vector<8x384xf32>
    %56 = vector.extract_strided_slice %53 {offsets = [0, 0], sizes = [8, 128], strides = [1, 1]} : vector<8x384xf32> to vector<8x128xf32>
    %57 = vector.extract_strided_slice %55 {offsets = [0, 0], sizes = [8, 128], strides = [1, 1]} : vector<8x384xf32> to vector<8x128xf32>
    %58 = arith.addf %56, %57 : vector<8x128xf32>
    %59 = arith.negf %58 : vector<8x128xf32>
    %60 = math.exp %59 : vector<8x128xf32>
    %cst_27 = arith.constant 1.000000e+00 : f32
    %61 = vector.broadcast %cst_27 : f32 to vector<8x128xf32>
    %62 = arith.addf %61, %60 : vector<8x128xf32>
    %63 = arith.divf %61, %62 : vector<8x128xf32>
    %64 = vector.extract_strided_slice %53 {offsets = [0, 128], sizes = [8, 128], strides = [1, 1]} : vector<8x384xf32> to vector<8x128xf32>
    %65 = vector.extract_strided_slice %55 {offsets = [0, 128], sizes = [8, 128], strides = [1, 1]} : vector<8x384xf32> to vector<8x128xf32>
    %66 = arith.addf %64, %65 : vector<8x128xf32>
    %67 = arith.negf %66 : vector<8x128xf32>
    %68 = math.exp %67 : vector<8x128xf32>
    %cst_28 = arith.constant 1.000000e+00 : f32
    %69 = vector.broadcast %cst_28 : f32 to vector<8x128xf32>
    %70 = arith.addf %69, %68 : vector<8x128xf32>
    %71 = arith.divf %69, %70 : vector<8x128xf32>
    %72 = vector.extract_strided_slice %53 {offsets = [0, 256], sizes = [8, 128], strides = [1, 1]} : vector<8x384xf32> to vector<8x128xf32>
    %73 = vector.extract_strided_slice %55 {offsets = [0, 256], sizes = [8, 128], strides = [1, 1]} : vector<8x384xf32> to vector<8x128xf32>
    %74 = arith.addf %73, %14 : vector<8x128xf32>
    %75 = arith.mulf %63, %74 : vector<8x128xf32>
    %76 = arith.addf %72, %75 : vector<8x128xf32>
    %77 = math.tanh %76 : vector<8x128xf32>
    %cst_29 = arith.constant 1.000000e+00 : f32
    %78 = vector.broadcast %cst_29 : f32 to vector<8x128xf32>
    %79 = arith.subf %78, %71 : vector<8x128xf32>
    %80 = arith.mulf %79, %77 : vector<8x128xf32>
    %81 = arith.mulf %71, %47 : vector<8x128xf32>
    %82 = arith.addf %80, %81 : vector<8x128xf32>
    %83 = arith.index_cast %51 : i32 to index
    %c0_30 = arith.constant 0 : index
    %84 = vector.load %arg15[%83, %c0_30] : memref<64x128xf32, #tpu.memory_space<vmem>>, vector<8x128xf32>
    tpu.vector_store %arg15[%83, %c0_30], %82 {strides = array<i32>} : memref<64x128xf32, #tpu.memory_space<vmem>>, vector<8x128xf32>,
    %c2_i32 = arith.constant 2 : i32
    %c8_i32_31 = arith.constant 8 : i32
    %85 = arith.muli %c2_i32, %c8_i32_31 : i32
    %86 = tpu.assume_multiple %85, 8 : i32
    %87 = arith.index_cast %86 : i32 to index
    %c0_32 = arith.constant 0 : index
    %88 = vector.load %arg14[%87, %c0_32] : memref<64x384xf32, #tpu.memory_space<vmem>>, vector<8x384xf32>
    %c0_33 = arith.constant 0 : index
    %c0_34 = arith.constant 0 : index
    %89 = vector.load %arg4[%c0_33, %c0_34] : memref<128x384xf32, #tpu.memory_space<vmem>>, vector<128x384xf32>
    %cst_35 = arith.constant dense<0.000000e+00> : vector<8x384xf32>
    %90 = tpu.matmul %82, %89, %cst_35 {dimension_numbers = #tpu.dot_dimension_numbers<[1], [0], [0], [1], [0, 0, 1, 1], [], []>} : vector<8x128xf32>, vector<128x384xf32>, vector<8x384xf32> -> vector<8x384xf32>
    %91 = vector.extract_strided_slice %88 {offsets = [0, 0], sizes = [8, 128], strides = [1, 1]} : vector<8x384xf32> to vector<8x128xf32>
    %92 = vector.extract_strided_slice %90 {offsets = [0, 0], sizes = [8, 128], strides = [1, 1]} : vector<8x384xf32> to vector<8x128xf32>
    %93 = arith.addf %91, %92 : vector<8x128xf32>
    %94 = arith.negf %93 : vector<8x128xf32>
    %95 = math.exp %94 : vector<8x128xf32>
    %cst_36 = arith.constant 1.000000e+00 : f32
    %96 = vector.broadcast %cst_36 : f32 to vector<8x128xf32>
    %97 = arith.addf %96, %95 : vector<8x128xf32>
    %98 = arith.divf %96, %97 : vector<8x128xf32>
    %99 = vector.extract_strided_slice %88 {offsets = [0, 128], sizes = [8, 128], strides = [1, 1]} : vector<8x384xf32> to vector<8x128xf32>
    %100 = vector.extract_strided_slice %90 {offsets = [0, 128], sizes = [8, 128], strides = [1, 1]} : vector<8x384xf32> to vector<8x128xf32>
    %101 = arith.addf %99, %100 : vector<8x128xf32>
    %102 = arith.negf %101 : vector<8x128xf32>
    %103 = math.exp %102 : vector<8x128xf32>
    %cst_37 = arith.constant 1.000000e+00 : f32
    %104 = vector.broadcast %cst_37 : f32 to vector<8x128xf32>
    %105 = arith.addf %104, %103 : vector<8x128xf32>
    %106 = arith.divf %104, %105 : vector<8x128xf32>
    %107 = vector.extract_strided_slice %88 {offsets = [0, 256], sizes = [8, 128], strides = [1, 1]} : vector<8x384xf32> to vector<8x128xf32>
    %108 = vector.extract_strided_slice %90 {offsets = [0, 256], sizes = [8, 128], strides = [1, 1]} : vector<8x384xf32> to vector<8x128xf32>
    %109 = arith.addf %108, %14 : vector<8x128xf32>
    %110 = arith.mulf %98, %109 : vector<8x128xf32>
    %111 = arith.addf %107, %110 : vector<8x128xf32>
    %112 = math.tanh %111 : vector<8x128xf32>
    %cst_38 = arith.constant 1.000000e+00 : f32
    %113 = vector.broadcast %cst_38 : f32 to vector<8x128xf32>
    %114 = arith.subf %113, %106 : vector<8x128xf32>
    %115 = arith.mulf %114, %112 : vector<8x128xf32>
    %116 = arith.mulf %106, %82 : vector<8x128xf32>
    %117 = arith.addf %115, %116 : vector<8x128xf32>
    %118 = arith.index_cast %86 : i32 to index
    %c0_39 = arith.constant 0 : index
    %119 = vector.load %arg15[%118, %c0_39] : memref<64x128xf32, #tpu.memory_space<vmem>>, vector<8x128xf32>
    tpu.vector_store %arg15[%118, %c0_39], %117 {strides = array<i32>} : memref<64x128xf32, #tpu.memory_space<vmem>>, vector<8x128xf32>,
    %c3_i32 = arith.constant 3 : i32
    %c8_i32_40 = arith.constant 8 : i32
    %120 = arith.muli %c3_i32, %c8_i32_40 : i32
    %121 = tpu.assume_multiple %120, 8 : i32
    %122 = arith.index_cast %121 : i32 to index
    %c0_41 = arith.constant 0 : index
    %123 = vector.load %arg14[%122, %c0_41] : memref<64x384xf32, #tpu.memory_space<vmem>>, vector<8x384xf32>
    %c0_42 = arith.constant 0 : index
    %c0_43 = arith.constant 0 : index
    %124 = vector.load %arg4[%c0_42, %c0_43] : memref<128x384xf32, #tpu.memory_space<vmem>>, vector<128x384xf32>
    %cst_44 = arith.constant dense<0.000000e+00> : vector<8x384xf32>
    %125 = tpu.matmul %117, %124, %cst_44 {dimension_numbers = #tpu.dot_dimension_numbers<[1], [0], [0], [1], [0, 0, 1, 1], [], []>} : vector<8x128xf32>, vector<128x384xf32>, vector<8x384xf32> -> vector<8x384xf32>
    %126 = vector.extract_strided_slice %123 {offsets = [0, 0], sizes = [8, 128], strides = [1, 1]} : vector<8x384xf32> to vector<8x128xf32>
    %127 = vector.extract_strided_slice %125 {offsets = [0, 0], sizes = [8, 128], strides = [1, 1]} : vector<8x384xf32> to vector<8x128xf32>
    %128 = arith.addf %126, %127 : vector<8x128xf32>
    %129 = arith.negf %128 : vector<8x128xf32>
    %130 = math.exp %129 : vector<8x128xf32>
    %cst_45 = arith.constant 1.000000e+00 : f32
    %131 = vector.broadcast %cst_45 : f32 to vector<8x128xf32>
    %132 = arith.addf %131, %130 : vector<8x128xf32>
    %133 = arith.divf %131, %132 : vector<8x128xf32>
    %134 = vector.extract_strided_slice %123 {offsets = [0, 128], sizes = [8, 128], strides = [1, 1]} : vector<8x384xf32> to vector<8x128xf32>
    %135 = vector.extract_strided_slice %125 {offsets = [0, 128], sizes = [8, 128], strides = [1, 1]} : vector<8x384xf32> to vector<8x128xf32>
    %136 = arith.addf %134, %135 : vector<8x128xf32>
    %137 = arith.negf %136 : vector<8x128xf32>
    %138 = math.exp %137 : vector<8x128xf32>
    %cst_46 = arith.constant 1.000000e+00 : f32
    %139 = vector.broadcast %cst_46 : f32 to vector<8x128xf32>
    %140 = arith.addf %139, %138 : vector<8x128xf32>
    %141 = arith.divf %139, %140 : vector<8x128xf32>
    %142 = vector.extract_strided_slice %123 {offsets = [0, 256], sizes = [8, 128], strides = [1, 1]} : vector<8x384xf32> to vector<8x128xf32>
    %143 = vector.extract_strided_slice %125 {offsets = [0, 256], sizes = [8, 128], strides = [1, 1]} : vector<8x384xf32> to vector<8x128xf32>
    %144 = arith.addf %143, %14 : vector<8x128xf32>
    %145 = arith.mulf %133, %144 : vector<8x128xf32>
    %146 = arith.addf %142, %145 : vector<8x128xf32>
    %147 = math.tanh %146 : vector<8x128xf32>
    %cst_47 = arith.constant 1.000000e+00 : f32
    %148 = vector.broadcast %cst_47 : f32 to vector<8x128xf32>
    %149 = arith.subf %148, %141 : vector<8x128xf32>
    %150 = arith.mulf %149, %147 : vector<8x128xf32>
    %151 = arith.mulf %141, %117 : vector<8x128xf32>
    %152 = arith.addf %150, %151 : vector<8x128xf32>
    %153 = arith.index_cast %121 : i32 to index
    %c0_48 = arith.constant 0 : index
    %154 = vector.load %arg15[%153, %c0_48] : memref<64x128xf32, #tpu.memory_space<vmem>>, vector<8x128xf32>
    tpu.vector_store %arg15[%153, %c0_48], %152 {strides = array<i32>} : memref<64x128xf32, #tpu.memory_space<vmem>>, vector<8x128xf32>,
    %c4_i32 = arith.constant 4 : i32
    %c8_i32_49 = arith.constant 8 : i32
    %155 = arith.muli %c4_i32, %c8_i32_49 : i32
    %156 = tpu.assume_multiple %155, 8 : i32
    %157 = arith.index_cast %156 : i32 to index
    %c0_50 = arith.constant 0 : index
    %158 = vector.load %arg14[%157, %c0_50] : memref<64x384xf32, #tpu.memory_space<vmem>>, vector<8x384xf32>
    %c0_51 = arith.constant 0 : index
    %c0_52 = arith.constant 0 : index
    %159 = vector.load %arg4[%c0_51, %c0_52] : memref<128x384xf32, #tpu.memory_space<vmem>>, vector<128x384xf32>
    %cst_53 = arith.constant dense<0.000000e+00> : vector<8x384xf32>
    %160 = tpu.matmul %152, %159, %cst_53 {dimension_numbers = #tpu.dot_dimension_numbers<[1], [0], [0], [1], [0, 0, 1, 1], [], []>} : vector<8x128xf32>, vector<128x384xf32>, vector<8x384xf32> -> vector<8x384xf32>
    %161 = vector.extract_strided_slice %158 {offsets = [0, 0], sizes = [8, 128], strides = [1, 1]} : vector<8x384xf32> to vector<8x128xf32>
    %162 = vector.extract_strided_slice %160 {offsets = [0, 0], sizes = [8, 128], strides = [1, 1]} : vector<8x384xf32> to vector<8x128xf32>
    %163 = arith.addf %161, %162 : vector<8x128xf32>
    %164 = arith.negf %163 : vector<8x128xf32>
    %165 = math.exp %164 : vector<8x128xf32>
    %cst_54 = arith.constant 1.000000e+00 : f32
    %166 = vector.broadcast %cst_54 : f32 to vector<8x128xf32>
    %167 = arith.addf %166, %165 : vector<8x128xf32>
    %168 = arith.divf %166, %167 : vector<8x128xf32>
    %169 = vector.extract_strided_slice %158 {offsets = [0, 128], sizes = [8, 128], strides = [1, 1]} : vector<8x384xf32> to vector<8x128xf32>
    %170 = vector.extract_strided_slice %160 {offsets = [0, 128], sizes = [8, 128], strides = [1, 1]} : vector<8x384xf32> to vector<8x128xf32>
    %171 = arith.addf %169, %170 : vector<8x128xf32>
    %172 = arith.negf %171 : vector<8x128xf32>
    %173 = math.exp %172 : vector<8x128xf32>
    %cst_55 = arith.constant 1.000000e+00 : f32
    %174 = vector.broadcast %cst_55 : f32 to vector<8x128xf32>
    %175 = arith.addf %174, %173 : vector<8x128xf32>
    %176 = arith.divf %174, %175 : vector<8x128xf32>
    %177 = vector.extract_strided_slice %158 {offsets = [0, 256], sizes = [8, 128], strides = [1, 1]} : vector<8x384xf32> to vector<8x128xf32>
    %178 = vector.extract_strided_slice %160 {offsets = [0, 256], sizes = [8, 128], strides = [1, 1]} : vector<8x384xf32> to vector<8x128xf32>
    %179 = arith.addf %178, %14 : vector<8x128xf32>
    %180 = arith.mulf %168, %179 : vector<8x128xf32>
    %181 = arith.addf %177, %180 : vector<8x128xf32>
    %182 = math.tanh %181 : vector<8x128xf32>
    %cst_56 = arith.constant 1.000000e+00 : f32
    %183 = vector.broadcast %cst_56 : f32 to vector<8x128xf32>
    %184 = arith.subf %183, %176 : vector<8x128xf32>
    %185 = arith.mulf %184, %182 : vector<8x128xf32>
    %186 = arith.mulf %176, %152 : vector<8x128xf32>
    %187 = arith.addf %185, %186 : vector<8x128xf32>
    %188 = arith.index_cast %156 : i32 to index
    %c0_57 = arith.constant 0 : index
    %189 = vector.load %arg15[%188, %c0_57] : memref<64x128xf32, #tpu.memory_space<vmem>>, vector<8x128xf32>
    tpu.vector_store %arg15[%188, %c0_57], %187 {strides = array<i32>} : memref<64x128xf32, #tpu.memory_space<vmem>>, vector<8x128xf32>,
    %c5_i32 = arith.constant 5 : i32
    %c8_i32_58 = arith.constant 8 : i32
    %190 = arith.muli %c5_i32, %c8_i32_58 : i32
    %191 = tpu.assume_multiple %190, 8 : i32
    %192 = arith.index_cast %191 : i32 to index
    %c0_59 = arith.constant 0 : index
    %193 = vector.load %arg14[%192, %c0_59] : memref<64x384xf32, #tpu.memory_space<vmem>>, vector<8x384xf32>
    %c0_60 = arith.constant 0 : index
    %c0_61 = arith.constant 0 : index
    %194 = vector.load %arg4[%c0_60, %c0_61] : memref<128x384xf32, #tpu.memory_space<vmem>>, vector<128x384xf32>
    %cst_62 = arith.constant dense<0.000000e+00> : vector<8x384xf32>
    %195 = tpu.matmul %187, %194, %cst_62 {dimension_numbers = #tpu.dot_dimension_numbers<[1], [0], [0], [1], [0, 0, 1, 1], [], []>} : vector<8x128xf32>, vector<128x384xf32>, vector<8x384xf32> -> vector<8x384xf32>
    %196 = vector.extract_strided_slice %193 {offsets = [0, 0], sizes = [8, 128], strides = [1, 1]} : vector<8x384xf32> to vector<8x128xf32>
    %197 = vector.extract_strided_slice %195 {offsets = [0, 0], sizes = [8, 128], strides = [1, 1]} : vector<8x384xf32> to vector<8x128xf32>
    %198 = arith.addf %196, %197 : vector<8x128xf32>
    %199 = arith.negf %198 : vector<8x128xf32>
    %200 = math.exp %199 : vector<8x128xf32>
    %cst_63 = arith.constant 1.000000e+00 : f32
    %201 = vector.broadcast %cst_63 : f32 to vector<8x128xf32>
    %202 = arith.addf %201, %200 : vector<8x128xf32>
    %203 = arith.divf %201, %202 : vector<8x128xf32>
    %204 = vector.extract_strided_slice %193 {offsets = [0, 128], sizes = [8, 128], strides = [1, 1]} : vector<8x384xf32> to vector<8x128xf32>
    %205 = vector.extract_strided_slice %195 {offsets = [0, 128], sizes = [8, 128], strides = [1, 1]} : vector<8x384xf32> to vector<8x128xf32>
    %206 = arith.addf %204, %205 : vector<8x128xf32>
    %207 = arith.negf %206 : vector<8x128xf32>
    %208 = math.exp %207 : vector<8x128xf32>
    %cst_64 = arith.constant 1.000000e+00 : f32
    %209 = vector.broadcast %cst_64 : f32 to vector<8x128xf32>
    %210 = arith.addf %209, %208 : vector<8x128xf32>
    %211 = arith.divf %209, %210 : vector<8x128xf32>
    %212 = vector.extract_strided_slice %193 {offsets = [0, 256], sizes = [8, 128], strides = [1, 1]} : vector<8x384xf32> to vector<8x128xf32>
    %213 = vector.extract_strided_slice %195 {offsets = [0, 256], sizes = [8, 128], strides = [1, 1]} : vector<8x384xf32> to vector<8x128xf32>
    %214 = arith.addf %213, %14 : vector<8x128xf32>
    %215 = arith.mulf %203, %214 : vector<8x128xf32>
    %216 = arith.addf %212, %215 : vector<8x128xf32>
    %217 = math.tanh %216 : vector<8x128xf32>
    %cst_65 = arith.constant 1.000000e+00 : f32
    %218 = vector.broadcast %cst_65 : f32 to vector<8x128xf32>
    %219 = arith.subf %218, %211 : vector<8x128xf32>
    %220 = arith.mulf %219, %217 : vector<8x128xf32>
    %221 = arith.mulf %211, %187 : vector<8x128xf32>
    %222 = arith.addf %220, %221 : vector<8x128xf32>
    %223 = arith.index_cast %191 : i32 to index
    %c0_66 = arith.constant 0 : index
    %224 = vector.load %arg15[%223, %c0_66] : memref<64x128xf32, #tpu.memory_space<vmem>>, vector<8x128xf32>
    tpu.vector_store %arg15[%223, %c0_66], %222 {strides = array<i32>} : memref<64x128xf32, #tpu.memory_space<vmem>>, vector<8x128xf32>,
    %c6_i32 = arith.constant 6 : i32
    %c8_i32_67 = arith.constant 8 : i32
    %225 = arith.muli %c6_i32, %c8_i32_67 : i32
    %226 = tpu.assume_multiple %225, 8 : i32
    %227 = arith.index_cast %226 : i32 to index
    %c0_68 = arith.constant 0 : index
    %228 = vector.load %arg14[%227, %c0_68] : memref<64x384xf32, #tpu.memory_space<vmem>>, vector<8x384xf32>
    %c0_69 = arith.constant 0 : index
    %c0_70 = arith.constant 0 : index
    %229 = vector.load %arg4[%c0_69, %c0_70] : memref<128x384xf32, #tpu.memory_space<vmem>>, vector<128x384xf32>
    %cst_71 = arith.constant dense<0.000000e+00> : vector<8x384xf32>
    %230 = tpu.matmul %222, %229, %cst_71 {dimension_numbers = #tpu.dot_dimension_numbers<[1], [0], [0], [1], [0, 0, 1, 1], [], []>} : vector<8x128xf32>, vector<128x384xf32>, vector<8x384xf32> -> vector<8x384xf32>
    %231 = vector.extract_strided_slice %228 {offsets = [0, 0], sizes = [8, 128], strides = [1, 1]} : vector<8x384xf32> to vector<8x128xf32>
    %232 = vector.extract_strided_slice %230 {offsets = [0, 0], sizes = [8, 128], strides = [1, 1]} : vector<8x384xf32> to vector<8x128xf32>
    %233 = arith.addf %231, %232 : vector<8x128xf32>
    %234 = arith.negf %233 : vector<8x128xf32>
    %235 = math.exp %234 : vector<8x128xf32>
    %cst_72 = arith.constant 1.000000e+00 : f32
    %236 = vector.broadcast %cst_72 : f32 to vector<8x128xf32>
    %237 = arith.addf %236, %235 : vector<8x128xf32>
    %238 = arith.divf %236, %237 : vector<8x128xf32>
    %239 = vector.extract_strided_slice %228 {offsets = [0, 128], sizes = [8, 128], strides = [1, 1]} : vector<8x384xf32> to vector<8x128xf32>
    %240 = vector.extract_strided_slice %230 {offsets = [0, 128], sizes = [8, 128], strides = [1, 1]} : vector<8x384xf32> to vector<8x128xf32>
    %241 = arith.addf %239, %240 : vector<8x128xf32>
    %242 = arith.negf %241 : vector<8x128xf32>
    %243 = math.exp %242 : vector<8x128xf32>
    %cst_73 = arith.constant 1.000000e+00 : f32
    %244 = vector.broadcast %cst_73 : f32 to vector<8x128xf32>
    %245 = arith.addf %244, %243 : vector<8x128xf32>
    %246 = arith.divf %244, %245 : vector<8x128xf32>
    %247 = vector.extract_strided_slice %228 {offsets = [0, 256], sizes = [8, 128], strides = [1, 1]} : vector<8x384xf32> to vector<8x128xf32>
    %248 = vector.extract_strided_slice %230 {offsets = [0, 256], sizes = [8, 128], strides = [1, 1]} : vector<8x384xf32> to vector<8x128xf32>
    %249 = arith.addf %248, %14 : vector<8x128xf32>
    %250 = arith.mulf %238, %249 : vector<8x128xf32>
    %251 = arith.addf %247, %250 : vector<8x128xf32>
    %252 = math.tanh %251 : vector<8x128xf32>
    %cst_74 = arith.constant 1.000000e+00 : f32
    %253 = vector.broadcast %cst_74 : f32 to vector<8x128xf32>
    %254 = arith.subf %253, %246 : vector<8x128xf32>
    %255 = arith.mulf %254, %252 : vector<8x128xf32>
    %256 = arith.mulf %246, %222 : vector<8x128xf32>
    %257 = arith.addf %255, %256 : vector<8x128xf32>
    %258 = arith.index_cast %226 : i32 to index
    %c0_75 = arith.constant 0 : index
    %259 = vector.load %arg15[%258, %c0_75] : memref<64x128xf32, #tpu.memory_space<vmem>>, vector<8x128xf32>
    tpu.vector_store %arg15[%258, %c0_75], %257 {strides = array<i32>} : memref<64x128xf32, #tpu.memory_space<vmem>>, vector<8x128xf32>,
    %c7_i32 = arith.constant 7 : i32
    %c8_i32_76 = arith.constant 8 : i32
    %260 = arith.muli %c7_i32, %c8_i32_76 : i32
    %261 = tpu.assume_multiple %260, 8 : i32
    %262 = arith.index_cast %261 : i32 to index
    %c0_77 = arith.constant 0 : index
    %263 = vector.load %arg14[%262, %c0_77] : memref<64x384xf32, #tpu.memory_space<vmem>>, vector<8x384xf32>
    %c0_78 = arith.constant 0 : index
    %c0_79 = arith.constant 0 : index
    %264 = vector.load %arg4[%c0_78, %c0_79] : memref<128x384xf32, #tpu.memory_space<vmem>>, vector<128x384xf32>
    %cst_80 = arith.constant dense<0.000000e+00> : vector<8x384xf32>
    %265 = tpu.matmul %257, %264, %cst_80 {dimension_numbers = #tpu.dot_dimension_numbers<[1], [0], [0], [1], [0, 0, 1, 1], [], []>} : vector<8x128xf32>, vector<128x384xf32>, vector<8x384xf32> -> vector<8x384xf32>
    %266 = vector.extract_strided_slice %263 {offsets = [0, 0], sizes = [8, 128], strides = [1, 1]} : vector<8x384xf32> to vector<8x128xf32>
    %267 = vector.extract_strided_slice %265 {offsets = [0, 0], sizes = [8, 128], strides = [1, 1]} : vector<8x384xf32> to vector<8x128xf32>
    %268 = arith.addf %266, %267 : vector<8x128xf32>
    %269 = arith.negf %268 : vector<8x128xf32>
    %270 = math.exp %269 : vector<8x128xf32>
    %cst_81 = arith.constant 1.000000e+00 : f32
    %271 = vector.broadcast %cst_81 : f32 to vector<8x128xf32>
    %272 = arith.addf %271, %270 : vector<8x128xf32>
    %273 = arith.divf %271, %272 : vector<8x128xf32>
    %274 = vector.extract_strided_slice %263 {offsets = [0, 128], sizes = [8, 128], strides = [1, 1]} : vector<8x384xf32> to vector<8x128xf32>
    %275 = vector.extract_strided_slice %265 {offsets = [0, 128], sizes = [8, 128], strides = [1, 1]} : vector<8x384xf32> to vector<8x128xf32>
    %276 = arith.addf %274, %275 : vector<8x128xf32>
    %277 = arith.negf %276 : vector<8x128xf32>
    %278 = math.exp %277 : vector<8x128xf32>
    %cst_82 = arith.constant 1.000000e+00 : f32
    %279 = vector.broadcast %cst_82 : f32 to vector<8x128xf32>
    %280 = arith.addf %279, %278 : vector<8x128xf32>
    %281 = arith.divf %279, %280 : vector<8x128xf32>
    %282 = vector.extract_strided_slice %263 {offsets = [0, 256], sizes = [8, 128], strides = [1, 1]} : vector<8x384xf32> to vector<8x128xf32>
    %283 = vector.extract_strided_slice %265 {offsets = [0, 256], sizes = [8, 128], strides = [1, 1]} : vector<8x384xf32> to vector<8x128xf32>
    %284 = arith.addf %283, %14 : vector<8x128xf32>
    %285 = arith.mulf %273, %284 : vector<8x128xf32>
    %286 = arith.addf %282, %285 : vector<8x128xf32>
    %287 = math.tanh %286 : vector<8x128xf32>
    %cst_83 = arith.constant 1.000000e+00 : f32
    %288 = vector.broadcast %cst_83 : f32 to vector<8x128xf32>
    %289 = arith.subf %288, %281 : vector<8x128xf32>
    %290 = arith.mulf %289, %287 : vector<8x128xf32>
    %291 = arith.mulf %281, %257 : vector<8x128xf32>
    %292 = arith.addf %290, %291 : vector<8x128xf32>
    %293 = arith.index_cast %261 : i32 to index
    %c0_84 = arith.constant 0 : index
    %294 = vector.load %arg15[%293, %c0_84] : memref<64x128xf32, #tpu.memory_space<vmem>>, vector<8x128xf32>
    tpu.vector_store %arg15[%293, %c0_84], %292 {strides = array<i32>} : memref<64x128xf32, #tpu.memory_space<vmem>>, vector<8x128xf32>,
    %c8_i32_85 = arith.constant 8 : i32
    %c0_86 = arith.constant 0 : index
    %c0_87 = arith.constant 0 : index
    %295 = vector.load %arg16[%c0_86, %c0_87] : memref<8x128xf32, #tpu.memory_space<vmem>>, vector<8x128xf32>
    tpu.vector_store %arg16[%c0_86, %c0_87], %292 {strides = array<i32>} : memref<8x128xf32, #tpu.memory_space<vmem>>, vector<8x128xf32>,
    %c0_88 = arith.constant 0 : index
    %c0_89 = arith.constant 0 : index
    %296 = vector.load %arg15[%c0_88, %c0_89] : memref<64x128xf32, #tpu.memory_space<vmem>>, vector<64x128xf32>
    %c0_90 = arith.constant 0 : index
    %c0_91 = arith.constant 0 : index
    %297 = vector.load %arg7[%c0_90, %c0_91] : memref<128x384xf32, #tpu.memory_space<vmem>>, vector<128x384xf32>
    %cst_92 = arith.constant dense<0.000000e+00> : vector<64x384xf32>
    %298 = tpu.matmul %296, %297, %cst_92 {dimension_numbers = #tpu.dot_dimension_numbers<[1], [0], [0], [1], [0, 0, 1, 1], [], []>} : vector<64x128xf32>, vector<128x384xf32>, vector<64x384xf32> -> vector<64x384xf32>
    %c0_93 = arith.constant 0 : index
    %c0_94 = arith.constant 0 : index
    %299 = vector.load %arg8[%c0_93, %c0_94] : memref<1x384xf32, #tpu.memory_space<vmem>>, vector<1x384xf32>
    %300 = vector.broadcast %299 : vector<1x384xf32> to vector<64x384xf32>
    %301 = arith.addf %298, %300 : vector<64x384xf32>
    %c0_95 = arith.constant 0 : index
    %c0_96 = arith.constant 0 : index
    %302 = vector.load %arg14[%c0_95, %c0_96] : memref<64x384xf32, #tpu.memory_space<vmem>>, vector<64x384xf32>
    tpu.vector_store %arg14[%c0_95, %c0_96], %301 {strides = array<i32>} : memref<64x384xf32, #tpu.memory_space<vmem>>, vector<64x384xf32>,
    %c0_97 = arith.constant 0 : index
    %c0_98 = arith.constant 0 : index
    %303 = vector.load %arg17[%c0_97, %c0_98] : memref<8x128xf32, #tpu.memory_space<vmem>>, vector<8x128xf32>
    %c0_99 = arith.constant 0 : index
    %c0_100 = arith.constant 0 : index
    %304 = vector.load %arg10[%c0_99, %c0_100] : memref<1x128xf32, #tpu.memory_space<vmem>>, vector<1x128xf32>
    %305 = vector.shape_cast %304 : vector<1x128xf32> to vector<1x128xf32>
    %306 = vector.broadcast %305 : vector<1x128xf32> to vector<8x128xf32>
    %c0_i32_101 = arith.constant 0 : i32
    %c8_i32_102 = arith.constant 8 : i32
    %307 = arith.muli %c0_i32_101, %c8_i32_102 : i32
    %308 = tpu.assume_multiple %307, 8 : i32
    %309 = arith.index_cast %308 : i32 to index
    %c0_103 = arith.constant 0 : index
    %310 = vector.load %arg14[%309, %c0_103] : memref<64x384xf32, #tpu.memory_space<vmem>>, vector<8x384xf32>
    %c0_104 = arith.constant 0 : index
    %c0_105 = arith.constant 0 : index
    %311 = vector.load %arg9[%c0_104, %c0_105] : memref<128x384xf32, #tpu.memory_space<vmem>>, vector<128x384xf32>
    %cst_106 = arith.constant dense<0.000000e+00> : vector<8x384xf32>
    %312 = tpu.matmul %303, %311, %cst_106 {dimension_numbers = #tpu.dot_dimension_numbers<[1], [0], [0], [1], [0, 0, 1, 1], [], []>} : vector<8x128xf32>, vector<128x384xf32>, vector<8x384xf32> -> vector<8x384xf32>
    %313 = vector.extract_strided_slice %310 {offsets = [0, 0], sizes = [8, 128], strides = [1, 1]} : vector<8x384xf32> to vector<8x128xf32>
    %314 = vector.extract_strided_slice %312 {offsets = [0, 0], sizes = [8, 128], strides = [1, 1]} : vector<8x384xf32> to vector<8x128xf32>
    %315 = arith.addf %313, %314 : vector<8x128xf32>
    %316 = arith.negf %315 : vector<8x128xf32>
    %317 = math.exp %316 : vector<8x128xf32>
    %cst_107 = arith.constant 1.000000e+00 : f32
    %318 = vector.broadcast %cst_107 : f32 to vector<8x128xf32>
    %319 = arith.addf %318, %317 : vector<8x128xf32>
    %320 = arith.divf %318, %319 : vector<8x128xf32>
    %321 = vector.extract_strided_slice %310 {offsets = [0, 128], sizes = [8, 128], strides = [1, 1]} : vector<8x384xf32> to vector<8x128xf32>
    %322 = vector.extract_strided_slice %312 {offsets = [0, 128], sizes = [8, 128], strides = [1, 1]} : vector<8x384xf32> to vector<8x128xf32>
    %323 = arith.addf %321, %322 : vector<8x128xf32>
    %324 = arith.negf %323 : vector<8x128xf32>
    %325 = math.exp %324 : vector<8x128xf32>
    %cst_108 = arith.constant 1.000000e+00 : f32
    %326 = vector.broadcast %cst_108 : f32 to vector<8x128xf32>
    %327 = arith.addf %326, %325 : vector<8x128xf32>
    %328 = arith.divf %326, %327 : vector<8x128xf32>
    %329 = vector.extract_strided_slice %310 {offsets = [0, 256], sizes = [8, 128], strides = [1, 1]} : vector<8x384xf32> to vector<8x128xf32>
    %330 = vector.extract_strided_slice %312 {offsets = [0, 256], sizes = [8, 128], strides = [1, 1]} : vector<8x384xf32> to vector<8x128xf32>
    %331 = arith.addf %330, %306 : vector<8x128xf32>
    %332 = arith.mulf %320, %331 : vector<8x128xf32>
    %333 = arith.addf %329, %332 : vector<8x128xf32>
    %334 = math.tanh %333 : vector<8x128xf32>
    %cst_109 = arith.constant 1.000000e+00 : f32
    %335 = vector.broadcast %cst_109 : f32 to vector<8x128xf32>
    %336 = arith.subf %335, %328 : vector<8x128xf32>
    %337 = arith.mulf %336, %334 : vector<8x128xf32>
    %338 = arith.mulf %328, %303 : vector<8x128xf32>
    %339 = arith.addf %337, %338 : vector<8x128xf32>
    %340 = arith.index_cast %308 : i32 to index
    %c0_110 = arith.constant 0 : index
    %341 = vector.load %arg15[%340, %c0_110] : memref<64x128xf32, #tpu.memory_space<vmem>>, vector<8x128xf32>
    tpu.vector_store %arg15[%340, %c0_110], %339 {strides = array<i32>} : memref<64x128xf32, #tpu.memory_space<vmem>>, vector<8x128xf32>,
    %c1_i32_111 = arith.constant 1 : i32
    %c8_i32_112 = arith.constant 8 : i32
    %342 = arith.muli %c1_i32_111, %c8_i32_112 : i32
    %343 = tpu.assume_multiple %342, 8 : i32
    %344 = arith.index_cast %343 : i32 to index
    %c0_113 = arith.constant 0 : index
    %345 = vector.load %arg14[%344, %c0_113] : memref<64x384xf32, #tpu.memory_space<vmem>>, vector<8x384xf32>
    %c0_114 = arith.constant 0 : index
    %c0_115 = arith.constant 0 : index
    %346 = vector.load %arg9[%c0_114, %c0_115] : memref<128x384xf32, #tpu.memory_space<vmem>>, vector<128x384xf32>
    %cst_116 = arith.constant dense<0.000000e+00> : vector<8x384xf32>
    %347 = tpu.matmul %339, %346, %cst_116 {dimension_numbers = #tpu.dot_dimension_numbers<[1], [0], [0], [1], [0, 0, 1, 1], [], []>} : vector<8x128xf32>, vector<128x384xf32>, vector<8x384xf32> -> vector<8x384xf32>
    %348 = vector.extract_strided_slice %345 {offsets = [0, 0], sizes = [8, 128], strides = [1, 1]} : vector<8x384xf32> to vector<8x128xf32>
    %349 = vector.extract_strided_slice %347 {offsets = [0, 0], sizes = [8, 128], strides = [1, 1]} : vector<8x384xf32> to vector<8x128xf32>
    %350 = arith.addf %348, %349 : vector<8x128xf32>
    %351 = arith.negf %350 : vector<8x128xf32>
    %352 = math.exp %351 : vector<8x128xf32>
    %cst_117 = arith.constant 1.000000e+00 : f32
    %353 = vector.broadcast %cst_117 : f32 to vector<8x128xf32>
    %354 = arith.addf %353, %352 : vector<8x128xf32>
    %355 = arith.divf %353, %354 : vector<8x128xf32>
    %356 = vector.extract_strided_slice %345 {offsets = [0, 128], sizes = [8, 128], strides = [1, 1]} : vector<8x384xf32> to vector<8x128xf32>
    %357 = vector.extract_strided_slice %347 {offsets = [0, 128], sizes = [8, 128], strides = [1, 1]} : vector<8x384xf32> to vector<8x128xf32>
    %358 = arith.addf %356, %357 : vector<8x128xf32>
    %359 = arith.negf %358 : vector<8x128xf32>
    %360 = math.exp %359 : vector<8x128xf32>
    %cst_118 = arith.constant 1.000000e+00 : f32
    %361 = vector.broadcast %cst_118 : f32 to vector<8x128xf32>
    %362 = arith.addf %361, %360 : vector<8x128xf32>
    %363 = arith.divf %361, %362 : vector<8x128xf32>
    %364 = vector.extract_strided_slice %345 {offsets = [0, 256], sizes = [8, 128], strides = [1, 1]} : vector<8x384xf32> to vector<8x128xf32>
    %365 = vector.extract_strided_slice %347 {offsets = [0, 256], sizes = [8, 128], strides = [1, 1]} : vector<8x384xf32> to vector<8x128xf32>
    %366 = arith.addf %365, %306 : vector<8x128xf32>
    %367 = arith.mulf %355, %366 : vector<8x128xf32>
    %368 = arith.addf %364, %367 : vector<8x128xf32>
    %369 = math.tanh %368 : vector<8x128xf32>
    %cst_119 = arith.constant 1.000000e+00 : f32
    %370 = vector.broadcast %cst_119 : f32 to vector<8x128xf32>
    %371 = arith.subf %370, %363 : vector<8x128xf32>
    %372 = arith.mulf %371, %369 : vector<8x128xf32>
    %373 = arith.mulf %363, %339 : vector<8x128xf32>
    %374 = arith.addf %372, %373 : vector<8x128xf32>
    %375 = arith.index_cast %343 : i32 to index
    %c0_120 = arith.constant 0 : index
    %376 = vector.load %arg15[%375, %c0_120] : memref<64x128xf32, #tpu.memory_space<vmem>>, vector<8x128xf32>
    tpu.vector_store %arg15[%375, %c0_120], %374 {strides = array<i32>} : memref<64x128xf32, #tpu.memory_space<vmem>>, vector<8x128xf32>,
    %c2_i32_121 = arith.constant 2 : i32
    %c8_i32_122 = arith.constant 8 : i32
    %377 = arith.muli %c2_i32_121, %c8_i32_122 : i32
    %378 = tpu.assume_multiple %377, 8 : i32
    %379 = arith.index_cast %378 : i32 to index
    %c0_123 = arith.constant 0 : index
    %380 = vector.load %arg14[%379, %c0_123] : memref<64x384xf32, #tpu.memory_space<vmem>>, vector<8x384xf32>
    %c0_124 = arith.constant 0 : index
    %c0_125 = arith.constant 0 : index
    %381 = vector.load %arg9[%c0_124, %c0_125] : memref<128x384xf32, #tpu.memory_space<vmem>>, vector<128x384xf32>
    %cst_126 = arith.constant dense<0.000000e+00> : vector<8x384xf32>
    %382 = tpu.matmul %374, %381, %cst_126 {dimension_numbers = #tpu.dot_dimension_numbers<[1], [0], [0], [1], [0, 0, 1, 1], [], []>} : vector<8x128xf32>, vector<128x384xf32>, vector<8x384xf32> -> vector<8x384xf32>
    %383 = vector.extract_strided_slice %380 {offsets = [0, 0], sizes = [8, 128], strides = [1, 1]} : vector<8x384xf32> to vector<8x128xf32>
    %384 = vector.extract_strided_slice %382 {offsets = [0, 0], sizes = [8, 128], strides = [1, 1]} : vector<8x384xf32> to vector<8x128xf32>
    %385 = arith.addf %383, %384 : vector<8x128xf32>
    %386 = arith.negf %385 : vector<8x128xf32>
    %387 = math.exp %386 : vector<8x128xf32>
    %cst_127 = arith.constant 1.000000e+00 : f32
    %388 = vector.broadcast %cst_127 : f32 to vector<8x128xf32>
    %389 = arith.addf %388, %387 : vector<8x128xf32>
    %390 = arith.divf %388, %389 : vector<8x128xf32>
    %391 = vector.extract_strided_slice %380 {offsets = [0, 128], sizes = [8, 128], strides = [1, 1]} : vector<8x384xf32> to vector<8x128xf32>
    %392 = vector.extract_strided_slice %382 {offsets = [0, 128], sizes = [8, 128], strides = [1, 1]} : vector<8x384xf32> to vector<8x128xf32>
    %393 = arith.addf %391, %392 : vector<8x128xf32>
    %394 = arith.negf %393 : vector<8x128xf32>
    %395 = math.exp %394 : vector<8x128xf32>
    %cst_128 = arith.constant 1.000000e+00 : f32
    %396 = vector.broadcast %cst_128 : f32 to vector<8x128xf32>
    %397 = arith.addf %396, %395 : vector<8x128xf32>
    %398 = arith.divf %396, %397 : vector<8x128xf32>
    %399 = vector.extract_strided_slice %380 {offsets = [0, 256], sizes = [8, 128], strides = [1, 1]} : vector<8x384xf32> to vector<8x128xf32>
    %400 = vector.extract_strided_slice %382 {offsets = [0, 256], sizes = [8, 128], strides = [1, 1]} : vector<8x384xf32> to vector<8x128xf32>
    %401 = arith.addf %400, %306 : vector<8x128xf32>
    %402 = arith.mulf %390, %401 : vector<8x128xf32>
    %403 = arith.addf %399, %402 : vector<8x128xf32>
    %404 = math.tanh %403 : vector<8x128xf32>
    %cst_129 = arith.constant 1.000000e+00 : f32
    %405 = vector.broadcast %cst_129 : f32 to vector<8x128xf32>
    %406 = arith.subf %405, %398 : vector<8x128xf32>
    %407 = arith.mulf %406, %404 : vector<8x128xf32>
    %408 = arith.mulf %398, %374 : vector<8x128xf32>
    %409 = arith.addf %407, %408 : vector<8x128xf32>
    %410 = arith.index_cast %378 : i32 to index
    %c0_130 = arith.constant 0 : index
    %411 = vector.load %arg15[%410, %c0_130] : memref<64x128xf32, #tpu.memory_space<vmem>>, vector<8x128xf32>
    tpu.vector_store %arg15[%410, %c0_130], %409 {strides = array<i32>} : memref<64x128xf32, #tpu.memory_space<vmem>>, vector<8x128xf32>,
    %c3_i32_131 = arith.constant 3 : i32
    %c8_i32_132 = arith.constant 8 : i32
    %412 = arith.muli %c3_i32_131, %c8_i32_132 : i32
    %413 = tpu.assume_multiple %412, 8 : i32
    %414 = arith.index_cast %413 : i32 to index
    %c0_133 = arith.constant 0 : index
    %415 = vector.load %arg14[%414, %c0_133] : memref<64x384xf32, #tpu.memory_space<vmem>>, vector<8x384xf32>
    %c0_134 = arith.constant 0 : index
    %c0_135 = arith.constant 0 : index
    %416 = vector.load %arg9[%c0_134, %c0_135] : memref<128x384xf32, #tpu.memory_space<vmem>>, vector<128x384xf32>
    %cst_136 = arith.constant dense<0.000000e+00> : vector<8x384xf32>
    %417 = tpu.matmul %409, %416, %cst_136 {dimension_numbers = #tpu.dot_dimension_numbers<[1], [0], [0], [1], [0, 0, 1, 1], [], []>} : vector<8x128xf32>, vector<128x384xf32>, vector<8x384xf32> -> vector<8x384xf32>
    %418 = vector.extract_strided_slice %415 {offsets = [0, 0], sizes = [8, 128], strides = [1, 1]} : vector<8x384xf32> to vector<8x128xf32>
    %419 = vector.extract_strided_slice %417 {offsets = [0, 0], sizes = [8, 128], strides = [1, 1]} : vector<8x384xf32> to vector<8x128xf32>
    %420 = arith.addf %418, %419 : vector<8x128xf32>
    %421 = arith.negf %420 : vector<8x128xf32>
    %422 = math.exp %421 : vector<8x128xf32>
    %cst_137 = arith.constant 1.000000e+00 : f32
    %423 = vector.broadcast %cst_137 : f32 to vector<8x128xf32>
    %424 = arith.addf %423, %422 : vector<8x128xf32>
    %425 = arith.divf %423, %424 : vector<8x128xf32>
    %426 = vector.extract_strided_slice %415 {offsets = [0, 128], sizes = [8, 128], strides = [1, 1]} : vector<8x384xf32> to vector<8x128xf32>
    %427 = vector.extract_strided_slice %417 {offsets = [0, 128], sizes = [8, 128], strides = [1, 1]} : vector<8x384xf32> to vector<8x128xf32>
    %428 = arith.addf %426, %427 : vector<8x128xf32>
    %429 = arith.negf %428 : vector<8x128xf32>
    %430 = math.exp %429 : vector<8x128xf32>
    %cst_138 = arith.constant 1.000000e+00 : f32
    %431 = vector.broadcast %cst_138 : f32 to vector<8x128xf32>
    %432 = arith.addf %431, %430 : vector<8x128xf32>
    %433 = arith.divf %431, %432 : vector<8x128xf32>
    %434 = vector.extract_strided_slice %415 {offsets = [0, 256], sizes = [8, 128], strides = [1, 1]} : vector<8x384xf32> to vector<8x128xf32>
    %435 = vector.extract_strided_slice %417 {offsets = [0, 256], sizes = [8, 128], strides = [1, 1]} : vector<8x384xf32> to vector<8x128xf32>
    %436 = arith.addf %435, %306 : vector<8x128xf32>
    %437 = arith.mulf %425, %436 : vector<8x128xf32>
    %438 = arith.addf %434, %437 : vector<8x128xf32>
    %439 = math.tanh %438 : vector<8x128xf32>
    %cst_139 = arith.constant 1.000000e+00 : f32
    %440 = vector.broadcast %cst_139 : f32 to vector<8x128xf32>
    %441 = arith.subf %440, %433 : vector<8x128xf32>
    %442 = arith.mulf %441, %439 : vector<8x128xf32>
    %443 = arith.mulf %433, %409 : vector<8x128xf32>
    %444 = arith.addf %442, %443 : vector<8x128xf32>
    %445 = arith.index_cast %413 : i32 to index
    %c0_140 = arith.constant 0 : index
    %446 = vector.load %arg15[%445, %c0_140] : memref<64x128xf32, #tpu.memory_space<vmem>>, vector<8x128xf32>
    tpu.vector_store %arg15[%445, %c0_140], %444 {strides = array<i32>} : memref<64x128xf32, #tpu.memory_space<vmem>>, vector<8x128xf32>,
    %c4_i32_141 = arith.constant 4 : i32
    %c8_i32_142 = arith.constant 8 : i32
    %447 = arith.muli %c4_i32_141, %c8_i32_142 : i32
    %448 = tpu.assume_multiple %447, 8 : i32
    %449 = arith.index_cast %448 : i32 to index
    %c0_143 = arith.constant 0 : index
    %450 = vector.load %arg14[%449, %c0_143] : memref<64x384xf32, #tpu.memory_space<vmem>>, vector<8x384xf32>
    %c0_144 = arith.constant 0 : index
    %c0_145 = arith.constant 0 : index
    %451 = vector.load %arg9[%c0_144, %c0_145] : memref<128x384xf32, #tpu.memory_space<vmem>>, vector<128x384xf32>
    %cst_146 = arith.constant dense<0.000000e+00> : vector<8x384xf32>
    %452 = tpu.matmul %444, %451, %cst_146 {dimension_numbers = #tpu.dot_dimension_numbers<[1], [0], [0], [1], [0, 0, 1, 1], [], []>} : vector<8x128xf32>, vector<128x384xf32>, vector<8x384xf32> -> vector<8x384xf32>
    %453 = vector.extract_strided_slice %450 {offsets = [0, 0], sizes = [8, 128], strides = [1, 1]} : vector<8x384xf32> to vector<8x128xf32>
    %454 = vector.extract_strided_slice %452 {offsets = [0, 0], sizes = [8, 128], strides = [1, 1]} : vector<8x384xf32> to vector<8x128xf32>
    %455 = arith.addf %453, %454 : vector<8x128xf32>
    %456 = arith.negf %455 : vector<8x128xf32>
    %457 = math.exp %456 : vector<8x128xf32>
    %cst_147 = arith.constant 1.000000e+00 : f32
    %458 = vector.broadcast %cst_147 : f32 to vector<8x128xf32>
    %459 = arith.addf %458, %457 : vector<8x128xf32>
    %460 = arith.divf %458, %459 : vector<8x128xf32>
    %461 = vector.extract_strided_slice %450 {offsets = [0, 128], sizes = [8, 128], strides = [1, 1]} : vector<8x384xf32> to vector<8x128xf32>
    %462 = vector.extract_strided_slice %452 {offsets = [0, 128], sizes = [8, 128], strides = [1, 1]} : vector<8x384xf32> to vector<8x128xf32>
    %463 = arith.addf %461, %462 : vector<8x128xf32>
    %464 = arith.negf %463 : vector<8x128xf32>
    %465 = math.exp %464 : vector<8x128xf32>
    %cst_148 = arith.constant 1.000000e+00 : f32
    %466 = vector.broadcast %cst_148 : f32 to vector<8x128xf32>
    %467 = arith.addf %466, %465 : vector<8x128xf32>
    %468 = arith.divf %466, %467 : vector<8x128xf32>
    %469 = vector.extract_strided_slice %450 {offsets = [0, 256], sizes = [8, 128], strides = [1, 1]} : vector<8x384xf32> to vector<8x128xf32>
    %470 = vector.extract_strided_slice %452 {offsets = [0, 256], sizes = [8, 128], strides = [1, 1]} : vector<8x384xf32> to vector<8x128xf32>
    %471 = arith.addf %470, %306 : vector<8x128xf32>
    %472 = arith.mulf %460, %471 : vector<8x128xf32>
    %473 = arith.addf %469, %472 : vector<8x128xf32>
    %474 = math.tanh %473 : vector<8x128xf32>
    %cst_149 = arith.constant 1.000000e+00 : f32
    %475 = vector.broadcast %cst_149 : f32 to vector<8x128xf32>
    %476 = arith.subf %475, %468 : vector<8x128xf32>
    %477 = arith.mulf %476, %474 : vector<8x128xf32>
    %478 = arith.mulf %468, %444 : vector<8x128xf32>
    %479 = arith.addf %477, %478 : vector<8x128xf32>
    %480 = arith.index_cast %448 : i32 to index
    %c0_150 = arith.constant 0 : index
    %481 = vector.load %arg15[%480, %c0_150] : memref<64x128xf32, #tpu.memory_space<vmem>>, vector<8x128xf32>
    tpu.vector_store %arg15[%480, %c0_150], %479 {strides = array<i32>} : memref<64x128xf32, #tpu.memory_space<vmem>>, vector<8x128xf32>,
    %c5_i32_151 = arith.constant 5 : i32
    %c8_i32_152 = arith.constant 8 : i32
    %482 = arith.muli %c5_i32_151, %c8_i32_152 : i32
    %483 = tpu.assume_multiple %482, 8 : i32
    %484 = arith.index_cast %483 : i32 to index
    %c0_153 = arith.constant 0 : index
    %485 = vector.load %arg14[%484, %c0_153] : memref<64x384xf32, #tpu.memory_space<vmem>>, vector<8x384xf32>
    %c0_154 = arith.constant 0 : index
    %c0_155 = arith.constant 0 : index
    %486 = vector.load %arg9[%c0_154, %c0_155] : memref<128x384xf32, #tpu.memory_space<vmem>>, vector<128x384xf32>
    %cst_156 = arith.constant dense<0.000000e+00> : vector<8x384xf32>
    %487 = tpu.matmul %479, %486, %cst_156 {dimension_numbers = #tpu.dot_dimension_numbers<[1], [0], [0], [1], [0, 0, 1, 1], [], []>} : vector<8x128xf32>, vector<128x384xf32>, vector<8x384xf32> -> vector<8x384xf32>
    %488 = vector.extract_strided_slice %485 {offsets = [0, 0], sizes = [8, 128], strides = [1, 1]} : vector<8x384xf32> to vector<8x128xf32>
    %489 = vector.extract_strided_slice %487 {offsets = [0, 0], sizes = [8, 128], strides = [1, 1]} : vector<8x384xf32> to vector<8x128xf32>
    %490 = arith.addf %488, %489 : vector<8x128xf32>
    %491 = arith.negf %490 : vector<8x128xf32>
    %492 = math.exp %491 : vector<8x128xf32>
    %cst_157 = arith.constant 1.000000e+00 : f32
    %493 = vector.broadcast %cst_157 : f32 to vector<8x128xf32>
    %494 = arith.addf %493, %492 : vector<8x128xf32>
    %495 = arith.divf %493, %494 : vector<8x128xf32>
    %496 = vector.extract_strided_slice %485 {offsets = [0, 128], sizes = [8, 128], strides = [1, 1]} : vector<8x384xf32> to vector<8x128xf32>
    %497 = vector.extract_strided_slice %487 {offsets = [0, 128], sizes = [8, 128], strides = [1, 1]} : vector<8x384xf32> to vector<8x128xf32>
    %498 = arith.addf %496, %497 : vector<8x128xf32>
    %499 = arith.negf %498 : vector<8x128xf32>
    %500 = math.exp %499 : vector<8x128xf32>
    %cst_158 = arith.constant 1.000000e+00 : f32
    %501 = vector.broadcast %cst_158 : f32 to vector<8x128xf32>
    %502 = arith.addf %501, %500 : vector<8x128xf32>
    %503 = arith.divf %501, %502 : vector<8x128xf32>
    %504 = vector.extract_strided_slice %485 {offsets = [0, 256], sizes = [8, 128], strides = [1, 1]} : vector<8x384xf32> to vector<8x128xf32>
    %505 = vector.extract_strided_slice %487 {offsets = [0, 256], sizes = [8, 128], strides = [1, 1]} : vector<8x384xf32> to vector<8x128xf32>
    %506 = arith.addf %505, %306 : vector<8x128xf32>
    %507 = arith.mulf %495, %506 : vector<8x128xf32>
    %508 = arith.addf %504, %507 : vector<8x128xf32>
    %509 = math.tanh %508 : vector<8x128xf32>
    %cst_159 = arith.constant 1.000000e+00 : f32
    %510 = vector.broadcast %cst_159 : f32 to vector<8x128xf32>
    %511 = arith.subf %510, %503 : vector<8x128xf32>
    %512 = arith.mulf %511, %509 : vector<8x128xf32>
    %513 = arith.mulf %503, %479 : vector<8x128xf32>
    %514 = arith.addf %512, %513 : vector<8x128xf32>
    %515 = arith.index_cast %483 : i32 to index
    %c0_160 = arith.constant 0 : index
    %516 = vector.load %arg15[%515, %c0_160] : memref<64x128xf32, #tpu.memory_space<vmem>>, vector<8x128xf32>
    tpu.vector_store %arg15[%515, %c0_160], %514 {strides = array<i32>} : memref<64x128xf32, #tpu.memory_space<vmem>>, vector<8x128xf32>,
    %c6_i32_161 = arith.constant 6 : i32
    %c8_i32_162 = arith.constant 8 : i32
    %517 = arith.muli %c6_i32_161, %c8_i32_162 : i32
    %518 = tpu.assume_multiple %517, 8 : i32
    %519 = arith.index_cast %518 : i32 to index
    %c0_163 = arith.constant 0 : index
    %520 = vector.load %arg14[%519, %c0_163] : memref<64x384xf32, #tpu.memory_space<vmem>>, vector<8x384xf32>
    %c0_164 = arith.constant 0 : index
    %c0_165 = arith.constant 0 : index
    %521 = vector.load %arg9[%c0_164, %c0_165] : memref<128x384xf32, #tpu.memory_space<vmem>>, vector<128x384xf32>
    %cst_166 = arith.constant dense<0.000000e+00> : vector<8x384xf32>
    %522 = tpu.matmul %514, %521, %cst_166 {dimension_numbers = #tpu.dot_dimension_numbers<[1], [0], [0], [1], [0, 0, 1, 1], [], []>} : vector<8x128xf32>, vector<128x384xf32>, vector<8x384xf32> -> vector<8x384xf32>
    %523 = vector.extract_strided_slice %520 {offsets = [0, 0], sizes = [8, 128], strides = [1, 1]} : vector<8x384xf32> to vector<8x128xf32>
    %524 = vector.extract_strided_slice %522 {offsets = [0, 0], sizes = [8, 128], strides = [1, 1]} : vector<8x384xf32> to vector<8x128xf32>
    %525 = arith.addf %523, %524 : vector<8x128xf32>
    %526 = arith.negf %525 : vector<8x128xf32>
    %527 = math.exp %526 : vector<8x128xf32>
    %cst_167 = arith.constant 1.000000e+00 : f32
    %528 = vector.broadcast %cst_167 : f32 to vector<8x128xf32>
    %529 = arith.addf %528, %527 : vector<8x128xf32>
    %530 = arith.divf %528, %529 : vector<8x128xf32>
    %531 = vector.extract_strided_slice %520 {offsets = [0, 128], sizes = [8, 128], strides = [1, 1]} : vector<8x384xf32> to vector<8x128xf32>
    %532 = vector.extract_strided_slice %522 {offsets = [0, 128], sizes = [8, 128], strides = [1, 1]} : vector<8x384xf32> to vector<8x128xf32>
    %533 = arith.addf %531, %532 : vector<8x128xf32>
    %534 = arith.negf %533 : vector<8x128xf32>
    %535 = math.exp %534 : vector<8x128xf32>
    %cst_168 = arith.constant 1.000000e+00 : f32
    %536 = vector.broadcast %cst_168 : f32 to vector<8x128xf32>
    %537 = arith.addf %536, %535 : vector<8x128xf32>
    %538 = arith.divf %536, %537 : vector<8x128xf32>
    %539 = vector.extract_strided_slice %520 {offsets = [0, 256], sizes = [8, 128], strides = [1, 1]} : vector<8x384xf32> to vector<8x128xf32>
    %540 = vector.extract_strided_slice %522 {offsets = [0, 256], sizes = [8, 128], strides = [1, 1]} : vector<8x384xf32> to vector<8x128xf32>
    %541 = arith.addf %540, %306 : vector<8x128xf32>
    %542 = arith.mulf %530, %541 : vector<8x128xf32>
    %543 = arith.addf %539, %542 : vector<8x128xf32>
    %544 = math.tanh %543 : vector<8x128xf32>
    %cst_169 = arith.constant 1.000000e+00 : f32
    %545 = vector.broadcast %cst_169 : f32 to vector<8x128xf32>
    %546 = arith.subf %545, %538 : vector<8x128xf32>
    %547 = arith.mulf %546, %544 : vector<8x128xf32>
    %548 = arith.mulf %538, %514 : vector<8x128xf32>
    %549 = arith.addf %547, %548 : vector<8x128xf32>
    %550 = arith.index_cast %518 : i32 to index
    %c0_170 = arith.constant 0 : index
    %551 = vector.load %arg15[%550, %c0_170] : memref<64x128xf32, #tpu.memory_space<vmem>>, vector<8x128xf32>
    tpu.vector_store %arg15[%550, %c0_170], %549 {strides = array<i32>} : memref<64x128xf32, #tpu.memory_space<vmem>>, vector<8x128xf32>,
    %c7_i32_171 = arith.constant 7 : i32
    %c8_i32_172 = arith.constant 8 : i32
    %552 = arith.muli %c7_i32_171, %c8_i32_172 : i32
    %553 = tpu.assume_multiple %552, 8 : i32
    %554 = arith.index_cast %553 : i32 to index
    %c0_173 = arith.constant 0 : index
    %555 = vector.load %arg14[%554, %c0_173] : memref<64x384xf32, #tpu.memory_space<vmem>>, vector<8x384xf32>
    %c0_174 = arith.constant 0 : index
    %c0_175 = arith.constant 0 : index
    %556 = vector.load %arg9[%c0_174, %c0_175] : memref<128x384xf32, #tpu.memory_space<vmem>>, vector<128x384xf32>
    %cst_176 = arith.constant dense<0.000000e+00> : vector<8x384xf32>
    %557 = tpu.matmul %549, %556, %cst_176 {dimension_numbers = #tpu.dot_dimension_numbers<[1], [0], [0], [1], [0, 0, 1, 1], [], []>} : vector<8x128xf32>, vector<128x384xf32>, vector<8x384xf32> -> vector<8x384xf32>
    %558 = vector.extract_strided_slice %555 {offsets = [0, 0], sizes = [8, 128], strides = [1, 1]} : vector<8x384xf32> to vector<8x128xf32>
    %559 = vector.extract_strided_slice %557 {offsets = [0, 0], sizes = [8, 128], strides = [1, 1]} : vector<8x384xf32> to vector<8x128xf32>
    %560 = arith.addf %558, %559 : vector<8x128xf32>
    %561 = arith.negf %560 : vector<8x128xf32>
    %562 = math.exp %561 : vector<8x128xf32>
    %cst_177 = arith.constant 1.000000e+00 : f32
    %563 = vector.broadcast %cst_177 : f32 to vector<8x128xf32>
    %564 = arith.addf %563, %562 : vector<8x128xf32>
    %565 = arith.divf %563, %564 : vector<8x128xf32>
    %566 = vector.extract_strided_slice %555 {offsets = [0, 128], sizes = [8, 128], strides = [1, 1]} : vector<8x384xf32> to vector<8x128xf32>
    %567 = vector.extract_strided_slice %557 {offsets = [0, 128], sizes = [8, 128], strides = [1, 1]} : vector<8x384xf32> to vector<8x128xf32>
    %568 = arith.addf %566, %567 : vector<8x128xf32>
    %569 = arith.negf %568 : vector<8x128xf32>
    %570 = math.exp %569 : vector<8x128xf32>
    %cst_178 = arith.constant 1.000000e+00 : f32
    %571 = vector.broadcast %cst_178 : f32 to vector<8x128xf32>
    %572 = arith.addf %571, %570 : vector<8x128xf32>
    %573 = arith.divf %571, %572 : vector<8x128xf32>
    %574 = vector.extract_strided_slice %555 {offsets = [0, 256], sizes = [8, 128], strides = [1, 1]} : vector<8x384xf32> to vector<8x128xf32>
    %575 = vector.extract_strided_slice %557 {offsets = [0, 256], sizes = [8, 128], strides = [1, 1]} : vector<8x384xf32> to vector<8x128xf32>
    %576 = arith.addf %575, %306 : vector<8x128xf32>
    %577 = arith.mulf %565, %576 : vector<8x128xf32>
    %578 = arith.addf %574, %577 : vector<8x128xf32>
    %579 = math.tanh %578 : vector<8x128xf32>
    %cst_179 = arith.constant 1.000000e+00 : f32
    %580 = vector.broadcast %cst_179 : f32 to vector<8x128xf32>
    %581 = arith.subf %580, %573 : vector<8x128xf32>
    %582 = arith.mulf %581, %579 : vector<8x128xf32>
    %583 = arith.mulf %573, %549 : vector<8x128xf32>
    %584 = arith.addf %582, %583 : vector<8x128xf32>
    %585 = arith.index_cast %553 : i32 to index
    %c0_180 = arith.constant 0 : index
    %586 = vector.load %arg15[%585, %c0_180] : memref<64x128xf32, #tpu.memory_space<vmem>>, vector<8x128xf32>
    tpu.vector_store %arg15[%585, %c0_180], %584 {strides = array<i32>} : memref<64x128xf32, #tpu.memory_space<vmem>>, vector<8x128xf32>,
    %c8_i32_181 = arith.constant 8 : i32
    %c0_182 = arith.constant 0 : index
    %c0_183 = arith.constant 0 : index
    %587 = vector.load %arg17[%c0_182, %c0_183] : memref<8x128xf32, #tpu.memory_space<vmem>>, vector<8x128xf32>
    tpu.vector_store %arg17[%c0_182, %c0_183], %584 {strides = array<i32>} : memref<8x128xf32, #tpu.memory_space<vmem>>, vector<8x128xf32>,
    %c0_184 = arith.constant 0 : index
    %c0_185 = arith.constant 0 : index
    %588 = vector.load %arg15[%c0_184, %c0_185] : memref<64x128xf32, #tpu.memory_space<vmem>>, vector<64x128xf32>
    %c0_186 = arith.constant 0 : index
    %c0_187 = arith.constant 0 : index
    %589 = vector.load %arg11[%c0_186, %c0_187] : memref<128x128xf32, #tpu.memory_space<vmem>>, vector<128x128xf32>
    %cst_188 = arith.constant dense<0.000000e+00> : vector<64x128xf32>
    %590 = tpu.matmul %588, %589, %cst_188 {dimension_numbers = #tpu.dot_dimension_numbers<[1], [0], [0], [1], [0, 0, 1, 1], [], []>} : vector<64x128xf32>, vector<128x128xf32>, vector<64x128xf32> -> vector<64x128xf32>
    %c0_189 = arith.constant 0 : index
    %c0_190 = arith.constant 0 : index
    %591 = vector.load %arg12[%c0_189, %c0_190] : memref<1x128xf32, #tpu.memory_space<vmem>>, vector<1x128xf32>
    %592 = vector.broadcast %591 : vector<1x128xf32> to vector<64x128xf32>
    %593 = arith.addf %590, %592 : vector<64x128xf32>
    %c0_191 = arith.constant 0 : index
    %c0_192 = arith.constant 0 : index
    %c0_193 = arith.constant 0 : index
    %594 = vector.load %arg13[%c0_191, %c0_192, %c0_193] : memref<1x64x128xf32, #tpu.memory_space<vmem>>, vector<1x64x128xf32>
    %595 = vector.shape_cast %594 : vector<1x64x128xf32> to vector<64x128xf32>
    %596 = vector.shape_cast %593 : vector<64x128xf32> to vector<1x64x128xf32>
    tpu.vector_store %arg13[%c0_191, %c0_192, %c0_193], %596 {strides = array<i32>} : memref<1x64x128xf32, #tpu.memory_space<vmem>>, vector<1x64x128xf32>,
    return
  }
  func.func @transform_0(%arg0: i32, %arg1: i32) -> (i32, i32, i32) {
    %c0_i32 = arith.constant 0 : i32
    %c0_i32_0 = arith.constant 0 : i32
    return %arg0, %arg1, %c0_i32 : i32, i32, i32
  }
  func.func @transform_1(%arg0: i32, %arg1: i32) -> (i32, i32) {
    %c0_i32 = arith.constant 0 : i32
    %c0_i32_0 = arith.constant 0 : i32
    %c0_i32_1 = arith.constant 0 : i32
    return %c0_i32, %c0_i32_0 : i32, i32
  }
  func.func @transform_2(%arg0: i32, %arg1: i32) -> (i32, i32) {
    %c0_i32 = arith.constant 0 : i32
    %c0_i32_0 = arith.constant 0 : i32
    %c0_i32_1 = arith.constant 0 : i32
    return %c0_i32, %c0_i32_0 : i32, i32
  }
  func.func @transform_3(%arg0: i32, %arg1: i32) -> (i32, i32) {
    %c0_i32 = arith.constant 0 : i32
    %c0_i32_0 = arith.constant 0 : i32
    %c0_i32_1 = arith.constant 0 : i32
    return %c0_i32, %c0_i32_0 : i32, i32
  }
  func.func @transform_4(%arg0: i32, %arg1: i32) -> (i32, i32) {
    %c0_i32 = arith.constant 0 : i32
    %c0_i32_0 = arith.constant 0 : i32
    %c0_i32_1 = arith.constant 0 : i32
    return %c0_i32, %c0_i32_0 : i32, i32
  }
  func.func @transform_5(%arg0: i32, %arg1: i32) -> (i32, i32) {
    %c0_i32 = arith.constant 0 : i32
    %c0_i32_0 = arith.constant 0 : i32
    %c0_i32_1 = arith.constant 0 : i32
    return %c0_i32, %c0_i32_0 : i32, i32
  }
  func.func @transform_6(%arg0: i32, %arg1: i32) -> (i32, i32) {
    %c0_i32 = arith.constant 0 : i32
    %c0_i32_0 = arith.constant 0 : i32
    %c0_i32_1 = arith.constant 0 : i32
    return %c0_i32, %c0_i32_0 : i32, i32
  }
  func.func @transform_7(%arg0: i32, %arg1: i32) -> (i32, i32) {
    %c0_i32 = arith.constant 0 : i32
    %c0_i32_0 = arith.constant 0 : i32
    %c0_i32_1 = arith.constant 0 : i32
    return %c0_i32, %c0_i32_0 : i32, i32
  }
  func.func @transform_8(%arg0: i32, %arg1: i32) -> (i32, i32) {
    %c0_i32 = arith.constant 0 : i32
    %c0_i32_0 = arith.constant 0 : i32
    %c0_i32_1 = arith.constant 0 : i32
    return %c0_i32, %c0_i32_0 : i32, i32
  }
  func.func @transform_9(%arg0: i32, %arg1: i32) -> (i32, i32) {
    %c0_i32 = arith.constant 0 : i32
    %c0_i32_0 = arith.constant 0 : i32
    %c0_i32_1 = arith.constant 0 : i32
    return %c0_i32, %c0_i32_0 : i32, i32
  }
  func.func @transform_10(%arg0: i32, %arg1: i32) -> (i32, i32) {
    %c0_i32 = arith.constant 0 : i32
    %c0_i32_0 = arith.constant 0 : i32
    %c0_i32_1 = arith.constant 0 : i32
    return %c0_i32, %c0_i32_0 : i32, i32
  }
  func.func @transform_11(%arg0: i32, %arg1: i32) -> (i32, i32, i32) {
    %c0_i32 = arith.constant 0 : i32
    %c0_i32_0 = arith.constant 0 : i32
    return %arg0, %arg1, %c0_i32 : i32, i32, i32
  }
}

</mosaic_0001>

<llo_original>
// kernel: tpu_custom_call.1
$region0: #{tpu_custom_call.1}
  #allocation0 [shape = 'u32[]', space=smem, size = 0x4, offset = 0x4, fixed_abs, tag = 'smem constant byte address 0x4 - core index']
  #allocation1 [shape = 'u32[72,128]{1,0:T(1,128)}', space=vmem, size = 0x9000, scoped, tag = 'internal scratch']
  #allocation2 [shape = 'f32[64,384]{1,0:T(8,128)}', space=vmem, size = 0x18000, scoped, tag = 'scratch operand']
  #allocation3 [shape = 'f32[64,128]{1,0:T(8,128)}', space=vmem, size = 0x8000, scoped, tag = 'scratch operand']
  #allocation4 [shape = 'f32[8,128]{1,0:T(8,128)}', space=vmem, size = 0x1000, scoped, tag = 'scratch operand']
  #allocation5 [shape = 'f32[8,128]{1,0:T(8,128)}', space=vmem, size = 0x1000, scoped, tag = 'scratch operand']
  %s0 = inlined_call_operand.vmem [shape: f32[1,64,16], index: 0, kind: input, shape index: {}]
  %s1 = inlined_call_operand.vmem [shape: f32[16,384], index: 1, kind: input, shape index: {}]
  %s2 = inlined_call_operand.hbm [shape: f32[128,384], index: 2, kind: input, shape index: {}]
  %s3 = inlined_call_operand.vmem [shape: f32[1,384], index: 3, kind: input, shape index: {}]
  %s4 = inlined_call_operand.vmem [shape: f32[1,128], index: 4, kind: input, shape index: {}]
  %s5 = inlined_call_operand.hbm [shape: f32[128,384], index: 5, kind: input, shape index: {}]
  %s6 = inlined_call_operand.vmem [shape: f32[1,384], index: 6, kind: input, shape index: {}]
  %s7 = inlined_call_operand.hbm [shape: f32[128,384], index: 7, kind: input, shape index: {}]
  %s8 = inlined_call_operand.vmem [shape: f32[1,128], index: 8, kind: input, shape index: {}]
  %s9 = inlined_call_operand.hbm [shape: f32[128,128], index: 9, kind: input, shape index: {}]
  %s10 = inlined_call_operand.vmem [shape: f32[1,128], index: 10, kind: input, shape index: {}]
  %s11 = inlined_call_operand.hbm [shape: f32[1,64,128], index: 11, kind: output, shape index: {}]
  %s12 = sld [smem:[#allocation0]]
  $region74: #{tpu_custom_call.1} parent=0
    _
  %s14 = ssub.s32 1, %s12
  %s15 = scalar_select 0, %s14, %s12
  $region1: #{tpu_custom_call.1} parent=0
    #allocation6 [shape = 'u8[196608]{0}', space=vmem, size = 0x30000, scoped, tag = 'input window, operand 2, single buffered']
    #allocation7 [shape = 's32[1]{0}', space=sflag, size = 0x4, scoped, tag = 'scoped memory for tpu_custom_call.1']
    #allocation8 [shape = 's32[1]{0}', space=sflag, size = 0x4, scoped, tag = 'scoped memory for tpu_custom_call.1']
    #allocation9 [shape = 'u8[196608]{0}', space=vmem, size = 0x30000, scoped, tag = 'input window, operand 5, single buffered']
    #allocation10 [shape = 's32[1]{0}', space=sflag, size = 0x4, scoped, tag = 'scoped memory for tpu_custom_call.1']
    #allocation11 [shape = 'u8[196608]{0}', space=vmem, size = 0x30000, scoped, tag = 'input window, operand 7, single buffered']
    #allocation12 [shape = 'u8[65536]{0}', space=vmem, size = 0x10000, scoped, tag = 'input window, operand 9, single buffered']
    #allocation13 [shape = 's32[1]{0}', space=sflag, size = 0x4, scoped, tag = 'scoped memory for tpu_custom_call.1']
    #allocation14 [shape = 'u8[32768]{0}', space=vmem, size = 0x8000, scoped, tag = 'output window, operand 0, single buffered']
    %16 = vsyncpa [#allocation7], 0
    %17 = vsyncpa [#allocation10], 0
    %18 = vsyncpa [#allocation13], 0
    %19 = vsyncpa [#allocation8], 0
    // Predicated region
    $region2: #{tpu_custom_call.1} parent=1 // pred_check
      _
    $region3: #{tpu_custom_call.1} parent=1 // pred_check_branch
      %21 = sbr.rel (0) target = $region5
    $region4: #{tpu_custom_call.1} parent=1 // pred_region
      _
    $region5: #{tpu_custom_call.1} parent=1 // pred_fallthru
      _
    // Predicated region
    $region6: #{tpu_custom_call.1} parent=1 // pred_check
      _
    $region7: #{tpu_custom_call.1} parent=1 // pred_check_branch
      %23 = sbr.rel (0) target = $region9
    $region8: #{tpu_custom_call.1} parent=1 // pred_region
      _
    $region9: #{tpu_custom_call.1} parent=1 // pred_fallthru
      _
    // Predicated region
    $region10: #{tpu_custom_call.1} parent=1 // pred_check
      _
    $region11: #{tpu_custom_call.1} parent=1 // pred_check_branch
      %25 = sbr.rel (0) target = $region13
    $region12: #{tpu_custom_call.1} parent=1 // pred_region
      %27 = vsyncadd [#allocation7], 0
      %s28 = sshll.u32 %s2, 4
      %s29 = int_to_ptr.hbm [resolvable:$true] %s28
      %s30 = sshll.u32 [#allocation6], 4
      %s31 = int_to_ptr.vmem [resolvable:$true] %s30
      %36 = dma.hbm_to_vmem [thread:$0]  %s29, 6144, %s31, [#allocation7], 384, 384, 24
    $region13: #{tpu_custom_call.1} parent=1 // pred_fallthru
      _
    // Predicated region
    $region14: #{tpu_custom_call.1} parent=1 // pred_check
      _
    $region15: #{tpu_custom_call.1} parent=1 // pred_check_branch
      %38 = sbr.rel (0) target = $region17
    $region16: #{tpu_custom_call.1} parent=1 // pred_region
      _
    $region17: #{tpu_custom_call.1} parent=1 // pred_fallthru
      _
    // Predicated region
    $region18: #{tpu_custom_call.1} parent=1 // pred_check
      _
    $region19: #{tpu_custom_call.1} parent=1 // pred_check_branch
      %40 = sbr.rel (0) target = $region21
    $region20: #{tpu_custom_call.1} parent=1 // pred_region
      _
    $region21: #{tpu_custom_call.1} parent=1 // pred_fallthru
      _
    // Predicated region
    $region22: #{tpu_custom_call.1} parent=1 // pred_check
      _
    $region23: #{tpu_custom_call.1} parent=1 // pred_check_branch
      %42 = sbr.rel (0) target = $region25
    $region24: #{tpu_custom_call.1} parent=1 // pred_region
      %44 = vsyncadd [#allocation10], 0
      %s45 = sshll.u32 %s5, 4
      %s46 = int_to_ptr.hbm [resolvable:$true] %s45
      %s47 = sshll.u32 [#allocation9], 4
      %s48 = int_to_ptr.vmem [resolvable:$true] %s47
      %53 = dma.hbm_to_vmem [thread:$0]  %s46, 6144, %s48, [#allocation10], 384, 384, 24
    $region25: #{tpu_custom_call.1} parent=1 // pred_fallthru
      _
    // Predicated region
    $region26: #{tpu_custom_call.1} parent=1 // pred_check
      _
    $region27: #{tpu_custom_call.1} parent=1 // pred_check_branch
      %55 = sbr.rel (0) target = $region29
    $region28: #{tpu_custom_call.1} parent=1 // pred_region
      _
    $region29: #{tpu_custom_call.1} parent=1 // pred_fallthru
      _
    // Predicated region
    $region30: #{tpu_custom_call.1} parent=1 // pred_check
      _
    $region31: #{tpu_custom_call.1} parent=1 // pred_check_branch
      %57 = sbr.rel (0) target = $region33
    $region32: #{tpu_custom_call.1} parent=1 // pred_region
      %59 = vsyncadd [#allocation10], 0
      %s60 = sshll.u32 %s7, 4
      %s61 = int_to_ptr.hbm [resolvable:$true] %s60
      %s62 = sshll.u32 [#allocation11], 4
      %s63 = int_to_ptr.vmem [resolvable:$true] %s62
      %68 = dma.hbm_to_vmem [thread:$0]  %s61, 6144, %s63, [#allocation10], 384, 384, 24
    $region33: #{tpu_custom_call.1} parent=1 // pred_fallthru
      _
    // Predicated region
    $region34: #{tpu_custom_call.1} parent=1 // pred_check
      _
    $region35: #{tpu_custom_call.1} parent=1 // pred_check_branch
      %70 = sbr.rel (0) target = $region37
    $region36: #{tpu_custom_call.1} parent=1 // pred_region
      _
    $region37: #{tpu_custom_call.1} parent=1 // pred_fallthru
      _
    // Predicated region
    $region38: #{tpu_custom_call.1} parent=1 // pred_check
      _
    $region39: #{tpu_custom_call.1} parent=1 // pred_check_branch
      %72 = sbr.rel (0) target = $region41
    $region40: #{tpu_custom_call.1} parent=1 // pred_region
      %74 = vsyncadd [#allocation13], 0
      %s75 = sshll.u32 %s9, 4
      %s76 = int_to_ptr.hbm [resolvable:$true] %s75
      %s77 = sshll.u32 [#allocation12], 4
      %s78 = int_to_ptr.vmem [resolvable:$true] %s77
      %83 = dma.hbm_to_vmem [thread:$0]  %s76, 2048, %s78, [#allocation13], 128, 128, 8
    $region41: #{tpu_custom_call.1} parent=1 // pred_fallthru
      _
    // Predicated region
    $region42: #{tpu_custom_call.1} parent=1 // pred_check
      _
    $region43: #{tpu_custom_call.1} parent=1 // pred_check_branch
      %85 = sbr.rel (0) target = $region45
    $region44: #{tpu_custom_call.1} parent=1 // pred_region
      _
    $region45: #{tpu_custom_call.1} parent=1 // pred_fallthru
      _
    // Predicated region
    $region46: #{tpu_custom_call.1} parent=1 // pred_check
      _
    $region47: #{tpu_custom_call.1} parent=1 // pred_check_branch
      %87 = sbr.rel (0) target = $region49
    $region48: #{tpu_custom_call.1} parent=1 // pred_region
      %89 = dma.done [#allocation7], 6144
    $region49: #{tpu_custom_call.1} parent=1 // pred_fallthru
      _
    // Predicated region
    $region50: #{tpu_custom_call.1} parent=1 // pred_check
      _
    $region51: #{tpu_custom_call.1} parent=1 // pred_check_branch
      %91 = sbr.rel (0) target = $region53
    $region52: #{tpu_custom_call.1} parent=1 // pred_region
      %93 = dma.done [#allocation10], 6144
    $region53: #{tpu_custom_call.1} parent=1 // pred_fallthru
      _
    // Predicated region
    $region54: #{tpu_custom_call.1} parent=1 // pred_check
      _
    $region55: #{tpu_custom_call.1} parent=1 // pred_check_branch
      %95 = sbr.rel (0) target = $region57
    $region56: #{tpu_custom_call.1} parent=1 // pred_region
      %97 = dma.done [#allocation10], 6144
    $region57: #{tpu_custom_call.1} parent=1 // pred_fallthru
      _
    // Predicated region
    $region58: #{tpu_custom_call.1} parent=1 // pred_check
      _
    $region59: #{tpu_custom_call.1} parent=1 // pred_check_branch
      %99 = sbr.rel (0) target = $region61
    $region60: #{tpu_custom_call.1} parent=1 // pred_region
      %101 = dma.done [#allocation13], 2048
    $region61: #{tpu_custom_call.1} parent=1 // pred_fallthru
      _
    %p102 = scmp.eq.s32.totalorder 0, 0
    // Predicated region
    $region62: #{tpu_custom_call.1} parent=1 // pred_check
      %p103 = pneg %p102
    $region63: #{tpu_custom_call.1} parent=1 // pred_check_branch
      %105 = sbr.rel (%p103) target = $region65
    $region64: #{tpu_custom_call.1} parent=1 // pred_region
      %106 = vst [vmem:[#allocation4] sm:$0xff] 0.0
      %107 = vst [vmem:[#allocation5] sm:$0xff] 0.0
    $region65: #{tpu_custom_call.1} parent=1 // pred_fallthru
      _
    %v108 = vld [vmem:[%s0] sm:$0xff]
    %v109 = vld [vmem:[%s0 + $0x8] sm:$0xff]
    %v110 = vld [vmem:[%s0 + $0x10] sm:$0xff]
    %v111 = vld [vmem:[%s0 + $0x18] sm:$0xff]
    %v112 = vld [vmem:[%s0 + $0x20] sm:$0xff]
    %v113 = vld [vmem:[%s0 + $0x28] sm:$0xff]
    %v114 = vld [vmem:[%s0 + $0x30] sm:$0xff]
    %v115 = vld [vmem:[%s0 + $0x38] sm:$0xff]
    %v116 = vld [vmem:[%s1] sm:$0xff]
    %v117 = vld [vmem:[%s1 + $0x8] sm:$0xff]
    %v118 = vld [vmem:[%s1 + $0x10] sm:$0xff]
    %v119 = vld [vmem:[%s1 + $0x18] sm:$0xff]
    %v120 = vld [vmem:[%s1 + $0x20] sm:$0xff]
    %v121 = vld [vmem:[%s1 + $0x28] sm:$0xff]
    %v122 = vld [vmem:[%s3] sm:$0x7]
    %v124 = vperm.slane %v122, 0
    %v125 = vperm.slane %v122, 1
    %v126 = vperm.slane %v122, 2
    %vm130 = vcmask 130048
    %v132 = vsel %vm130, %v108, 0
    %v135 = vsel %vm130, %v109, 0
    %v138 = vsel %vm130, %v110, 0
    %v141 = vsel %vm130, %v111, 0
    %v144 = vsel %vm130, %v112, 0
    %v147 = vsel %vm130, %v113, 0
    %v150 = vsel %vm130, %v114, 0
    %v153 = vsel %vm130, %v115, 0
    %155 = vmatpush.msra.mxu0 0.0
    %156 = vmatpush.msra.mxu0 0.0
    %157 = vmatpush.msra.mxu0 0.0
    %158 = vmatpush.msra.mxu0 0.0
    %159 = vmatpush.msra.mxu0 0.0
    %160 = vmatpush.msra.mxu0 0.0
    %161 = vmatpush.msra.mxu0 0.0
    %162 = vmatpush.msra.mxu0 0.0
    %163 = vmatpush.msra.mxu0 0.0
    %164 = vmatpush.msra.mxu0 0.0
    %165 = vmatpush.msra.mxu0 0.0
    %166 = vmatpush.msra.mxu0 0.0
    %167 = vmatpush.msra.mxu0 0.0
    %168 = vmatpush.msra.mxu0 0.0
    %169 = vmatpush.msra.mxu0 %v119
    %170 = vmatpush.msra.mxu0 %v116
    %171 = vmatmul.f32.gmra.mxu0 %v132
    %v172 = vpop.f32.mrf.mxu0
    %v173 = vadd.f32 %v124, %v172
    %174 = vmatmul.f32.gmra.mxu0 %v135
    %v175 = vpop.f32.mrf.mxu0
    %v176 = vadd.f32 %v124, %v175
    %177 = vmatmul.f32.gmra.mxu0 %v138
    %v178 = vpop.f32.mrf.mxu0
    %v179 = vadd.f32 %v124, %v178
    %180 = vmatmul.f32.gmra.mxu0 %v141
    %v181 = vpop.f32.mrf.mxu0
    %v182 = vadd.f32 %v124, %v181
    %183 = vmatmul.f32.gmra.mxu0 %v144
    %v184 = vpop.f32.mrf.mxu0
    %v185 = vadd.f32 %v124, %v184
    %186 = vmatmul.f32.gmra.mxu0 %v147
    %v187 = vpop.f32.mrf.mxu0
    %v188 = vadd.f32 %v124, %v187
    %189 = vmatmul.f32.gmra.mxu0 %v150
    %v190 = vpop.f32.mrf.mxu0
    %v191 = vadd.f32 %v124, %v190
    %192 = vmatmul.f32.gmra.mxu0 %v153
    %v193 = vpop.f32.mrf.mxu0
    %v194 = vadd.f32 %v124, %v193
    %195 = vdwg.mxu0
    %196 = vmatpush.msra.mxu0 0.0
    %197 = vmatpush.msra.mxu0 0.0
    %198 = vmatpush.msra.mxu0 0.0
    %199 = vmatpush.msra.mxu0 0.0
    %200 = vmatpush.msra.mxu0 0.0
    %201 = vmatpush.msra.mxu0 0.0
    %202 = vmatpush.msra.mxu0 0.0
    %203 = vmatpush.msra.mxu0 0.0
    %204 = vmatpush.msra.mxu0 0.0
    %205 = vmatpush.msra.mxu0 0.0
    %206 = vmatpush.msra.mxu0 0.0
    %207 = vmatpush.msra.mxu0 0.0
    %208 = vmatpush.msra.mxu0 0.0
    %209 = vmatpush.msra.mxu0 0.0
    %210 = vmatpush.msra.mxu0 %v120
    %211 = vmatpush.msra.mxu0 %v117
    %212 = vmatmul.f32.gmra.mxu0 %v132
    %v213 = vpop.f32.mrf.mxu0
    %v214 = vadd.f32 %v125, %v213
    %215 = vmatmul.f32.gmra.mxu0 %v135
    %v216 = vpop.f32.mrf.mxu0
    %v217 = vadd.f32 %v125, %v216
    %218 = vmatmul.f32.gmra.mxu0 %v138
    %v219 = vpop.f32.mrf.mxu0
    %v220 = vadd.f32 %v125, %v219
    %221 = vmatmul.f32.gmra.mxu0 %v141
    %v222 = vpop.f32.mrf.mxu0
    %v223 = vadd.f32 %v125, %v222
    %224 = vmatmul.f32.gmra.mxu0 %v144
    %v225 = vpop.f32.mrf.mxu0
    %v226 = vadd.f32 %v125, %v225
    %227 = vmatmul.f32.gmra.mxu0 %v147
    %v228 = vpop.f32.mrf.mxu0
    %v229 = vadd.f32 %v125, %v228
    %230 = vmatmul.f32.gmra.mxu0 %v150
    %v231 = vpop.f32.mrf.mxu0
    %v232 = vadd.f32 %v125, %v231
    %233 = vmatmul.f32.gmra.mxu0 %v153
    %v234 = vpop.f32.mrf.mxu0
    %v235 = vadd.f32 %v125, %v234
    %236 = vdwg.mxu0
    %237 = vmatpush.msra.mxu0 0.0
    %238 = vmatpush.msra.mxu0 0.0
    %239 = vmatpush.msra.mxu0 0.0
    %240 = vmatpush.msra.mxu0 0.0
    %241 = vmatpush.msra.mxu0 0.0
    %242 = vmatpush.msra.mxu0 0.0
    %243 = vmatpush.msra.mxu0 0.0
    %244 = vmatpush.msra.mxu0 0.0
    %245 = vmatpush.msra.mxu0 0.0
    %246 = vmatpush.msra.mxu0 0.0
    %247 = vmatpush.msra.mxu0 0.0
    %248 = vmatpush.msra.mxu0 0.0
    %249 = vmatpush.msra.mxu0 0.0
    %250 = vmatpush.msra.mxu0 0.0
    %251 = vmatpush.msra.mxu0 %v121
    %252 = vmatpush.msra.mxu0 %v118
    %253 = vmatmul.f32.gmra.mxu0 %v132
    %v254 = vpop.f32.mrf.mxu0
    %v255 = vadd.f32 %v126, %v254
    %256 = vmatmul.f32.gmra.mxu0 %v135
    %v257 = vpop.f32.mrf.mxu0
    %v258 = vadd.f32 %v126, %v257
    %259 = vmatmul.f32.gmra.mxu0 %v138
    %v260 = vpop.f32.mrf.mxu0
    %v261 = vadd.f32 %v126, %v260
    %262 = vmatmul.f32.gmra.mxu0 %v141
    %v263 = vpop.f32.mrf.mxu0
    %v264 = vadd.f32 %v126, %v263
    %265 = vmatmul.f32.gmra.mxu0 %v144
    %v266 = vpop.f32.mrf.mxu0
    %v267 = vadd.f32 %v126, %v266
    %268 = vmatmul.f32.gmra.mxu0 %v147
    %v269 = vpop.f32.mrf.mxu0
    %v270 = vadd.f32 %v126, %v269
    %271 = vmatmul.f32.gmra.mxu0 %v150
    %v272 = vpop.f32.mrf.mxu0
    %v273 = vadd.f32 %v126, %v272
    %274 = vmatmul.f32.gmra.mxu0 %v153
    %v275 = vpop.f32.mrf.mxu0
    %v276 = vadd.f32 %v126, %v275
    %277 = vdwg.mxu0
    %278 = vst [vmem:[#allocation2] sm:$0xff] %v173
    %279 = vst [vmem:[#allocation2 + $0x8] sm:$0xff] %v214
    %280 = vst [vmem:[#allocation2 + $0x10] sm:$0xff] %v255
    %281 = vst [vmem:[#allocation2 + $0x18] sm:$0xff] %v176
    %282 = vst [vmem:[#allocation2 + $0x20] sm:$0xff] %v217
    %283 = vst [vmem:[#allocation2 + $0x28] sm:$0xff] %v258
    %284 = vst [vmem:[#allocation2 + $0x30] sm:$0xff] %v179
    %285 = vst [vmem:[#allocation2 + $0x38] sm:$0xff] %v220
    %286 = vst [vmem:[#allocation2 + $0x40] sm:$0xff] %v261
    %287 = vst [vmem:[#allocation2 + $0x48] sm:$0xff] %v182
    %288 = vst [vmem:[#allocation2 + $0x50] sm:$0xff] %v223
    %289 = vst [vmem:[#allocation2 + $0x58] sm:$0xff] %v264
    %290 = vst [vmem:[#allocation2 + $0x60] sm:$0xff] %v185
    %291 = vst [vmem:[#allocation2 + $0x68] sm:$0xff] %v226
    %292 = vst [vmem:[#allocation2 + $0x70] sm:$0xff] %v267
    %293 = vst [vmem:[#allocation2 + $0x78] sm:$0xff] %v188
    %294 = vst [vmem:[#allocation2 + $0x80] sm:$0xff] %v229
    %295 = vst [vmem:[#allocation2 + $0x88] sm:$0xff] %v270
    %296 = vst [vmem:[#allocation2 + $0x90] sm:$0xff] %v191
    %297 = vst [vmem:[#allocation2 + $0x98] sm:$0xff] %v232
    %298 = vst [vmem:[#allocation2 + $0xa0] sm:$0xff] %v273
    %299 = vst [vmem:[#allocation2 + $0xa8] sm:$0xff] %v194
    %300 = vst [vmem:[#allocation2 + $0xb0] sm:$0xff] %v235
    %301 = vst [vmem:[#allocation2 + $0xb8] sm:$0xff] %v276
    %v302 = vld [vmem:[#allocation4] sm:$0xff]
    %v303 = vld [vmem:[%s4] sm:$0x1]
    %v305 = vperm.slane %v303, 0
    %s307 = smul.u32 0, 3
    %s308 = smul.addr %s307, 8
    %s309 = scalar_lea.vmem [#allocation2], %s308
    %v310 = vld [vmem:[%s309] sm:$0xff]
    %v311 = vld [vmem:[%s309 + $0x8] sm:$0xff]
    %v312 = vld [vmem:[%s309 + $0x10] sm:$0xff]
    %v313 = vld [vmem:[#allocation6] sm:$0xff]
    %v314 = vld [vmem:[#allocation6 + $0x8] sm:$0xff]
    %v315 = vld [vmem:[#allocation6 + $0x10] sm:$0xff]
    %v316 = vld [vmem:[#allocation6 + $0x18] sm:$0xff]
    %v317 = vld [vmem:[#allocation6 + $0x20] sm:$0xff]
    %v318 = vld [vmem:[#allocation6 + $0x28] sm:$0xff]
    %v319 = vld [vmem:[#allocation6 + $0x30] sm:$0xff]
    %v320 = vld [vmem:[#allocation6 + $0x38] sm:$0xff]
    %v321 = vld [vmem:[#allocation6 + $0x40] sm:$0xff]
    %v322 = vld [vmem:[#allocation6 + $0x48] sm:$0xff]
    %v323 = vld [vmem:[#allocation6 + $0x50] sm:$0xff]
    %v324 = vld [vmem:[#allocation6 + $0x58] sm:$0xff]
    %v325 = vld [vmem:[#allocation6 + $0x60] sm:$0xff]
    %v326 = vld [vmem:[#allocation6 + $0x68] sm:$0xff]
    %v327 = vld [vmem:[#allocation6 + $0x70] sm:$0xff]
    %v328 = vld [vmem:[#allocation6 + $0x78] sm:$0xff]
    %v329 = vld [vmem:[#allocation6 + $0x80] sm:$0xff]
    %v330 = vld [vmem:[#allocation6 + $0x88] sm:$0xff]
    %v331 = vld [vmem:[#allocation6 + $0x90] sm:$0xff]
    %v332 = vld [vmem:[#allocation6 + $0x98] sm:$0xff]
    %v333 = vld [vmem:[#allocation6 + $0xa0] sm:$0xff]
    %v334 = vld [vmem:[#allocation6 + $0xa8] sm:$0xff]
    %v335 = vld [vmem:[#allocation6 + $0xb0] sm:$0xff]
    %v336 = vld [vmem:[#allocation6 + $0xb8] sm:$0xff]
    %v337 = vld [vmem:[#allocation6 + $0xc0] sm:$0xff]
    %v338 = vld [vmem:[#allocation6 + $0xc8] sm:$0xff]
    %v339 = vld [vmem:[#allocation6 + $0xd0] sm:$0xff]
    %v340 = vld [vmem:[#allocation6 + $0xd8] sm:$0xff]
    %v341 = vld [vmem:[#allocation6 + $0xe0] sm:$0xff]
    %v342 = vld [vmem:[#allocation6 + $0xe8] sm:$0xff]
    %v343 = vld [vmem:[#allocation6 + $0xf0] sm:$0xff]
    %v344 = vld [vmem:[#allocation6 + $0xf8] sm:$0xff]
    %v345 = vld [vmem:[#allocation6 + $0x100] sm:$0xff]
    %v346 = vld [vmem:[#allocation6 + $0x108] sm:$0xff]
    %v347 = vld [vmem:[#allocation6 + $0x110] sm:$0xff]
    %v348 = vld [vmem:[#allocation6 + $0x118] sm:$0xff]
    %v349 = vld [vmem:[#allocation6 + $0x120] sm:$0xff]
    %v350 = vld [vmem:[#allocation6 + $0x128] sm:$0xff]
    %v351 = vld [vmem:[#allocation6 + $0x130] sm:$0xff]
    %v352 = vld [vmem:[#allocation6 + $0x138] sm:$0xff]
    %v353 = vld [vmem:[#allocation6 + $0x140] sm:$0xff]
    %v354 = vld [vmem:[#allocation6 + $0x148] sm:$0xff]
    %v355 = vld [vmem:[#allocation6 + $0x150] sm:$0xff]
    %v356 = vld [vmem:[#allocation6 + $0x158] sm:$0xff]
    %v357 = vld [vmem:[#allocation6 + $0x160] sm:$0xff]
    %v358 = vld [vmem:[#allocation6 + $0x168] sm:$0xff]
    %v359 = vld [vmem:[#allocation6 + $0x170] sm:$0xff]
    %v360 = vld [vmem:[#allocation6 + $0x178] sm:$0xff]
    %361 = vmatpush.msra.mxu0 %v358
    %362 = vmatpush.msra.mxu0 %v355
    %363 = vmatpush.msra.mxu0 %v352
    %364 = vmatpush.msra.mxu0 %v349
    %365 = vmatpush.msra.mxu0 %v346
    %366 = vmatpush.msra.mxu0 %v343
    %367 = vmatpush.msra.mxu0 %v340
    %368 = vmatpush.msra.mxu0 %v337
    %369 = vmatpush.msra.mxu0 %v334
    %370 = vmatpush.msra.mxu0 %v331
    %371 = vmatpush.msra.mxu0 %v328
    %372 = vmatpush.msra.mxu0 %v325
    %373 = vmatpush.msra.mxu0 %v322
    %374 = vmatpush.msra.mxu0 %v319
    %375 = vmatpush.msra.mxu0 %v316
    %376 = vmatpush.msra.mxu0 %v313
    %377 = vmatmul.f32.gmra.mxu0 %v302
    %v378 = vpop.f32.mrf.mxu0
    %v379 = vadd.f32 0.0, %v378
    %380 = vdwg.mxu0
    %381 = vmatpush.msra.mxu0 %v359
    %382 = vmatpush.msra.mxu0 %v356
    %383 = vmatpush.msra.mxu0 %v353
    %384 = vmatpush.msra.mxu0 %v350
    %385 = vmatpush.msra.mxu0 %v347
    %386 = vmatpush.msra.mxu0 %v344
    %387 = vmatpush.msra.mxu0 %v341
    %388 = vmatpush.msra.mxu0 %v338
    %389 = vmatpush.msra.mxu0 %v335
    %390 = vmatpush.msra.mxu0 %v332
    %391 = vmatpush.msra.mxu0 %v329
    %392 = vmatpush.msra.mxu0 %v326
    %393 = vmatpush.msra.mxu0 %v323
    %394 = vmatpush.msra.mxu0 %v320
    %395 = vmatpush.msra.mxu0 %v317
    %396 = vmatpush.msra.mxu0 %v314
    %397 = vmatmul.f32.gmra.mxu0 %v302
    %v398 = vpop.f32.mrf.mxu0
    %v399 = vadd.f32 0.0, %v398
    %400 = vdwg.mxu0
    %401 = vmatpush.msra.mxu0 %v360
    %402 = vmatpush.msra.mxu0 %v357
    %403 = vmatpush.msra.mxu0 %v354
    %404 = vmatpush.msra.mxu0 %v351
    %405 = vmatpush.msra.mxu0 %v348
    %406 = vmatpush.msra.mxu0 %v345
    %407 = vmatpush.msra.mxu0 %v342
    %408 = vmatpush.msra.mxu0 %v339
    %409 = vmatpush.msra.mxu0 %v336
    %410 = vmatpush.msra.mxu0 %v333
    %411 = vmatpush.msra.mxu0 %v330
    %412 = vmatpush.msra.mxu0 %v327
    %413 = vmatpush.msra.mxu0 %v324
    %414 = vmatpush.msra.mxu0 %v321
    %415 = vmatpush.msra.mxu0 %v318
    %416 = vmatpush.msra.mxu0 %v315
    %417 = vmatmul.f32.gmra.mxu0 %v302
    %v418 = vpop.f32.mrf.mxu0
    %v419 = vadd.f32 0.0, %v418
    %420 = vdwg.mxu0
    %v421 = vadd.f32 %v310, %v379
    %v422 = vxor.u32 %v421, 2147483648
    %v423 = vmul.f32 %v422, 1.442695
    %v424 = vpow.pop %v423
    %v425 = vadd.f32 %v424, 1.0
    %v426 = vrcp.pop %v425
    %v427 = vmul.f32 %v425, %v426
    %v428 = vsub.f32 1.0, %v427
    %v429 = vmul.f32 %v426, %v428
    %v430 = vadd.f32 %v426, %v429
    %vm431 = vweird.f32 %v425
    %vm432 = vweird.f32 %v426
    %vm433 = vmor %vm431, %vm432
    %v434 = vsel %vm433, %v426, %v430
    %v435 = vand.u32 2147483647, %v425
    %vm436 = vcmp.eq.f32.partialorder %v435, 8.507059e+37
    %v437 = vand.u32 %v425, 2147483648
    %v438 = vor.u32 1.1754944e-38, %v437
    %v439 = vsel %vm436, %v438, %v434
    %v440 = vmul.f32 1.0, %v439
    %v441 = vadd.f32 %v311, %v399
    %v442 = vxor.u32 %v441, 2147483648
    %v443 = vmul.f32 %v442, 1.442695
    %v444 = vpow.pop %v443
    %v445 = vadd.f32 %v444, 1.0
    %v446 = vrcp.pop %v445
    %v447 = vmul.f32 %v445, %v446
    %v448 = vsub.f32 1.0, %v447
    %v449 = vmul.f32 %v446, %v448
    %v450 = vadd.f32 %v446, %v449
    %vm451 = vweird.f32 %v445
    %vm452 = vweird.f32 %v446
    %vm453 = vmor %vm451, %vm452
    %v454 = vsel %vm453, %v446, %v450
    %v455 = vand.u32 2147483647, %v445
    %vm456 = vcmp.eq.f32.partialorder %v455, 8.507059e+37
    %v457 = vand.u32 %v445, 2147483648
    %v458 = vor.u32 1.1754944e-38, %v457
    %v459 = vsel %vm456, %v458, %v454
    %v460 = vmul.f32 1.0, %v459
    %v461 = vadd.f32 %v419, %v305
    %v462 = vmul.f32 %v440, %v461
    %v463 = vadd.f32 %v312, %v462
    %v464 = vtanh.pop %v463
    %v465 = vsub.f32 1.0, %v460
    %v466 = vmul.f32 %v465, %v464
    %v467 = vmul.f32 %v460, %v302
    %v468 = vadd.f32 %v466, %v467
    %469 = vst [vmem:[#allocation3] sm:$0xff] %v468
    %s470 = smul.u32 1, 3
    %s471 = smul.addr %s470, 8
    %s472 = scalar_lea.vmem [#allocation2], %s471
    %v473 = vld [vmem:[%s472] sm:$0xff]
    %v474 = vld [vmem:[%s472 + $0x8] sm:$0xff]
    %v475 = vld [vmem:[%s472 + $0x10] sm:$0xff]
    %v476 = vld [vmem:[#allocation6] sm:$0xff]
    %v477 = vld [vmem:[#allocation6 + $0x8] sm:$0xff]
    %v478 = vld [vmem:[#allocation6 + $0x10] sm:$0xff]
    %v479 = vld [vmem:[#allocation6 + $0x18] sm:$0xff]
    %v480 = vld [vmem:[#allocation6 + $0x20] sm:$0xff]
    %v481 = vld [vmem:[#allocation6 + $0x28] sm:$0xff]
    %v482 = vld [vmem:[#allocation6 + $0x30] sm:$0xff]
    %v483 = vld [vmem:[#allocation6 + $0x38] sm:$0xff]
    %v484 = vld [vmem:[#allocation6 + $0x40] sm:$0xff]
    %v485 = vld [vmem:[#allocation6 + $0x48] sm:$0xff]
    %v486 = vld [vmem:[#allocation6 + $0x50] sm:$0xff]
    %v487 = vld [vmem:[#allocation6 + $0x58] sm:$0xff]
    %v488 = vld [vmem:[#allocation6 + $0x60] sm:$0xff]
    %v489 = vld [vmem:[#allocation6 + $0x68] sm:$0xff]
    %v490 = vld [vmem:[#allocation6 + $0x70] sm:$0xff]
    %v491 = vld [vmem:[#allocation6 + $0x78] sm:$0xff]
    %v492 = vld [vmem:[#allocation6 + $0x80] sm:$0xff]
    %v493 = vld [vmem:[#allocation6 + $0x88] sm:$0xff]
    %v494 = vld [vmem:[#allocation6 + $0x90] sm:$0xff]
    %v495 = vld [vmem:[#allocation6 + $0x98] sm:$0xff]
    %v496 = vld [vmem:[#allocation6 + $0xa0] sm:$0xff]
    %v497 = vld [vmem:[#allocation6 + $0xa8] sm:$0xff]
    %v498 = vld [vmem:[#allocation6 + $0xb0] sm:$0xff]
    %v499 = vld [vmem:[#allocation6 + $0xb8] sm:$0xff]
    %v500 = vld [vmem:[#allocation6 + $0xc0] sm:$0xff]
    %v501 = vld [vmem:[#allocation6 + $0xc8] sm:$0xff]
    %v502 = vld [vmem:[#allocation6 + $0xd0] sm:$0xff]
    %v503 = vld [vmem:[#allocation6 + $0xd8] sm:$0xff]
    %v504 = vld [vmem:[#allocation6 + $0xe0] sm:$0xff]
    %v505 = vld [vmem:[#allocation6 + $0xe8] sm:$0xff]
    %v506 = vld [vmem:[#allocation6 + $0xf0] sm:$0xff]
    %v507 = vld [vmem:[#allocation6 + $0xf8] sm:$0xff]
    %v508 = vld [vmem:[#allocation6 + $0x100] sm:$0xff]
    %v509 = vld [vmem:[#allocation6 + $0x108] sm:$0xff]
    %v510 = vld [vmem:[#allocation6 + $0x110] sm:$0xff]
    %v511 = vld [vmem:[#allocation6 + $0x118] sm:$0xff]
    %v512 = vld [vmem:[#allocation6 + $0x120] sm:$0xff]
    %v513 = vld [vmem:[#allocation6 + $0x128] sm:$0xff]
    %v514 = vld [vmem:[#allocation6 + $0x130] sm:$0xff]
    %v515 = vld [vmem:[#allocation6 + $0x138] sm:$0xff]
    %v516 = vld [vmem:[#allocation6 + $0x140] sm:$0xff]
    %v517 = vld [vmem:[#allocation6 + $0x148] sm:$0xff]
    %v518 = vld [vmem:[#allocation6 + $0x150] sm:$0xff]
    %v519 = vld [vmem:[#allocation6 + $0x158] sm:$0xff]
    %v520 = vld [vmem:[#allocation6 + $0x160] sm:$0xff]
    %v521 = vld [vmem:[#allocation6 + $0x168] sm:$0xff]
    %v522 = vld [vmem:[#allocation6 + $0x170] sm:$0xff]
    %v523 = vld [vmem:[#allocation6 + $0x178] sm:$0xff]
    %524 = vmatpush.msra.mxu0 %v521
    %525 = vmatpush.msra.mxu0 %v518
    %526 = vmatpush.msra.mxu0 %v515
    %527 = vmatpush.msra.mxu0 %v512
    %528 = vmatpush.msra.mxu0 %v509
    %529 = vmatpush.msra.mxu0 %v506
    %530 = vmatpush.msra.mxu0 %v503
    %531 = vmatpush.msra.mxu0 %v500
    %532 = vmatpush.msra.mxu0 %v497
    %533 = vmatpush.msra.mxu0 %v494
    %534 = vmatpush.msra.mxu0 %v491
    %535 = vmatpush.msra.mxu0 %v488
    %536 = vmatpush.msra.mxu0 %v485
    %537 = vmatpush.msra.mxu0 %v482
    %538 = vmatpush.msra.mxu0 %v479
    %539 = vmatpush.msra.mxu0 %v476
    %540 = vmatmul.f32.gmra.mxu0 %v468
    %v541 = vpop.f32.mrf.mxu0
    %v542 = vadd.f32 0.0, %v541
    %543 = vdwg.mxu0
    %544 = vmatpush.msra.mxu0 %v522
    %545 = vmatpush.msra.mxu0 %v519
    %546 = vmatpush.msra.mxu0 %v516
    %547 = vmatpush.msra.mxu0 %v513
    %548 = vmatpush.msra.mxu0 %v510
    %549 = vmatpush.msra.mxu0 %v507
    %550 = vmatpush.msra.mxu0 %v504
    %551 = vmatpush.msra.mxu0 %v501
    %552 = vmatpush.msra.mxu0 %v498
    %553 = vmatpush.msra.mxu0 %v495
    %554 = vmatpush.msra.mxu0 %v492
    %555 = vmatpush.msra.mxu0 %v489
    %556 = vmatpush.msra.mxu0 %v486
    %557 = vmatpush.msra.mxu0 %v483
    %558 = vmatpush.msra.mxu0 %v480
    %559 = vmatpush.msra.mxu0 %v477
    %560 = vmatmul.f32.gmra.mxu0 %v468
    %v561 = vpop.f32.mrf.mxu0
    %v562 = vadd.f32 0.0, %v561
    %563 = vdwg.mxu0
    %564 = vmatpush.msra.mxu0 %v523
    %565 = vmatpush.msra.mxu0 %v520
    %566 = vmatpush.msra.mxu0 %v517
    %567 = vmatpush.msra.mxu0 %v514
    %568 = vmatpush.msra.mxu0 %v511
    %569 = vmatpush.msra.mxu0 %v508
    %570 = vmatpush.msra.mxu0 %v505
    %571 = vmatpush.msra.mxu0 %v502
    %572 = vmatpush.msra.mxu0 %v499
    %573 = vmatpush.msra.mxu0 %v496
    %574 = vmatpush.msra.mxu0 %v493
    %575 = vmatpush.msra.mxu0 %v490
    %576 = vmatpush.msra.mxu0 %v487
    %577 = vmatpush.msra.mxu0 %v484
    %578 = vmatpush.msra.mxu0 %v481
    %579 = vmatpush.msra.mxu0 %v478
    %580 = vmatmul.f32.gmra.mxu0 %v468
    %v581 = vpop.f32.mrf.mxu0
    %v582 = vadd.f32 0.0, %v581
    %583 = vdwg.mxu0
    %v584 = vadd.f32 %v473, %v542
    %v585 = vxor.u32 %v584, 2147483648
    %v586 = vmul.f32 %v585, 1.442695
    %v587 = vpow.pop %v586
    %v588 = vadd.f32 %v587, 1.0
    %v589 = vrcp.pop %v588
    %v590 = vmul.f32 %v588, %v589
    %v591 = vsub.f32 1.0, %v590
    %v592 = vmul.f32 %v589, %v591
    %v593 = vadd.f32 %v589, %v592
    %vm594 = vweird.f32 %v588
    %vm595 = vweird.f32 %v589
    %vm596 = vmor %vm594, %vm595
    %v597 = vsel %vm596, %v589, %v593
    %v598 = vand.u32 2147483647, %v588
    %vm599 = vcmp.eq.f32.partialorder %v598, 8.507059e+37
    %v600 = vand.u32 %v588, 2147483648
    %v601 = vor.u32 1.1754944e-38, %v600
    %v602 = vsel %vm599, %v601, %v597
    %v603 = vmul.f32 1.0, %v602
    %v604 = vadd.f32 %v474, %v562
    %v605 = vxor.u32 %v604, 2147483648
    %v606 = vmul.f32 %v605, 1.442695
    %v607 = vpow.pop %v606
    %v608 = vadd.f32 %v607, 1.0
    %v609 = vrcp.pop %v608
    %v610 = vmul.f32 %v608, %v609
    %v611 = vsub.f32 1.0, %v610
    %v612 = vmul.f32 %v609, %v611
    %v613 = vadd.f32 %v609, %v612
    %vm614 = vweird.f32 %v608
    %vm615 = vweird.f32 %v609
    %vm616 = vmor %vm614, %vm615
    %v617 = vsel %vm616, %v609, %v613
    %v618 = vand.u32 2147483647, %v608
    %vm619 = vcmp.eq.f32.partialorder %v618, 8.507059e+37
    %v620 = vand.u32 %v608, 2147483648
    %v621 = vor.u32 1.1754944e-38, %v620
    %v622 = vsel %vm619, %v621, %v617
    %v623 = vmul.f32 1.0, %v622
    %v624 = vadd.f32 %v582, %v305
    %v625 = vmul.f32 %v603, %v624
    %v626 = vadd.f32 %v475, %v625
    %v627 = vtanh.pop %v626
    %v628 = vsub.f32 1.0, %v623
    %v629 = vmul.f32 %v628, %v627
    %v630 = vmul.f32 %v623, %v468
    %v631 = vadd.f32 %v629, %v630
    %s632 = scalar_lea.vmem [#allocation3], 8
    %633 = vst [vmem:[%s632] sm:$0xff] %v631
    %s634 = smul.u32 2, 3
    %s635 = smul.addr %s634, 8
    %s636 = scalar_lea.vmem [#allocation2], %s635
    %v637 = vld [vmem:[%s636] sm:$0xff]
    %v638 = vld [vmem:[%s636 + $0x8] sm:$0xff]
    %v639 = vld [vmem:[%s636 + $0x10] sm:$0xff]
    %v640 = vld [vmem:[#allocation6] sm:$0xff]
    %v641 = vld [vmem:[#allocation6 + $0x8] sm:$0xff]
    %v642 = vld [vmem:[#allocation6 + $0x10] sm:$0xff]
    %v643 = vld [vmem:[#allocation6 + $0x18] sm:$0xff]
    %v644 = vld [vmem:[#allocation6 + $0x20] sm:$0xff]
    %v645 = vld [vmem:[#allocation6 + $0x28] sm:$0xff]
    %v646 = vld [vmem:[#allocation6 + $0x30] sm:$0xff]
    %v647 = vld [vmem:[#allocation6 + $0x38] sm:$0xff]
    %v648 = vld [vmem:[#allocation6 + $0x40] sm:$0xff]
    %v649 = vld [vmem:[#allocation6 + $0x48] sm:$0xff]
    %v650 = vld [vmem:[#allocation6 + $0x50] sm:$0xff]
    %v651 = vld [vmem:[#allocation6 + $0x58] sm:$0xff]
    %v652 = vld [vmem:[#allocation6 + $0x60] sm:$0xff]
    %v653 = vld [vmem:[#allocation6 + $0x68] sm:$0xff]
    %v654 = vld [vmem:[#allocation6 + $0x70] sm:$0xff]
    %v655 = vld [vmem:[#allocation6 + $0x78] sm:$0xff]
    %v656 = vld [vmem:[#allocation6 + $0x80] sm:$0xff]
    %v657 = vld [vmem:[#allocation6 + $0x88] sm:$0xff]
    %v658 = vld [vmem:[#allocation6 + $0x90] sm:$0xff]
    %v659 = vld [vmem:[#allocation6 + $0x98] sm:$0xff]
    %v660 = vld [vmem:[#allocation6 + $0xa0] sm:$0xff]
    %v661 = vld [vmem:[#allocation6 + $0xa8] sm:$0xff]
    %v662 = vld [vmem:[#allocation6 + $0xb0] sm:$0xff]
    %v663 = vld [vmem:[#allocation6 + $0xb8] sm:$0xff]
    %v664 = vld [vmem:[#allocation6 + $0xc0] sm:$0xff]
    %v665 = vld [vmem:[#allocation6 + $0xc8] sm:$0xff]
    %v666 = vld [vmem:[#allocation6 + $0xd0] sm:$0xff]
    %v667 = vld [vmem:[#allocation6 + $0xd8] sm:$0xff]
    %v668 = vld [vmem:[#allocation6 + $0xe0] sm:$0xff]
    %v669 = vld [vmem:[#allocation6 + $0xe8] sm:$0xff]
    %v670 = vld [vmem:[#allocation6 + $0xf0] sm:$0xff]
    %v671 = vld [vmem:[#allocation6 + $0xf8] sm:$0xff]
    %v672 = vld [vmem:[#allocation6 + $0x100] sm:$0xff]
    %v673 = vld [vmem:[#allocation6 + $0x108] sm:$0xff]
    %v674 = vld [vmem:[#allocation6 + $0x110] sm:$0xff]
    %v675 = vld [vmem:[#allocation6 + $0x118] sm:$0xff]
    %v676 = vld [vmem:[#allocation6 + $0x120] sm:$0xff]
    %v677 = vld [vmem:[#allocation6 + $0x128] sm:$0xff]
    %v678 = vld [vmem:[#allocation6 + $0x130] sm:$0xff]
    %v679 = vld [vmem:[#allocation6 + $0x138] sm:$0xff]
    %v680 = vld [vmem:[#allocation6 + $0x140] sm:$0xff]
    %v681 = vld [vmem:[#allocation6 + $0x148] sm:$0xff]
    %v682 = vld [vmem:[#allocation6 + $0x150] sm:$0xff]
    %v683 = vld [vmem:[#allocation6 + $0x158] sm:$0xff]
    %v684 = vld [vmem:[#allocation6 + $0x160] sm:$0xff]
    %v685 = vld [vmem:[#allocation6 + $0x168] sm:$0xff]
    %v686 = vld [vmem:[#allocation6 + $0x170] sm:$0xff]
    %v687 = vld [vmem:[#allocation6 + $0x178] sm:$0xff]
    %688 = vmatpush.msra.mxu0 %v685
    %689 = vmatpush.msra.mxu0 %v682
    %690 = vmatpush.msra.mxu0 %v679
    %691 = vmatpush.msra.mxu0 %v676
    %692 = vmatpush.msra.mxu0 %v673
    %693 = vmatpush.msra.mxu0 %v670
    %694 = vmatpush.msra.mxu0 %v667
    %695 = vmatpush.msra.mxu0 %v664
    %696 = vmatpush.msra.mxu0 %v661
    %697 = vmatpush.msra.mxu0 %v658
    %698 = vmatpush.msra.mxu0 %v655
    %699 = vmatpush.msra.mxu0 %v652
    %700 = vmatpush.msra.mxu0 %v649
    %701 = vmatpush.msra.mxu0 %v646
    %702 = vmatpush.msra.mxu0 %v643
    %703 = vmatpush.msra.mxu0 %v640
    %704 = vmatmul.f32.gmra.mxu0 %v631
    %v705 = vpop.f32.mrf.mxu0
    %v706 = vadd.f32 0.0, %v705
    %707 = vdwg.mxu0
    %708 = vmatpush.msra.mxu0 %v686
    %709 = vmatpush.msra.mxu0 %v683
    %710 = vmatpush.msra.mxu0 %v680
    %711 = vmatpush.msra.mxu0 %v677
    %712 = vmatpush.msra.mxu0 %v674
    %713 = vmatpush.msra.mxu0 %v671
    %714 = vmatpush.msra.mxu0 %v668
    %715 = vmatpush.msra.mxu0 %v665
    %716 = vmatpush.msra.mxu0 %v662
    %717 = vmatpush.msra.mxu0 %v659
    %718 = vmatpush.msra.mxu0 %v656
    %719 = vmatpush.msra.mxu0 %v653
    %720 = vmatpush.msra.mxu0 %v650
    %721 = vmatpush.msra.mxu0 %v647
    %722 = vmatpush.msra.mxu0 %v644
    %723 = vmatpush.msra.mxu0 %v641
    %724 = vmatmul.f32.gmra.mxu0 %v631
    %v725 = vpop.f32.mrf.mxu0
    %v726 = vadd.f32 0.0, %v725
    %727 = vdwg.mxu0
    %728 = vmatpush.msra.mxu0 %v687
    %729 = vmatpush.msra.mxu0 %v684
    %730 = vmatpush.msra.mxu0 %v681
    %731 = vmatpush.msra.mxu0 %v678
    %732 = vmatpush.msra.mxu0 %v675
    %733 = vmatpush.msra.mxu0 %v672
    %734 = vmatpush.msra.mxu0 %v669
    %735 = vmatpush.msra.mxu0 %v666
    %736 = vmatpush.msra.mxu0 %v663
    %737 = vmatpush.msra.mxu0 %v660
    %738 = vmatpush.msra.mxu0 %v657
    %739 = vmatpush.msra.mxu0 %v654
    %740 = vmatpush.msra.mxu0 %v651
    %741 = vmatpush.msra.mxu0 %v648
    %742 = vmatpush.msra.mxu0 %v645
    %743 = vmatpush.msra.mxu0 %v642
    %744 = vmatmul.f32.gmra.mxu0 %v631
    %v745 = vpop.f32.mrf.mxu0
    %v746 = vadd.f32 0.0, %v745
    %747 = vdwg.mxu0
    %v748 = vadd.f32 %v637, %v706
    %v749 = vxor.u32 %v748, 2147483648
    %v750 = vmul.f32 %v749, 1.442695
    %v751 = vpow.pop %v750
    %v752 = vadd.f32 %v751, 1.0
    %v753 = vrcp.pop %v752
    %v754 = vmul.f32 %v752, %v753
    %v755 = vsub.f32 1.0, %v754
    %v756 = vmul.f32 %v753, %v755
    %v757 = vadd.f32 %v753, %v756
    %vm758 = vweird.f32 %v752
    %vm759 = vweird.f32 %v753
    %vm760 = vmor %vm758, %vm759
    %v761 = vsel %vm760, %v753, %v757
    %v762 = vand.u32 2147483647, %v752
    %vm763 = vcmp.eq.f32.partialorder %v762, 8.507059e+37
    %v764 = vand.u32 %v752, 2147483648
    %v765 = vor.u32 1.1754944e-38, %v764
    %v766 = vsel %vm763, %v765, %v761
    %v767 = vmul.f32 1.0, %v766
    %v768 = vadd.f32 %v638, %v726
    %v769 = vxor.u32 %v768, 2147483648
    %v770 = vmul.f32 %v769, 1.442695
    %v771 = vpow.pop %v770
    %v772 = vadd.f32 %v771, 1.0
    %v773 = vrcp.pop %v772
    %v774 = vmul.f32 %v772, %v773
    %v775 = vsub.f32 1.0, %v774
    %v776 = vmul.f32 %v773, %v775
    %v777 = vadd.f32 %v773, %v776
    %vm778 = vweird.f32 %v772
    %vm779 = vweird.f32 %v773
    %vm780 = vmor %vm778, %vm779
    %v781 = vsel %vm780, %v773, %v777
    %v782 = vand.u32 2147483647, %v772
    %vm783 = vcmp.eq.f32.partialorder %v782, 8.507059e+37
    %v784 = vand.u32 %v772, 2147483648
    %v785 = vor.u32 1.1754944e-38, %v784
    %v786 = vsel %vm783, %v785, %v781
    %v787 = vmul.f32 1.0, %v786
    %v788 = vadd.f32 %v746, %v305
    %v789 = vmul.f32 %v767, %v788
    %v790 = vadd.f32 %v639, %v789
    %v791 = vtanh.pop %v790
    %v792 = vsub.f32 1.0, %v787
    %v793 = vmul.f32 %v792, %v791
    %v794 = vmul.f32 %v787, %v631
    %v795 = vadd.f32 %v793, %v794
    %s796 = scalar_lea.vmem [#allocation3], 16
    %797 = vst [vmem:[%s796] sm:$0xff] %v795
    %s798 = smul.u32 3, 3
    %s799 = smul.addr %s798, 8
    %s800 = scalar_lea.vmem [#allocation2], %s799
    %v801 = vld [vmem:[%s800] sm:$0xff]
    %v802 = vld [vmem:[%s800 + $0x8] sm:$0xff]
    %v803 = vld [vmem:[%s800 + $0x10] sm:$0xff]
    %v804 = vld [vmem:[#allocation6] sm:$0xff]
    %v805 = vld [vmem:[#allocation6 + $0x8] sm:$0xff]
    %v806 = vld [vmem:[#allocation6 + $0x10] sm:$0xff]
    %v807 = vld [vmem:[#allocation6 + $0x18] sm:$0xff]
    %v808 = vld [vmem:[#allocation6 + $0x20] sm:$0xff]
    %v809 = vld [vmem:[#allocation6 + $0x28] sm:$0xff]
    %v810 = vld [vmem:[#allocation6 + $0x30] sm:$0xff]
    %v811 = vld [vmem:[#allocation6 + $0x38] sm:$0xff]
    %v812 = vld [vmem:[#allocation6 + $0x40] sm:$0xff]
    %v813 = vld [vmem:[#allocation6 + $0x48] sm:$0xff]
    %v814 = vld [vmem:[#allocation6 + $0x50] sm:$0xff]
    %v815 = vld [vmem:[#allocation6 + $0x58] sm:$0xff]
    %v816 = vld [vmem:[#allocation6 + $0x60] sm:$0xff]
    %v817 = vld [vmem:[#allocation6 + $0x68] sm:$0xff]
    %v818 = vld [vmem:[#allocation6 + $0x70] sm:$0xff]
    %v819 = vld [vmem:[#allocation6 + $0x78] sm:$0xff]
    %v820 = vld [vmem:[#allocation6 + $0x80] sm:$0xff]
    %v821 = vld [vmem:[#allocation6 + $0x88] sm:$0xff]
    %v822 = vld [vmem:[#allocation6 + $0x90] sm:$0xff]
    %v823 = vld [vmem:[#allocation6 + $0x98] sm:$0xff]
    %v824 = vld [vmem:[#allocation6 + $0xa0] sm:$0xff]
    %v825 = vld [vmem:[#allocation6 + $0xa8] sm:$0xff]
    %v826 = vld [vmem:[#allocation6 + $0xb0] sm:$0xff]
    %v827 = vld [vmem:[#allocation6 + $0xb8] sm:$0xff]
    %v828 = vld [vmem:[#allocation6 + $0xc0] sm:$0xff]
    %v829 = vld [vmem:[#allocation6 + $0xc8] sm:$0xff]
    %v830 = vld [vmem:[#allocation6 + $0xd0] sm:$0xff]
    %v831 = vld [vmem:[#allocation6 + $0xd8] sm:$0xff]
    %v832 = vld [vmem:[#allocation6 + $0xe0] sm:$0xff]
    %v833 = vld [vmem:[#allocation6 + $0xe8] sm:$0xff]
    %v834 = vld [vmem:[#allocation6 + $0xf0] sm:$0xff]
    %v835 = vld [vmem:[#allocation6 + $0xf8] sm:$0xff]
    %v836 = vld [vmem:[#allocation6 + $0x100] sm:$0xff]
    %v837 = vld [vmem:[#allocation6 + $0x108] sm:$0xff]
    %v838 = vld [vmem:[#allocation6 + $0x110] sm:$0xff]
    %v839 = vld [vmem:[#allocation6 + $0x118] sm:$0xff]
    %v840 = vld [vmem:[#allocation6 + $0x120] sm:$0xff]
    %v841 = vld [vmem:[#allocation6 + $0x128] sm:$0xff]
    %v842 = vld [vmem:[#allocation6 + $0x130] sm:$0xff]
    %v843 = vld [vmem:[#allocation6 + $0x138] sm:$0xff]
    %v844 = vld [vmem:[#allocation6 + $0x140] sm:$0xff]
    %v845 = vld [vmem:[#allocation6 + $0x148] sm:$0xff]
    %v846 = vld [vmem:[#allocation6 + $0x150] sm:$0xff]
    %v847 = vld [vmem:[#allocation6 + $0x158] sm:$0xff]
    %v848 = vld [vmem:[#allocation6 + $0x160] sm:$0xff]
    %v849 = vld [vmem:[#allocation6 + $0x168] sm:$0xff]
    %v850 = vld [vmem:[#allocation6 + $0x170] sm:$0xff]
    %v851 = vld [vmem:[#allocation6 + $0x178] sm:$0xff]
    %852 = vmatpush.msra.mxu0 %v849
    %853 = vmatpush.msra.mxu0 %v846
    %854 = vmatpush.msra.mxu0 %v843
    %855 = vmatpush.msra.mxu0 %v840
    %856 = vmatpush.msra.mxu0 %v837
    %857 = vmatpush.msra.mxu0 %v834
    %858 = vmatpush.msra.mxu0 %v831
    %859 = vmatpush.msra.mxu0 %v828
    %860 = vmatpush.msra.mxu0 %v825
    %861 = vmatpush.msra.mxu0 %v822
    %862 = vmatpush.msra.mxu0 %v819
    %863 = vmatpush.msra.mxu0 %v816
    %864 = vmatpush.msra.mxu0 %v813
    %865 = vmatpush.msra.mxu0 %v810
    %866 = vmatpush.msra.mxu0 %v807
    %867 = vmatpush.msra.mxu0 %v804
    %868 = vmatmul.f32.gmra.mxu0 %v795
    %v869 = vpop.f32.mrf.mxu0
    %v870 = vadd.f32 0.0, %v869
    %871 = vdwg.mxu0
    %872 = vmatpush.msra.mxu0 %v850
    %873 = vmatpush.msra.mxu0 %v847
    %874 = vmatpush.msra.mxu0 %v844
    %875 = vmatpush.msra.mxu0 %v841
    %876 = vmatpush.msra.mxu0 %v838
    %877 = vmatpush.msra.mxu0 %v835
    %878 = vmatpush.msra.mxu0 %v832
    %879 = vmatpush.msra.mxu0 %v829
    %880 = vmatpush.msra.mxu0 %v826
    %881 = vmatpush.msra.mxu0 %v823
    %882 = vmatpush.msra.mxu0 %v820
    %883 = vmatpush.msra.mxu0 %v817
    %884 = vmatpush.msra.mxu0 %v814
    %885 = vmatpush.msra.mxu0 %v811
    %886 = vmatpush.msra.mxu0 %v808
    %887 = vmatpush.msra.mxu0 %v805
    %888 = vmatmul.f32.gmra.mxu0 %v795
    %v889 = vpop.f32.mrf.mxu0
    %v890 = vadd.f32 0.0, %v889
    %891 = vdwg.mxu0
    %892 = vmatpush.msra.mxu0 %v851
    %893 = vmatpush.msra.mxu0 %v848
    %894 = vmatpush.msra.mxu0 %v845
    %895 = vmatpush.msra.mxu0 %v842
    %896 = vmatpush.msra.mxu0 %v839
    %897 = vmatpush.msra.mxu0 %v836
    %898 = vmatpush.msra.mxu0 %v833
    %899 = vmatpush.msra.mxu0 %v830
    %900 = vmatpush.msra.mxu0 %v827
    %901 = vmatpush.msra.mxu0 %v824
    %902 = vmatpush.msra.mxu0 %v821
    %903 = vmatpush.msra.mxu0 %v818
    %904 = vmatpush.msra.mxu0 %v815
    %905 = vmatpush.msra.mxu0 %v812
    %906 = vmatpush.msra.mxu0 %v809
    %907 = vmatpush.msra.mxu0 %v806
    %908 = vmatmul.f32.gmra.mxu0 %v795
    %v909 = vpop.f32.mrf.mxu0
    %v910 = vadd.f32 0.0, %v909
    %911 = vdwg.mxu0
    %v912 = vadd.f32 %v801, %v870
    %v913 = vxor.u32 %v912, 2147483648
    %v914 = vmul.f32 %v913, 1.442695
    %v915 = vpow.pop %v914
    %v916 = vadd.f32 %v915, 1.0
    %v917 = vrcp.pop %v916
    %v918 = vmul.f32 %v916, %v917
    %v919 = vsub.f32 1.0, %v918
    %v920 = vmul.f32 %v917, %v919
    %v921 = vadd.f32 %v917, %v920
    %vm922 = vweird.f32 %v916
    %vm923 = vweird.f32 %v917
    %vm924 = vmor %vm922, %vm923
    %v925 = vsel %vm924, %v917, %v921
    %v926 = vand.u32 2147483647, %v916
    %vm927 = vcmp.eq.f32.partialorder %v926, 8.507059e+37
    %v928 = vand.u32 %v916, 2147483648
    %v929 = vor.u32 1.1754944e-38, %v928
    %v930 = vsel %vm927, %v929, %v925
    %v931 = vmul.f32 1.0, %v930
    %v932 = vadd.f32 %v802, %v890
    %v933 = vxor.u32 %v932, 2147483648
    %v934 = vmul.f32 %v933, 1.442695
    %v935 = vpow.pop %v934
    %v936 = vadd.f32 %v935, 1.0
    %v937 = vrcp.pop %v936
    %v938 = vmul.f32 %v936, %v937
    %v939 = vsub.f32 1.0, %v938
    %v940 = vmul.f32 %v937, %v939
    %v941 = vadd.f32 %v937, %v940
    %vm942 = vweird.f32 %v936
    %vm943 = vweird.f32 %v937
    %vm944 = vmor %vm942, %vm943
    %v945 = vsel %vm944, %v937, %v941
    %v946 = vand.u32 2147483647, %v936
    %vm947 = vcmp.eq.f32.partialorder %v946, 8.507059e+37
    %v948 = vand.u32 %v936, 2147483648
    %v949 = vor.u32 1.1754944e-38, %v948
    %v950 = vsel %vm947, %v949, %v945
    %v951 = vmul.f32 1.0, %v950
    %v952 = vadd.f32 %v910, %v305
    %v953 = vmul.f32 %v931, %v952
    %v954 = vadd.f32 %v803, %v953
    %v955 = vtanh.pop %v954
    %v956 = vsub.f32 1.0, %v951
    %v957 = vmul.f32 %v956, %v955
    %v958 = vmul.f32 %v951, %v795
    %v959 = vadd.f32 %v957, %v958
    %s960 = scalar_lea.vmem [#allocation3], 24
    %961 = vst [vmem:[%s960] sm:$0xff] %v959
    %s962 = smul.u32 4, 3
    %s963 = smul.addr %s962, 8
    %s964 = scalar_lea.vmem [#allocation2], %s963
    %v965 = vld [vmem:[%s964] sm:$0xff]
    %v966 = vld [vmem:[%s964 + $0x8] sm:$0xff]
    %v967 = vld [vmem:[%s964 + $0x10] sm:$0xff]
    %v968 = vld [vmem:[#allocation6] sm:$0xff]
    %v969 = vld [vmem:[#allocation6 + $0x8] sm:$0xff]
    %v970 = vld [vmem:[#allocation6 + $0x10] sm:$0xff]
    %v971 = vld [vmem:[#allocation6 + $0x18] sm:$0xff]
    %v972 = vld [vmem:[#allocation6 + $0x20] sm:$0xff]
    %v973 = vld [vmem:[#allocation6 + $0x28] sm:$0xff]
    %v974 = vld [vmem:[#allocation6 + $0x30] sm:$0xff]
    %v975 = vld [vmem:[#allocation6 + $0x38] sm:$0xff]
    %v976 = vld [vmem:[#allocation6 + $0x40] sm:$0xff]
    %v977 = vld [vmem:[#allocation6 + $0x48] sm:$0xff]
    %v978 = vld [vmem:[#allocation6 + $0x50] sm:$0xff]
    %v979 = vld [vmem:[#allocation6 + $0x58] sm:$0xff]
    %v980 = vld [vmem:[#allocation6 + $0x60] sm:$0xff]
    %v981 = vld [vmem:[#allocation6 + $0x68] sm:$0xff]
    %v982 = vld [vmem:[#allocation6 + $0x70] sm:$0xff]
    %v983 = vld [vmem:[#allocation6 + $0x78] sm:$0xff]
    %v984 = vld [vmem:[#allocation6 + $0x80] sm:$0xff]
    %v985 = vld [vmem:[#allocation6 + $0x88] sm:$0xff]
    %v986 = vld [vmem:[#allocation6 + $0x90] sm:$0xff]
    %v987 = vld [vmem:[#allocation6 + $0x98] sm:$0xff]
    %v988 = vld [vmem:[#allocation6 + $0xa0] sm:$0xff]
    %v989 = vld [vmem:[#allocation6 + $0xa8] sm:$0xff]
    %v990 = vld [vmem:[#allocation6 + $0xb0] sm:$0xff]
    %v991 = vld [vmem:[#allocation6 + $0xb8] sm:$0xff]
    %v992 = vld [vmem:[#allocation6 + $0xc0] sm:$0xff]
    %v993 = vld [vmem:[#allocation6 + $0xc8] sm:$0xff]
    %v994 = vld [vmem:[#allocation6 + $0xd0] sm:$0xff]
    %v995 = vld [vmem:[#allocation6 + $0xd8] sm:$0xff]
    %v996 = vld [vmem:[#allocation6 + $0xe0] sm:$0xff]
    %v997 = vld [vmem:[#allocation6 + $0xe8] sm:$0xff]
    %v998 = vld [vmem:[#allocation6 + $0xf0] sm:$0xff]
    %v999 = vld [vmem:[#allocation6 + $0xf8] sm:$0xff]
    %v1000 = vld [vmem:[#allocation6 + $0x100] sm:$0xff]
    %v1001 = vld [vmem:[#allocation6 + $0x108] sm:$0xff]
    %v1002 = vld [vmem:[#allocation6 + $0x110] sm:$0xff]
    %v1003 = vld [vmem:[#allocation6 + $0x118] sm:$0xff]
    %v1004 = vld [vmem:[#allocation6 + $0x120] sm:$0xff]
    %v1005 = vld [vmem:[#allocation6 + $0x128] sm:$0xff]
    %v1006 = vld [vmem:[#allocation6 + $0x130] sm:$0xff]
    %v1007 = vld [vmem:[#allocation6 + $0x138] sm:$0xff]
    %v1008 = vld [vmem:[#allocation6 + $0x140] sm:$0xff]
    %v1009 = vld [vmem:[#allocation6 + $0x148] sm:$0xff]
    %v1010 = vld [vmem:[#allocation6 + $0x150] sm:$0xff]
    %v1011 = vld [vmem:[#allocation6 + $0x158] sm:$0xff]
    %v1012 = vld [vmem:[#allocation6 + $0x160] sm:$0xff]
    %v1013 = vld [vmem:[#allocation6 + $0x168] sm:$0xff]
    %v1014 = vld [vmem:[#allocation6 + $0x170] sm:$0xff]
    %v1015 = vld [vmem:[#allocation6 + $0x178] sm:$0xff]
    %1016 = vmatpush.msra.mxu0 %v1013
    %1017 = vmatpush.msra.mxu0 %v1010
    %1018 = vmatpush.msra.mxu0 %v1007
    %1019 = vmatpush.msra.mxu0 %v1004
    %1020 = vmatpush.msra.mxu0 %v1001
    %1021 = vmatpush.msra.mxu0 %v998
    %1022 = vmatpush.msra.mxu0 %v995
    %1023 = vmatpush.msra.mxu0 %v992
    %1024 = vmatpush.msra.mxu0 %v989
    %1025 = vmatpush.msra.mxu0 %v986
    %1026 = vmatpush.msra.mxu0 %v983
    %1027 = vmatpush.msra.mxu0 %v980
    %1028 = vmatpush.msra.mxu0 %v977
    %1029 = vmatpush.msra.mxu0 %v974
    %1030 = vmatpush.msra.mxu0 %v971
    %1031 = vmatpush.msra.mxu0 %v968
    %1032 = vmatmul.f32.gmra.mxu0 %v959
    %v1033 = vpop.f32.mrf.mxu0
    %v1034 = vadd.f32 0.0, %v1033
    %1035 = vdwg.mxu0
    %1036 = vmatpush.msra.mxu0 %v1014
    %1037 = vmatpush.msra.mxu0 %v1011
    %1038 = vmatpush.msra.mxu0 %v1008
    %1039 = vmatpush.msra.mxu0 %v1005
    %1040 = vmatpush.msra.mxu0 %v1002
    %1041 = vmatpush.msra.mxu0 %v999
    %1042 = vmatpush.msra.mxu0 %v996
    %1043 = vmatpush.msra.mxu0 %v993
    %1044 = vmatpush.msra.mxu0 %v990
    %1045 = vmatpush.msra.mxu0 %v987
    %1046 = vmatpush.msra.mxu0 %v984
    %1047 = vmatpush.msra.mxu0 %v981
    %1048 = vmatpush.msra.mxu0 %v978
    %1049 = vmatpush.msra.mxu0 %v975
    %1050 = vmatpush.msra.mxu0 %v972
    %1051 = vmatpush.msra.mxu0 %v969
    %1052 = vmatmul.f32.gmra.mxu0 %v959
    %v1053 = vpop.f32.mrf.mxu0
    %v1054 = vadd.f32 0.0, %v1053
    %1055 = vdwg.mxu0
    %1056 = vmatpush.msra.mxu0 %v1015
    %1057 = vmatpush.msra.mxu0 %v1012
    %1058 = vmatpush.msra.mxu0 %v1009
    %1059 = vmatpush.msra.mxu0 %v1006
    %1060 = vmatpush.msra.mxu0 %v1003
    %1061 = vmatpush.msra.mxu0 %v1000
    %1062 = vmatpush.msra.mxu0 %v997
    %1063 = vmatpush.msra.mxu0 %v994
    %1064 = vmatpush.msra.mxu0 %v991
    %1065 = vmatpush.msra.mxu0 %v988
    %1066 = vmatpush.msra.mxu0 %v985
    %1067 = vmatpush.msra.mxu0 %v982
    %1068 = vmatpush.msra.mxu0 %v979
    %1069 = vmatpush.msra.mxu0 %v976
    %1070 = vmatpush.msra.mxu0 %v973
    %1071 = vmatpush.msra.mxu0 %v970
    %1072 = vmatmul.f32.gmra.mxu0 %v959
    %v1073 = vpop.f32.mrf.mxu0
    %v1074 = vadd.f32 0.0, %v1073
    %1075 = vdwg.mxu0
    %v1076 = vadd.f32 %v965, %v1034
    %v1077 = vxor.u32 %v1076, 2147483648
    %v1078 = vmul.f32 %v1077, 1.442695
    %v1079 = vpow.pop %v1078
    %v1080 = vadd.f32 %v1079, 1.0
    %v1081 = vrcp.pop %v1080
    %v1082 = vmul.f32 %v1080, %v1081
    %v1083 = vsub.f32 1.0, %v1082
    %v1084 = vmul.f32 %v1081, %v1083
    %v1085 = vadd.f32 %v1081, %v1084
    %vm1086 = vweird.f32 %v1080
    %vm1087 = vweird.f32 %v1081
    %vm1088 = vmor %vm1086, %vm1087
    %v1089 = vsel %vm1088, %v1081, %v1085
    %v1090 = vand.u32 2147483647, %v1080
    %vm1091 = vcmp.eq.f32.partialorder %v1090, 8.507059e+37
    %v1092 = vand.u32 %v1080, 2147483648
    %v1093 = vor.u32 1.1754944e-38, %v1092
    %v1094 = vsel %vm1091, %v1093, %v1089
    %v1095 = vmul.f32 1.0, %v1094
    %v1096 = vadd.f32 %v966, %v1054
    %v1097 = vxor.u32 %v1096, 2147483648
    %v1098 = vmul.f32 %v1097, 1.442695
    %v1099 = vpow.pop %v1098
    %v1100 = vadd.f32 %v1099, 1.0
    %v1101 = vrcp.pop %v1100
    %v1102 = vmul.f32 %v1100, %v1101
    %v1103 = vsub.f32 1.0, %v1102
    %v1104 = vmul.f32 %v1101, %v1103
    %v1105 = vadd.f32 %v1101, %v1104
    %vm1106 = vweird.f32 %v1100
    %vm1107 = vweird.f32 %v1101
    %vm1108 = vmor %vm1106, %vm1107
    %v1109 = vsel %vm1108, %v1101, %v1105
    %v1110 = vand.u32 2147483647, %v1100
    %vm1111 = vcmp.eq.f32.partialorder %v1110, 8.507059e+37
    %v1112 = vand.u32 %v1100, 2147483648
    %v1113 = vor.u32 1.1754944e-38, %v1112
    %v1114 = vsel %vm1111, %v1113, %v1109
    %v1115 = vmul.f32 1.0, %v1114
    %v1116 = vadd.f32 %v1074, %v305
    %v1117 = vmul.f32 %v1095, %v1116
    %v1118 = vadd.f32 %v967, %v1117
    %v1119 = vtanh.pop %v1118
    %v1120 = vsub.f32 1.0, %v1115
    %v1121 = vmul.f32 %v1120, %v1119
    %v1122 = vmul.f32 %v1115, %v959
    %v1123 = vadd.f32 %v1121, %v1122
    %s1124 = scalar_lea.vmem [#allocation3], 32
    %1125 = vst [vmem:[%s1124] sm:$0xff] %v1123
    %s1126 = smul.u32 5, 3
    %s1127 = smul.addr %s1126, 8
    %s1128 = scalar_lea.vmem [#allocation2], %s1127
    %v1129 = vld [vmem:[%s1128] sm:$0xff]
    %v1130 = vld [vmem:[%s1128 + $0x8] sm:$0xff]
    %v1131 = vld [vmem:[%s1128 + $0x10] sm:$0xff]
    %v1132 = vld [vmem:[#allocation6] sm:$0xff]
    %v1133 = vld [vmem:[#allocation6 + $0x8] sm:$0xff]
    %v1134 = vld [vmem:[#allocation6 + $0x10] sm:$0xff]
    %v1135 = vld [vmem:[#allocation6 + $0x18] sm:$0xff]
    %v1136 = vld [vmem:[#allocation6 + $0x20] sm:$0xff]
    %v1137 = vld [vmem:[#allocation6 + $0x28] sm:$0xff]
    %v1138 = vld [vmem:[#allocation6 + $0x30] sm:$0xff]
    %v1139 = vld [vmem:[#allocation6 + $0x38] sm:$0xff]
    %v1140 = vld [vmem:[#allocation6 + $0x40] sm:$0xff]
    %v1141 = vld [vmem:[#allocation6 + $0x48] sm:$0xff]
    %v1142 = vld [vmem:[#allocation6 + $0x50] sm:$0xff]
    %v1143 = vld [vmem:[#allocation6 + $0x58] sm:$0xff]
    %v1144 = vld [vmem:[#allocation6 + $0x60] sm:$0xff]
    %v1145 = vld [vmem:[#allocation6 + $0x68] sm:$0xff]
    %v1146 = vld [vmem:[#allocation6 + $0x70] sm:$0xff]
    %v1147 = vld [vmem:[#allocation6 + $0x78] sm:$0xff]
    %v1148 = vld [vmem:[#allocation6 + $0x80] sm:$0xff]
    %v1149 = vld [vmem:[#allocation6 + $0x88] sm:$0xff]
    %v1150 = vld [vmem:[#allocation6 + $0x90] sm:$0xff]
    %v1151 = vld [vmem:[#allocation6 + $0x98] sm:$0xff]
    %v1152 = vld [vmem:[#allocation6 + $0xa0] sm:$0xff]
    %v1153 = vld [vmem:[#allocation6 + $0xa8] sm:$0xff]
    %v1154 = vld [vmem:[#allocation6 + $0xb0] sm:$0xff]
    %v1155 = vld [vmem:[#allocation6 + $0xb8] sm:$0xff]
    %v1156 = vld [vmem:[#allocation6 + $0xc0] sm:$0xff]
    %v1157 = vld [vmem:[#allocation6 + $0xc8] sm:$0xff]
    %v1158 = vld [vmem:[#allocation6 + $0xd0] sm:$0xff]
    %v1159 = vld [vmem:[#allocation6 + $0xd8] sm:$0xff]
    %v1160 = vld [vmem:[#allocation6 + $0xe0] sm:$0xff]
    %v1161 = vld [vmem:[#allocation6 + $0xe8] sm:$0xff]
    %v1162 = vld [vmem:[#allocation6 + $0xf0] sm:$0xff]
    %v1163 = vld [vmem:[#allocation6 + $0xf8] sm:$0xff]
    %v1164 = vld [vmem:[#allocation6 + $0x100] sm:$0xff]
    %v1165 = vld [vmem:[#allocation6 + $0x108] sm:$0xff]
    %v1166 = vld [vmem:[#allocation6 + $0x110] sm:$0xff]
    %v1167 = vld [vmem:[#allocation6 + $0x118] sm:$0xff]
    %v1168 = vld [vmem:[#allocation6 + $0x120] sm:$0xff]
    %v1169 = vld [vmem:[#allocation6 + $0x128] sm:$0xff]
    %v1170 = vld [vmem:[#allocation6 + $0x130] sm:$0xff]
    %v1171 = vld [vmem:[#allocation6 + $0x138] sm:$0xff]
    %v1172 = vld [vmem:[#allocation6 + $0x140] sm:$0xff]
    %v1173 = vld [vmem:[#allocation6 + $0x148] sm:$0xff]
    %v1174 = vld [vmem:[#allocation6 + $0x150] sm:$0xff]
    %v1175 = vld [vmem:[#allocation6 + $0x158] sm:$0xff]
    %v1176 = vld [vmem:[#allocation6 + $0x160] sm:$0xff]
    %v1177 = vld [vmem:[#allocation6 + $0x168] sm:$0xff]
    %v1178 = vld [vmem:[#allocation6 + $0x170] sm:$0xff]
    %v1179 = vld [vmem:[#allocation6 + $0x178] sm:$0xff]
    %1180 = vmatpush.msra.mxu0 %v1177
    %1181 = vmatpush.msra.mxu0 %v1174
    %1182 = vmatpush.msra.mxu0 %v1171
    %1183 = vmatpush.msra.mxu0 %v1168
    %1184 = vmatpush.msra.mxu0 %v1165
    %1185 = vmatpush.msra.mxu0 %v1162
    %1186 = vmatpush.msra.mxu0 %v1159
    %1187 = vmatpush.msra.mxu0 %v1156
    %1188 = vmatpush.msra.mxu0 %v1153
    %1189 = vmatpush.msra.mxu0 %v1150
    %1190 = vmatpush.msra.mxu0 %v1147
    %1191 = vmatpush.msra.mxu0 %v1144
    %1192 = vmatpush.msra.mxu0 %v1141
    %1193 = vmatpush.msra.mxu0 %v1138
    %1194 = vmatpush.msra.mxu0 %v1135
    %1195 = vmatpush.msra.mxu0 %v1132
    %1196 = vmatmul.f32.gmra.mxu0 %v1123
    %v1197 = vpop.f32.mrf.mxu0
    %v1198 = vadd.f32 0.0, %v1197
    %1199 = vdwg.mxu0
    %1200 = vmatpush.msra.mxu0 %v1178
    %1201 = vmatpush.msra.mxu0 %v1175
    %1202 = vmatpush.msra.mxu0 %v1172
    %1203 = vmatpush.msra.mxu0 %v1169
    %1204 = vmatpush.msra.mxu0 %v1166
    %1205 = vmatpush.msra.mxu0 %v1163
    %1206 = vmatpush.msra.mxu0 %v1160
    %1207 = vmatpush.msra.mxu0 %v1157
    %1208 = vmatpush.msra.mxu0 %v1154
    %1209 = vmatpush.msra.mxu0 %v1151
    %1210 = vmatpush.msra.mxu0 %v1148
    %1211 = vmatpush.msra.mxu0 %v1145
    %1212 = vmatpush.msra.mxu0 %v1142
    %1213 = vmatpush.msra.mxu0 %v1139
    %1214 = vmatpush.msra.mxu0 %v1136
    %1215 = vmatpush.msra.mxu0 %v1133
    %1216 = vmatmul.f32.gmra.mxu0 %v1123
    %v1217 = vpop.f32.mrf.mxu0
    %v1218 = vadd.f32 0.0, %v1217
    %1219 = vdwg.mxu0
    %1220 = vmatpush.msra.mxu0 %v1179
    %1221 = vmatpush.msra.mxu0 %v1176
    %1222 = vmatpush.msra.mxu0 %v1173
    %1223 = vmatpush.msra.mxu0 %v1170
    %1224 = vmatpush.msra.mxu0 %v1167
    %1225 = vmatpush.msra.mxu0 %v1164
    %1226 = vmatpush.msra.mxu0 %v1161
    %1227 = vmatpush.msra.mxu0 %v1158
    %1228 = vmatpush.msra.mxu0 %v1155
    %1229 = vmatpush.msra.mxu0 %v1152
    %1230 = vmatpush.msra.mxu0 %v1149
    %1231 = vmatpush.msra.mxu0 %v1146
    %1232 = vmatpush.msra.mxu0 %v1143
    %1233 = vmatpush.msra.mxu0 %v1140
    %1234 = vmatpush.msra.mxu0 %v1137
    %1235 = vmatpush.msra.mxu0 %v1134
    %1236 = vmatmul.f32.gmra.mxu0 %v1123
    %v1237 = vpop.f32.mrf.mxu0
    %v1238 = vadd.f32 0.0, %v1237
    %1239 = vdwg.mxu0
    %v1240 = vadd.f32 %v1129, %v1198
    %v1241 = vxor.u32 %v1240, 2147483648
    %v1242 = vmul.f32 %v1241, 1.442695
    %v1243 = vpow.pop %v1242
    %v1244 = vadd.f32 %v1243, 1.0
    %v1245 = vrcp.pop %v1244
    %v1246 = vmul.f32 %v1244, %v1245
    %v1247 = vsub.f32 1.0, %v1246
    %v1248 = vmul.f32 %v1245, %v1247
    %v1249 = vadd.f32 %v1245, %v1248
    %vm1250 = vweird.f32 %v1244
    %vm1251 = vweird.f32 %v1245
    %vm1252 = vmor %vm1250, %vm1251
    %v1253 = vsel %vm1252, %v1245, %v1249
    %v1254 = vand.u32 2147483647, %v1244
    %vm1255 = vcmp.eq.f32.partialorder %v1254, 8.507059e+37
    %v1256 = vand.u32 %v1244, 2147483648
    %v1257 = vor.u32 1.1754944e-38, %v1256
    %v1258 = vsel %vm1255, %v1257, %v1253
    %v1259 = vmul.f32 1.0, %v1258
    %v1260 = vadd.f32 %v1130, %v1218
    %v1261 = vxor.u32 %v1260, 2147483648
    %v1262 = vmul.f32 %v1261, 1.442695
    %v1263 = vpow.pop %v1262
    %v1264 = vadd.f32 %v1263, 1.0
    %v1265 = vrcp.pop %v1264
    %v1266 = vmul.f32 %v1264, %v1265
    %v1267 = vsub.f32 1.0, %v1266
    %v1268 = vmul.f32 %v1265, %v1267
    %v1269 = vadd.f32 %v1265, %v1268
    %vm1270 = vweird.f32 %v1264
    %vm1271 = vweird.f32 %v1265
    %vm1272 = vmor %vm1270, %vm1271
    %v1273 = vsel %vm1272, %v1265, %v1269
    %v1274 = vand.u32 2147483647, %v1264
    %vm1275 = vcmp.eq.f32.partialorder %v1274, 8.507059e+37
    %v1276 = vand.u32 %v1264, 2147483648
    %v1277 = vor.u32 1.1754944e-38, %v1276
    %v1278 = vsel %vm1275, %v1277, %v1273
    %v1279 = vmul.f32 1.0, %v1278
    %v1280 = vadd.f32 %v1238, %v305
    %v1281 = vmul.f32 %v1259, %v1280
    %v1282 = vadd.f32 %v1131, %v1281
    %v1283 = vtanh.pop %v1282
    %v1284 = vsub.f32 1.0, %v1279
    %v1285 = vmul.f32 %v1284, %v1283
    %v1286 = vmul.f32 %v1279, %v1123
    %v1287 = vadd.f32 %v1285, %v1286
    %s1288 = scalar_lea.vmem [#allocation3], 40
    %1289 = vst [vmem:[%s1288] sm:$0xff] %v1287
    %s1290 = smul.u32 6, 3
    %s1291 = smul.addr %s1290, 8
    %s1292 = scalar_lea.vmem [#allocation2], %s1291
    %v1293 = vld [vmem:[%s1292] sm:$0xff]
    %v1294 = vld [vmem:[%s1292 + $0x8] sm:$0xff]
    %v1295 = vld [vmem:[%s1292 + $0x10] sm:$0xff]
    %v1296 = vld [vmem:[#allocation6] sm:$0xff]
    %v1297 = vld [vmem:[#allocation6 + $0x8] sm:$0xff]
    %v1298 = vld [vmem:[#allocation6 + $0x10] sm:$0xff]
    %v1299 = vld [vmem:[#allocation6 + $0x18] sm:$0xff]
    %v1300 = vld [vmem:[#allocation6 + $0x20] sm:$0xff]
    %v1301 = vld [vmem:[#allocation6 + $0x28] sm:$0xff]
    %v1302 = vld [vmem:[#allocation6 + $0x30] sm:$0xff]
    %v1303 = vld [vmem:[#allocation6 + $0x38] sm:$0xff]
    %v1304 = vld [vmem:[#allocation6 + $0x40] sm:$0xff]
    %v1305 = vld [vmem:[#allocation6 + $0x48] sm:$0xff]
    %v1306 = vld [vmem:[#allocation6 + $0x50] sm:$0xff]
    %v1307 = vld [vmem:[#allocation6 + $0x58] sm:$0xff]
    %v1308 = vld [vmem:[#allocation6 + $0x60] sm:$0xff]
    %v1309 = vld [vmem:[#allocation6 + $0x68] sm:$0xff]
    %v1310 = vld [vmem:[#allocation6 + $0x70] sm:$0xff]
    %v1311 = vld [vmem:[#allocation6 + $0x78] sm:$0xff]
    %v1312 = vld [vmem:[#allocation6 + $0x80] sm:$0xff]
    %v1313 = vld [vmem:[#allocation6 + $0x88] sm:$0xff]
    %v1314 = vld [vmem:[#allocation6 + $0x90] sm:$0xff]
    %v1315 = vld [vmem:[#allocation6 + $0x98] sm:$0xff]
    %v1316 = vld [vmem:[#allocation6 + $0xa0] sm:$0xff]
    %v1317 = vld [vmem:[#allocation6 + $0xa8] sm:$0xff]
    %v1318 = vld [vmem:[#allocation6 + $0xb0] sm:$0xff]
    %v1319 = vld [vmem:[#allocation6 + $0xb8] sm:$0xff]
    %v1320 = vld [vmem:[#allocation6 + $0xc0] sm:$0xff]
    %v1321 = vld [vmem:[#allocation6 + $0xc8] sm:$0xff]
    %v1322 = vld [vmem:[#allocation6 + $0xd0] sm:$0xff]
    %v1323 = vld [vmem:[#allocation6 + $0xd8] sm:$0xff]
    %v1324 = vld [vmem:[#allocation6 + $0xe0] sm:$0xff]
    %v1325 = vld [vmem:[#allocation6 + $0xe8] sm:$0xff]
    %v1326 = vld [vmem:[#allocation6 + $0xf0] sm:$0xff]
    %v1327 = vld [vmem:[#allocation6 + $0xf8] sm:$0xff]
    %v1328 = vld [vmem:[#allocation6 + $0x100] sm:$0xff]
    %v1329 = vld [vmem:[#allocation6 + $0x108] sm:$0xff]
    %v1330 = vld [vmem:[#allocation6 + $0x110] sm:$0xff]
    %v1331 = vld [vmem:[#allocation6 + $0x118] sm:$0xff]
    %v1332 = vld [vmem:[#allocation6 + $0x120] sm:$0xff]
    %v1333 = vld [vmem:[#allocation6 + $0x128] sm:$0xff]
    %v1334 = vld [vmem:[#allocation6 + $0x130] sm:$0xff]
    %v1335 = vld [vmem:[#allocation6 + $0x138] sm:$0xff]
    %v1336 = vld [vmem:[#allocation6 + $0x140] sm:$0xff]
    %v1337 = vld [vmem:[#allocation6 + $0x148] sm:$0xff]
    %v1338 = vld [vmem:[#allocation6 + $0x150] sm:$0xff]
    %v1339 = vld [vmem:[#allocation6 + $0x158] sm:$0xff]
    %v1340 = vld [vmem:[#allocation6 + $0x160] sm:$0xff]
    %v1341 = vld [vmem:[#allocation6 + $0x168] sm:$0xff]
    %v1342 = vld [vmem:[#allocation6 + $0x170] sm:$0xff]
    %v1343 = vld [vmem:[#allocation6 + $0x178] sm:$0xff]
    %1344 = vmatpush.msra.mxu0 %v1341
    %1345 = vmatpush.msra.mxu0 %v1338
    %1346 = vmatpush.msra.mxu0 %v1335
    %1347 = vmatpush.msra.mxu0 %v1332
    %1348 = vmatpush.msra.mxu0 %v1329
    %1349 = vmatpush.msra.mxu0 %v1326
    %1350 = vmatpush.msra.mxu0 %v1323
    %1351 = vmatpush.msra.mxu0 %v1320
    %1352 = vmatpush.msra.mxu0 %v1317
    %1353 = vmatpush.msra.mxu0 %v1314
    %1354 = vmatpush.msra.mxu0 %v1311
    %1355 = vmatpush.msra.mxu0 %v1308
    %1356 = vmatpush.msra.mxu0 %v1305
    %1357 = vmatpush.msra.mxu0 %v1302
    %1358 = vmatpush.msra.mxu0 %v1299
    %1359 = vmatpush.msra.mxu0 %v1296
    %1360 = vmatmul.f32.gmra.mxu0 %v1287
    %v1361 = vpop.f32.mrf.mxu0
    %v1362 = vadd.f32 0.0, %v1361
    %1363 = vdwg.mxu0
    %1364 = vmatpush.msra.mxu0 %v1342
    %1365 = vmatpush.msra.mxu0 %v1339
    %1366 = vmatpush.msra.mxu0 %v1336
    %1367 = vmatpush.msra.mxu0 %v1333
    %1368 = vmatpush.msra.mxu0 %v1330
    %1369 = vmatpush.msra.mxu0 %v1327
    %1370 = vmatpush.msra.mxu0 %v1324
    %1371 = vmatpush.msra.mxu0 %v1321
    %1372 = vmatpush.msra.mxu0 %v1318
    %1373 = vmatpush.msra.mxu0 %v1315
    %1374 = vmatpush.msra.mxu0 %v1312
    %1375 = vmatpush.msra.mxu0 %v1309
    %1376 = vmatpush.msra.mxu0 %v1306
    %1377 = vmatpush.msra.mxu0 %v1303
    %1378 = vmatpush.msra.mxu0 %v1300
    %1379 = vmatpush.msra.mxu0 %v1297
    %1380 = vmatmul.f32.gmra.mxu0 %v1287
    %v1381 = vpop.f32.mrf.mxu0
    %v1382 = vadd.f32 0.0, %v1381
    %1383 = vdwg.mxu0
    %1384 = vmatpush.msra.mxu0 %v1343
    %1385 = vmatpush.msra.mxu0 %v1340
    %1386 = vmatpush.msra.mxu0 %v1337
    %1387 = vmatpush.msra.mxu0 %v1334
    %1388 = vmatpush.msra.mxu0 %v1331
    %1389 = vmatpush.msra.mxu0 %v1328
    %1390 = vmatpush.msra.mxu0 %v1325
    %1391 = vmatpush.msra.mxu0 %v1322
    %1392 = vmatpush.msra.mxu0 %v1319
    %1393 = vmatpush.msra.mxu0 %v1316
    %1394 = vmatpush.msra.mxu0 %v1313
    %1395 = vmatpush.msra.mxu0 %v1310
    %1396 = vmatpush.msra.mxu0 %v1307
    %1397 = vmatpush.msra.mxu0 %v1304
    %1398 = vmatpush.msra.mxu0 %v1301
    %1399 = vmatpush.msra.mxu0 %v1298
    %1400 = vmatmul.f32.gmra.mxu0 %v1287
    %v1401 = vpop.f32.mrf.mxu0
    %v1402 = vadd.f32 0.0, %v1401
    %1403 = vdwg.mxu0
    %v1404 = vadd.f32 %v1293, %v1362
    %v1405 = vxor.u32 %v1404, 2147483648
    %v1406 = vmul.f32 %v1405, 1.442695
    %v1407 = vpow.pop %v1406
    %v1408 = vadd.f32 %v1407, 1.0
    %v1409 = vrcp.pop %v1408
    %v1410 = vmul.f32 %v1408, %v1409
    %v1411 = vsub.f32 1.0, %v1410
    %v1412 = vmul.f32 %v1409, %v1411
    %v1413 = vadd.f32 %v1409, %v1412
    %vm1414 = vweird.f32 %v1408
    %vm1415 = vweird.f32 %v1409
    %vm1416 = vmor %vm1414, %vm1415
    %v1417 = vsel %vm1416, %v1409, %v1413
    %v1418 = vand.u32 2147483647, %v1408
    %vm1419 = vcmp.eq.f32.partialorder %v1418, 8.507059e+37
    %v1420 = vand.u32 %v1408, 2147483648
    %v1421 = vor.u32 1.1754944e-38, %v1420
    %v1422 = vsel %vm1419, %v1421, %v1417
    %v1423 = vmul.f32 1.0, %v1422
    %v1424 = vadd.f32 %v1294, %v1382
    %v1425 = vxor.u32 %v1424, 2147483648
    %v1426 = vmul.f32 %v1425, 1.442695
    %v1427 = vpow.pop %v1426
    %v1428 = vadd.f32 %v1427, 1.0
    %v1429 = vrcp.pop %v1428
    %v1430 = vmul.f32 %v1428, %v1429
    %v1431 = vsub.f32 1.0, %v1430
    %v1432 = vmul.f32 %v1429, %v1431
    %v1433 = vadd.f32 %v1429, %v1432
    %vm1434 = vweird.f32 %v1428
    %vm1435 = vweird.f32 %v1429
    %vm1436 = vmor %vm1434, %vm1435
    %v1437 = vsel %vm1436, %v1429, %v1433
    %v1438 = vand.u32 2147483647, %v1428
    %vm1439 = vcmp.eq.f32.partialorder %v1438, 8.507059e+37
    %v1440 = vand.u32 %v1428, 2147483648
    %v1441 = vor.u32 1.1754944e-38, %v1440
    %v1442 = vsel %vm1439, %v1441, %v1437
    %v1443 = vmul.f32 1.0, %v1442
    %v1444 = vadd.f32 %v1402, %v305
    %v1445 = vmul.f32 %v1423, %v1444
    %v1446 = vadd.f32 %v1295, %v1445
    %v1447 = vtanh.pop %v1446
    %v1448 = vsub.f32 1.0, %v1443
    %v1449 = vmul.f32 %v1448, %v1447
    %v1450 = vmul.f32 %v1443, %v1287
    %v1451 = vadd.f32 %v1449, %v1450
    %s1452 = scalar_lea.vmem [#allocation3], 48
    %1453 = vst [vmem:[%s1452] sm:$0xff] %v1451
    %s1454 = smul.u32 7, 3
    %s1455 = smul.addr %s1454, 8
    %s1456 = scalar_lea.vmem [#allocation2], %s1455
    %v1457 = vld [vmem:[%s1456] sm:$0xff]
    %v1458 = vld [vmem:[%s1456 + $0x8] sm:$0xff]
    %v1459 = vld [vmem:[%s1456 + $0x10] sm:$0xff]
    %v1460 = vld [vmem:[#allocation6] sm:$0xff]
    %v1461 = vld [vmem:[#allocation6 + $0x8] sm:$0xff]
    %v1462 = vld [vmem:[#allocation6 + $0x10] sm:$0xff]
    %v1463 = vld [vmem:[#allocation6 + $0x18] sm:$0xff]
    %v1464 = vld [vmem:[#allocation6 + $0x20] sm:$0xff]
    %v1465 = vld [vmem:[#allocation6 + $0x28] sm:$0xff]
    %v1466 = vld [vmem:[#allocation6 + $0x30] sm:$0xff]
    %v1467 = vld [vmem:[#allocation6 + $0x38] sm:$0xff]
    %v1468 = vld [vmem:[#allocation6 + $0x40] sm:$0xff]
    %v1469 = vld [vmem:[#allocation6 + $0x48] sm:$0xff]
    %v1470 = vld [vmem:[#allocation6 + $0x50] sm:$0xff]
    %v1471 = vld [vmem:[#allocation6 + $0x58] sm:$0xff]
    %v1472 = vld [vmem:[#allocation6 + $0x60] sm:$0xff]
    %v1473 = vld [vmem:[#allocation6 + $0x68] sm:$0xff]
    %v1474 = vld [vmem:[#allocation6 + $0x70] sm:$0xff]
    %v1475 = vld [vmem:[#allocation6 + $0x78] sm:$0xff]
    %v1476 = vld [vmem:[#allocation6 + $0x80] sm:$0xff]
    %v1477 = vld [vmem:[#allocation6 + $0x88] sm:$0xff]
    %v1478 = vld [vmem:[#allocation6 + $0x90] sm:$0xff]
    %v1479 = vld [vmem:[#allocation6 + $0x98] sm:$0xff]
    %v1480 = vld [vmem:[#allocation6 + $0xa0] sm:$0xff]
    %v1481 = vld [vmem:[#allocation6 + $0xa8] sm:$0xff]
    %v1482 = vld [vmem:[#allocation6 + $0xb0] sm:$0xff]
    %v1483 = vld [vmem:[#allocation6 + $0xb8] sm:$0xff]
    %v1484 = vld [vmem:[#allocation6 + $0xc0] sm:$0xff]
    %v1485 = vld [vmem:[#allocation6 + $0xc8] sm:$0xff]
    %v1486 = vld [vmem:[#allocation6 + $0xd0] sm:$0xff]
    %v1487 = vld [vmem:[#allocation6 + $0xd8] sm:$0xff]
    %v1488 = vld [vmem:[#allocation6 + $0xe0] sm:$0xff]
    %v1489 = vld [vmem:[#allocation6 + $0xe8] sm:$0xff]
    %v1490 = vld [vmem:[#allocation6 + $0xf0] sm:$0xff]
    %v1491 = vld [vmem:[#allocation6 + $0xf8] sm:$0xff]
    %v1492 = vld [vmem:[#allocation6 + $0x100] sm:$0xff]
    %v1493 = vld [vmem:[#allocation6 + $0x108] sm:$0xff]
    %v1494 = vld [vmem:[#allocation6 + $0x110] sm:$0xff]
    %v1495 = vld [vmem:[#allocation6 + $0x118] sm:$0xff]
    %v1496 = vld [vmem:[#allocation6 + $0x120] sm:$0xff]
    %v1497 = vld [vmem:[#allocation6 + $0x128] sm:$0xff]
    %v1498 = vld [vmem:[#allocation6 + $0x130] sm:$0xff]
    %v1499 = vld [vmem:[#allocation6 + $0x138] sm:$0xff]
    %v1500 = vld [vmem:[#allocation6 + $0x140] sm:$0xff]
    %v1501 = vld [vmem:[#allocation6 + $0x148] sm:$0xff]
    %v1502 = vld [vmem:[#allocation6 + $0x150] sm:$0xff]
    %v1503 = vld [vmem:[#allocation6 + $0x158] sm:$0xff]
    %v1504 = vld [vmem:[#allocation6 + $0x160] sm:$0xff]
    %v1505 = vld [vmem:[#allocation6 + $0x168] sm:$0xff]
    %v1506 = vld [vmem:[#allocation6 + $0x170] sm:$0xff]
    %v1507 = vld [vmem:[#allocation6 + $0x178] sm:$0xff]
    %1508 = vmatpush.msra.mxu0 %v1505
    %1509 = vmatpush.msra.mxu0 %v1502
    %1510 = vmatpush.msra.mxu0 %v1499
    %1511 = vmatpush.msra.mxu0 %v1496
    %1512 = vmatpush.msra.mxu0 %v1493
    %1513 = vmatpush.msra.mxu0 %v1490
    %1514 = vmatpush.msra.mxu0 %v1487
    %1515 = vmatpush.msra.mxu0 %v1484
    %1516 = vmatpush.msra.mxu0 %v1481
    %1517 = vmatpush.msra.mxu0 %v1478
    %1518 = vmatpush.msra.mxu0 %v1475
    %1519 = vmatpush.msra.mxu0 %v1472
    %1520 = vmatpush.msra.mxu0 %v1469
    %1521 = vmatpush.msra.mxu0 %v1466
    %1522 = vmatpush.msra.mxu0 %v1463
    %1523 = vmatpush.msra.mxu0 %v1460
    %1524 = vmatmul.f32.gmra.mxu0 %v1451
    %v1525 = vpop.f32.mrf.mxu0
    %v1526 = vadd.f32 0.0, %v1525
    %1527 = vdwg.mxu0
    %1528 = vmatpush.msra.mxu0 %v1506
    %1529 = vmatpush.msra.mxu0 %v1503
    %1530 = vmatpush.msra.mxu0 %v1500
    %1531 = vmatpush.msra.mxu0 %v1497
    %1532 = vmatpush.msra.mxu0 %v1494
    %1533 = vmatpush.msra.mxu0 %v1491
    %1534 = vmatpush.msra.mxu0 %v1488
    %1535 = vmatpush.msra.mxu0 %v1485
    %1536 = vmatpush.msra.mxu0 %v1482
    %1537 = vmatpush.msra.mxu0 %v1479
    %1538 = vmatpush.msra.mxu0 %v1476
    %1539 = vmatpush.msra.mxu0 %v1473
    %1540 = vmatpush.msra.mxu0 %v1470
    %1541 = vmatpush.msra.mxu0 %v1467
    %1542 = vmatpush.msra.mxu0 %v1464
    %1543 = vmatpush.msra.mxu0 %v1461
    %1544 = vmatmul.f32.gmra.mxu0 %v1451
    %v1545 = vpop.f32.mrf.mxu0
    %v1546 = vadd.f32 0.0, %v1545
    %1547 = vdwg.mxu0
    %1548 = vmatpush.msra.mxu0 %v1507
    %1549 = vmatpush.msra.mxu0 %v1504
    %1550 = vmatpush.msra.mxu0 %v1501
    %1551 = vmatpush.msra.mxu0 %v1498
    %1552 = vmatpush.msra.mxu0 %v1495
    %1553 = vmatpush.msra.mxu0 %v1492
    %1554 = vmatpush.msra.mxu0 %v1489
    %1555 = vmatpush.msra.mxu0 %v1486
    %1556 = vmatpush.msra.mxu0 %v1483
    %1557 = vmatpush.msra.mxu0 %v1480
    %1558 = vmatpush.msra.mxu0 %v1477
    %1559 = vmatpush.msra.mxu0 %v1474
    %1560 = vmatpush.msra.mxu0 %v1471
    %1561 = vmatpush.msra.mxu0 %v1468
    %1562 = vmatpush.msra.mxu0 %v1465
    %1563 = vmatpush.msra.mxu0 %v1462
    %1564 = vmatmul.f32.gmra.mxu0 %v1451
    %v1565 = vpop.f32.mrf.mxu0
    %v1566 = vadd.f32 0.0, %v1565
    %1567 = vdwg.mxu0
    %v1568 = vadd.f32 %v1457, %v1526
    %v1569 = vxor.u32 %v1568, 2147483648
    %v1570 = vmul.f32 %v1569, 1.442695
    %v1571 = vpow.pop %v1570
    %v1572 = vadd.f32 %v1571, 1.0
    %v1573 = vrcp.pop %v1572
    %v1574 = vmul.f32 %v1572, %v1573
    %v1575 = vsub.f32 1.0, %v1574
    %v1576 = vmul.f32 %v1573, %v1575
    %v1577 = vadd.f32 %v1573, %v1576
    %vm1578 = vweird.f32 %v1572
    %vm1579 = vweird.f32 %v1573
    %vm1580 = vmor %vm1578, %vm1579
    %v1581 = vsel %vm1580, %v1573, %v1577
    %v1582 = vand.u32 2147483647, %v1572
    %vm1583 = vcmp.eq.f32.partialorder %v1582, 8.507059e+37
    %v1584 = vand.u32 %v1572, 2147483648
    %v1585 = vor.u32 1.1754944e-38, %v1584
    %v1586 = vsel %vm1583, %v1585, %v1581
    %v1587 = vmul.f32 1.0, %v1586
    %v1588 = vadd.f32 %v1458, %v1546
    %v1589 = vxor.u32 %v1588, 2147483648
    %v1590 = vmul.f32 %v1589, 1.442695
    %v1591 = vpow.pop %v1590
    %v1592 = vadd.f32 %v1591, 1.0
    %v1593 = vrcp.pop %v1592
    %v1594 = vmul.f32 %v1592, %v1593
    %v1595 = vsub.f32 1.0, %v1594
    %v1596 = vmul.f32 %v1593, %v1595
    %v1597 = vadd.f32 %v1593, %v1596
    %vm1598 = vweird.f32 %v1592
    %vm1599 = vweird.f32 %v1593
    %vm1600 = vmor %vm1598, %vm1599
    %v1601 = vsel %vm1600, %v1593, %v1597
    %v1602 = vand.u32 2147483647, %v1592
    %vm1603 = vcmp.eq.f32.partialorder %v1602, 8.507059e+37
    %v1604 = vand.u32 %v1592, 2147483648
    %v1605 = vor.u32 1.1754944e-38, %v1604
    %v1606 = vsel %vm1603, %v1605, %v1601
    %v1607 = vmul.f32 1.0, %v1606
    %v1608 = vadd.f32 %v1566, %v305
    %v1609 = vmul.f32 %v1587, %v1608
    %v1610 = vadd.f32 %v1459, %v1609
    %v1611 = vtanh.pop %v1610
    %v1612 = vsub.f32 1.0, %v1607
    %v1613 = vmul.f32 %v1612, %v1611
    %v1614 = vmul.f32 %v1607, %v1451
    %v1615 = vadd.f32 %v1613, %v1614
    %s1616 = scalar_lea.vmem [#allocation3], 56
    %1617 = vst [vmem:[%s1616] sm:$0xff] %v1615
    %1618 = vst [vmem:[#allocation4] sm:$0xff] %v1615
    %v1619 = vld [vmem:[#allocation3] sm:$0xff]
    %v1620 = vld [vmem:[#allocation3 + $0x8] sm:$0xff]
    %v1621 = vld [vmem:[#allocation3 + $0x10] sm:$0xff]
    %v1622 = vld [vmem:[#allocation3 + $0x18] sm:$0xff]
    %v1623 = vld [vmem:[#allocation3 + $0x20] sm:$0xff]
    %v1624 = vld [vmem:[#allocation3 + $0x28] sm:$0xff]
    %v1625 = vld [vmem:[#allocation3 + $0x30] sm:$0xff]
    %v1626 = vld [vmem:[#allocation3 + $0x38] sm:$0xff]
    %v1627 = vld [vmem:[#allocation9] sm:$0xff]
    %v1628 = vld [vmem:[#allocation9 + $0x8] sm:$0xff]
    %v1629 = vld [vmem:[#allocation9 + $0x10] sm:$0xff]
    %v1630 = vld [vmem:[#allocation9 + $0x18] sm:$0xff]
    %v1631 = vld [vmem:[#allocation9 + $0x20] sm:$0xff]
    %v1632 = vld [vmem:[#allocation9 + $0x28] sm:$0xff]
    %v1633 = vld [vmem:[#allocation9 + $0x30] sm:$0xff]
    %v1634 = vld [vmem:[#allocation9 + $0x38] sm:$0xff]
    %v1635 = vld [vmem:[#allocation9 + $0x40] sm:$0xff]
    %v1636 = vld [vmem:[#allocation9 + $0x48] sm:$0xff]
    %v1637 = vld [vmem:[#allocation9 + $0x50] sm:$0xff]
    %v1638 = vld [vmem:[#allocation9 + $0x58] sm:$0xff]
    %v1639 = vld [vmem:[#allocation9 + $0x60] sm:$0xff]
    %v1640 = vld [vmem:[#allocation9 + $0x68] sm:$0xff]
    %v1641 = vld [vmem:[#allocation9 + $0x70] sm:$0xff]
    %v1642 = vld [vmem:[#allocation9 + $0x78] sm:$0xff]
    %v1643 = vld [vmem:[#allocation9 + $0x80] sm:$0xff]
    %v1644 = vld [vmem:[#allocation9 + $0x88] sm:$0xff]
    %v1645 = vld [vmem:[#allocation9 + $0x90] sm:$0xff]
    %v1646 = vld [vmem:[#allocation9 + $0x98] sm:$0xff]
    %v1647 = vld [vmem:[#allocation9 + $0xa0] sm:$0xff]
    %v1648 = vld [vmem:[#allocation9 + $0xa8] sm:$0xff]
    %v1649 = vld [vmem:[#allocation9 + $0xb0] sm:$0xff]
    %v1650 = vld [vmem:[#allocation9 + $0xb8] sm:$0xff]
    %v1651 = vld [vmem:[#allocation9 + $0xc0] sm:$0xff]
    %v1652 = vld [vmem:[#allocation9 + $0xc8] sm:$0xff]
    %v1653 = vld [vmem:[#allocation9 + $0xd0] sm:$0xff]
    %v1654 = vld [vmem:[#allocation9 + $0xd8] sm:$0xff]
    %v1655 = vld [vmem:[#allocation9 + $0xe0] sm:$0xff]
    %v1656 = vld [vmem:[#allocation9 + $0xe8] sm:$0xff]
    %v1657 = vld [vmem:[#allocation9 + $0xf0] sm:$0xff]
    %v1658 = vld [vmem:[#allocation9 + $0xf8] sm:$0xff]
    %v1659 = vld [vmem:[#allocation9 + $0x100] sm:$0xff]
    %v1660 = vld [vmem:[#allocation9 + $0x108] sm:$0xff]
    %v1661 = vld [vmem:[#allocation9 + $0x110] sm:$0xff]
    %v1662 = vld [vmem:[#allocation9 + $0x118] sm:$0xff]
    %v1663 = vld [vmem:[#allocation9 + $0x120] sm:$0xff]
    %v1664 = vld [vmem:[#allocation9 + $0x128] sm:$0xff]
    %v1665 = vld [vmem:[#allocation9 + $0x130] sm:$0xff]
    %v1666 = vld [vmem:[#allocation9 + $0x138] sm:$0xff]
    %v1667 = vld [vmem:[#allocation9 + $0x140] sm:$0xff]
    %v1668 = vld [vmem:[#allocation9 + $0x148] sm:$0xff]
    %v1669 = vld [vmem:[#allocation9 + $0x150] sm:$0xff]
    %v1670 = vld [vmem:[#allocation9 + $0x158] sm:$0xff]
    %v1671 = vld [vmem:[#allocation9 + $0x160] sm:$0xff]
    %v1672 = vld [vmem:[#allocation9 + $0x168] sm:$0xff]
    %v1673 = vld [vmem:[#allocation9 + $0x170] sm:$0xff]
    %v1674 = vld [vmem:[#allocation9 + $0x178] sm:$0xff]
    %v1675 = vld [vmem:[%s6] sm:$0x7]
    %v1677 = vperm.slane %v1675, 0
    %v1678 = vperm.slane %v1675, 1
    %v1679 = vperm.slane %v1675, 2
    %1683 = vmatpush.msra.mxu0 %v1672
    %1684 = vmatpush.msra.mxu0 %v1669
    %1685 = vmatpush.msra.mxu0 %v1666
    %1686 = vmatpush.msra.mxu0 %v1663
    %1687 = vmatpush.msra.mxu0 %v1660
    %1688 = vmatpush.msra.mxu0 %v1657
    %1689 = vmatpush.msra.mxu0 %v1654
    %1690 = vmatpush.msra.mxu0 %v1651
    %1691 = vmatpush.msra.mxu0 %v1648
    %1692 = vmatpush.msra.mxu0 %v1645
    %1693 = vmatpush.msra.mxu0 %v1642
    %1694 = vmatpush.msra.mxu0 %v1639
    %1695 = vmatpush.msra.mxu0 %v1636
    %1696 = vmatpush.msra.mxu0 %v1633
    %1697 = vmatpush.msra.mxu0 %v1630
    %1698 = vmatpush.msra.mxu0 %v1627
    %1699 = vmatmul.f32.gmra.mxu0 %v1619
    %v1700 = vpop.f32.mrf.mxu0
    %v1701 = vadd.f32 %v1677, %v1700
    %1702 = vmatmul.f32.gmra.mxu0 %v1620
    %v1703 = vpop.f32.mrf.mxu0
    %v1704 = vadd.f32 %v1677, %v1703
    %1705 = vmatmul.f32.gmra.mxu0 %v1621
    %v1706 = vpop.f32.mrf.mxu0
    %v1707 = vadd.f32 %v1677, %v1706
    %1708 = vmatmul.f32.gmra.mxu0 %v1622
    %v1709 = vpop.f32.mrf.mxu0
    %v1710 = vadd.f32 %v1677, %v1709
    %1711 = vmatmul.f32.gmra.mxu0 %v1623
    %v1712 = vpop.f32.mrf.mxu0
    %v1713 = vadd.f32 %v1677, %v1712
    %1714 = vmatmul.f32.gmra.mxu0 %v1624
    %v1715 = vpop.f32.mrf.mxu0
    %v1716 = vadd.f32 %v1677, %v1715
    %1717 = vmatmul.f32.gmra.mxu0 %v1625
    %v1718 = vpop.f32.mrf.mxu0
    %v1719 = vadd.f32 %v1677, %v1718
    %1720 = vmatmul.f32.gmra.mxu0 %v1626
    %v1721 = vpop.f32.mrf.mxu0
    %v1722 = vadd.f32 %v1677, %v1721
    %1723 = vdwg.mxu0
    %1724 = vmatpush.msra.mxu0 %v1673
    %1725 = vmatpush.msra.mxu0 %v1670
    %1726 = vmatpush.msra.mxu0 %v1667
    %1727 = vmatpush.msra.mxu0 %v1664
    %1728 = vmatpush.msra.mxu0 %v1661
    %1729 = vmatpush.msra.mxu0 %v1658
    %1730 = vmatpush.msra.mxu0 %v1655
    %1731 = vmatpush.msra.mxu0 %v1652
    %1732 = vmatpush.msra.mxu0 %v1649
    %1733 = vmatpush.msra.mxu0 %v1646
    %1734 = vmatpush.msra.mxu0 %v1643
    %1735 = vmatpush.msra.mxu0 %v1640
    %1736 = vmatpush.msra.mxu0 %v1637
    %1737 = vmatpush.msra.mxu0 %v1634
    %1738 = vmatpush.msra.mxu0 %v1631
    %1739 = vmatpush.msra.mxu0 %v1628
    %1740 = vmatmul.f32.gmra.mxu0 %v1619
    %v1741 = vpop.f32.mrf.mxu0
    %v1742 = vadd.f32 %v1678, %v1741
    %1743 = vmatmul.f32.gmra.mxu0 %v1620
    %v1744 = vpop.f32.mrf.mxu0
    %v1745 = vadd.f32 %v1678, %v1744
    %1746 = vmatmul.f32.gmra.mxu0 %v1621
    %v1747 = vpop.f32.mrf.mxu0
    %v1748 = vadd.f32 %v1678, %v1747
    %1749 = vmatmul.f32.gmra.mxu0 %v1622
    %v1750 = vpop.f32.mrf.mxu0
    %v1751 = vadd.f32 %v1678, %v1750
    %1752 = vmatmul.f32.gmra.mxu0 %v1623
    %v1753 = vpop.f32.mrf.mxu0
    %v1754 = vadd.f32 %v1678, %v1753
    %1755 = vmatmul.f32.gmra.mxu0 %v1624
    %v1756 = vpop.f32.mrf.mxu0
    %v1757 = vadd.f32 %v1678, %v1756
    %1758 = vmatmul.f32.gmra.mxu0 %v1625
    %v1759 = vpop.f32.mrf.mxu0
    %v1760 = vadd.f32 %v1678, %v1759
    %1761 = vmatmul.f32.gmra.mxu0 %v1626
    %v1762 = vpop.f32.mrf.mxu0
    %v1763 = vadd.f32 %v1678, %v1762
    %1764 = vdwg.mxu0
    %1765 = vmatpush.msra.mxu0 %v1674
    %1766 = vmatpush.msra.mxu0 %v1671
    %1767 = vmatpush.msra.mxu0 %v1668
    %1768 = vmatpush.msra.mxu0 %v1665
    %1769 = vmatpush.msra.mxu0 %v1662
    %1770 = vmatpush.msra.mxu0 %v1659
    %1771 = vmatpush.msra.mxu0 %v1656
    %1772 = vmatpush.msra.mxu0 %v1653
    %1773 = vmatpush.msra.mxu0 %v1650
    %1774 = vmatpush.msra.mxu0 %v1647
    %1775 = vmatpush.msra.mxu0 %v1644
    %1776 = vmatpush.msra.mxu0 %v1641
    %1777 = vmatpush.msra.mxu0 %v1638
    %1778 = vmatpush.msra.mxu0 %v1635
    %1779 = vmatpush.msra.mxu0 %v1632
    %1780 = vmatpush.msra.mxu0 %v1629
    %1781 = vmatmul.f32.gmra.mxu0 %v1619
    %v1782 = vpop.f32.mrf.mxu0
    %v1783 = vadd.f32 %v1679, %v1782
    %1784 = vmatmul.f32.gmra.mxu0 %v1620
    %v1785 = vpop.f32.mrf.mxu0
    %v1786 = vadd.f32 %v1679, %v1785
    %1787 = vmatmul.f32.gmra.mxu0 %v1621
    %v1788 = vpop.f32.mrf.mxu0
    %v1789 = vadd.f32 %v1679, %v1788
    %1790 = vmatmul.f32.gmra.mxu0 %v1622
    %v1791 = vpop.f32.mrf.mxu0
    %v1792 = vadd.f32 %v1679, %v1791
    %1793 = vmatmul.f32.gmra.mxu0 %v1623
    %v1794 = vpop.f32.mrf.mxu0
    %v1795 = vadd.f32 %v1679, %v1794
    %1796 = vmatmul.f32.gmra.mxu0 %v1624
    %v1797 = vpop.f32.mrf.mxu0
    %v1798 = vadd.f32 %v1679, %v1797
    %1799 = vmatmul.f32.gmra.mxu0 %v1625
    %v1800 = vpop.f32.mrf.mxu0
    %v1801 = vadd.f32 %v1679, %v1800
    %1802 = vmatmul.f32.gmra.mxu0 %v1626
    %v1803 = vpop.f32.mrf.mxu0
    %v1804 = vadd.f32 %v1679, %v1803
    %1805 = vdwg.mxu0
    %1806 = vst [vmem:[#allocation2] sm:$0xff] %v1701
    %1807 = vst [vmem:[#allocation2 + $0x8] sm:$0xff] %v1742
    %1808 = vst [vmem:[#allocation2 + $0x10] sm:$0xff] %v1783
    %1809 = vst [vmem:[#allocation2 + $0x18] sm:$0xff] %v1704
    %1810 = vst [vmem:[#allocation2 + $0x20] sm:$0xff] %v1745
    %1811 = vst [vmem:[#allocation2 + $0x28] sm:$0xff] %v1786
    %1812 = vst [vmem:[#allocation2 + $0x30] sm:$0xff] %v1707
    %1813 = vst [vmem:[#allocation2 + $0x38] sm:$0xff] %v1748
    %1814 = vst [vmem:[#allocation2 + $0x40] sm:$0xff] %v1789
    %1815 = vst [vmem:[#allocation2 + $0x48] sm:$0xff] %v1710
    %1816 = vst [vmem:[#allocation2 + $0x50] sm:$0xff] %v1751
    %1817 = vst [vmem:[#allocation2 + $0x58] sm:$0xff] %v1792
    %1818 = vst [vmem:[#allocation2 + $0x60] sm:$0xff] %v1713
    %1819 = vst [vmem:[#allocation2 + $0x68] sm:$0xff] %v1754
    %1820 = vst [vmem:[#allocation2 + $0x70] sm:$0xff] %v1795
    %1821 = vst [vmem:[#allocation2 + $0x78] sm:$0xff] %v1716
    %1822 = vst [vmem:[#allocation2 + $0x80] sm:$0xff] %v1757
    %1823 = vst [vmem:[#allocation2 + $0x88] sm:$0xff] %v1798
    %1824 = vst [vmem:[#allocation2 + $0x90] sm:$0xff] %v1719
    %1825 = vst [vmem:[#allocation2 + $0x98] sm:$0xff] %v1760
    %1826 = vst [vmem:[#allocation2 + $0xa0] sm:$0xff] %v1801
    %1827 = vst [vmem:[#allocation2 + $0xa8] sm:$0xff] %v1722
    %1828 = vst [vmem:[#allocation2 + $0xb0] sm:$0xff] %v1763
    %1829 = vst [vmem:[#allocation2 + $0xb8] sm:$0xff] %v1804
    %v1830 = vld [vmem:[#allocation5] sm:$0xff]
    %v1831 = vld [vmem:[%s8] sm:$0x1]
    %v1833 = vperm.slane %v1831, 0
    %v1835 = vld [vmem:[%s309] sm:$0xff]
    %v1836 = vld [vmem:[%s309 + $0x8] sm:$0xff]
    %v1837 = vld [vmem:[%s309 + $0x10] sm:$0xff]
    %v1838 = vld [vmem:[#allocation11] sm:$0xff]
    %v1839 = vld [vmem:[#allocation11 + $0x8] sm:$0xff]
    %v1840 = vld [vmem:[#allocation11 + $0x10] sm:$0xff]
    %v1841 = vld [vmem:[#allocation11 + $0x18] sm:$0xff]
    %v1842 = vld [vmem:[#allocation11 + $0x20] sm:$0xff]
    %v1843 = vld [vmem:[#allocation11 + $0x28] sm:$0xff]
    %v1844 = vld [vmem:[#allocation11 + $0x30] sm:$0xff]
    %v1845 = vld [vmem:[#allocation11 + $0x38] sm:$0xff]
    %v1846 = vld [vmem:[#allocation11 + $0x40] sm:$0xff]
    %v1847 = vld [vmem:[#allocation11 + $0x48] sm:$0xff]
    %v1848 = vld [vmem:[#allocation11 + $0x50] sm:$0xff]
    %v1849 = vld [vmem:[#allocation11 + $0x58] sm:$0xff]
    %v1850 = vld [vmem:[#allocation11 + $0x60] sm:$0xff]
    %v1851 = vld [vmem:[#allocation11 + $0x68] sm:$0xff]
    %v1852 = vld [vmem:[#allocation11 + $0x70] sm:$0xff]
    %v1853 = vld [vmem:[#allocation11 + $0x78] sm:$0xff]
    %v1854 = vld [vmem:[#allocation11 + $0x80] sm:$0xff]
    %v1855 = vld [vmem:[#allocation11 + $0x88] sm:$0xff]
    %v1856 = vld [vmem:[#allocation11 + $0x90] sm:$0xff]
    %v1857 = vld [vmem:[#allocation11 + $0x98] sm:$0xff]
    %v1858 = vld [vmem:[#allocation11 + $0xa0] sm:$0xff]
    %v1859 = vld [vmem:[#allocation11 + $0xa8] sm:$0xff]
    %v1860 = vld [vmem:[#allocation11 + $0xb0] sm:$0xff]
    %v1861 = vld [vmem:[#allocation11 + $0xb8] sm:$0xff]
    %v1862 = vld [vmem:[#allocation11 + $0xc0] sm:$0xff]
    %v1863 = vld [vmem:[#allocation11 + $0xc8] sm:$0xff]
    %v1864 = vld [vmem:[#allocation11 + $0xd0] sm:$0xff]
    %v1865 = vld [vmem:[#allocation11 + $0xd8] sm:$0xff]
    %v1866 = vld [vmem:[#allocation11 + $0xe0] sm:$0xff]
    %v1867 = vld [vmem:[#allocation11 + $0xe8] sm:$0xff]
    %v1868 = vld [vmem:[#allocation11 + $0xf0] sm:$0xff]
    %v1869 = vld [vmem:[#allocation11 + $0xf8] sm:$0xff]
    %v1870 = vld [vmem:[#allocation11 + $0x100] sm:$0xff]
    %v1871 = vld [vmem:[#allocation11 + $0x108] sm:$0xff]
    %v1872 = vld [vmem:[#allocation11 + $0x110] sm:$0xff]
    %v1873 = vld [vmem:[#allocation11 + $0x118] sm:$0xff]
    %v1874 = vld [vmem:[#allocation11 + $0x120] sm:$0xff]
    %v1875 = vld [vmem:[#allocation11 + $0x128] sm:$0xff]
    %v1876 = vld [vmem:[#allocation11 + $0x130] sm:$0xff]
    %v1877 = vld [vmem:[#allocation11 + $0x138] sm:$0xff]
    %v1878 = vld [vmem:[#allocation11 + $0x140] sm:$0xff]
    %v1879 = vld [vmem:[#allocation11 + $0x148] sm:$0xff]
    %v1880 = vld [vmem:[#allocation11 + $0x150] sm:$0xff]
    %v1881 = vld [vmem:[#allocation11 + $0x158] sm:$0xff]
    %v1882 = vld [vmem:[#allocation11 + $0x160] sm:$0xff]
    %v1883 = vld [vmem:[#allocation11 + $0x168] sm:$0xff]
    %v1884 = vld [vmem:[#allocation11 + $0x170] sm:$0xff]
    %v1885 = vld [vmem:[#allocation11 + $0x178] sm:$0xff]
    %1886 = vmatpush.msra.mxu0 %v1883
    %1887 = vmatpush.msra.mxu0 %v1880
    %1888 = vmatpush.msra.mxu0 %v1877
    %1889 = vmatpush.msra.mxu0 %v1874
    %1890 = vmatpush.msra.mxu0 %v1871
    %1891 = vmatpush.msra.mxu0 %v1868
    %1892 = vmatpush.msra.mxu0 %v1865
    %1893 = vmatpush.msra.mxu0 %v1862
    %1894 = vmatpush.msra.mxu0 %v1859
    %1895 = vmatpush.msra.mxu0 %v1856
    %1896 = vmatpush.msra.mxu0 %v1853
    %1897 = vmatpush.msra.mxu0 %v1850
    %1898 = vmatpush.msra.mxu0 %v1847
    %1899 = vmatpush.msra.mxu0 %v1844
    %1900 = vmatpush.msra.mxu0 %v1841
    %1901 = vmatpush.msra.mxu0 %v1838
    %1902 = vmatmul.f32.gmra.mxu0 %v1830
    %v1903 = vpop.f32.mrf.mxu0
    %v1904 = vadd.f32 0.0, %v1903
    %1905 = vdwg.mxu0
    %1906 = vmatpush.msra.mxu0 %v1884
    %1907 = vmatpush.msra.mxu0 %v1881
    %1908 = vmatpush.msra.mxu0 %v1878
    %1909 = vmatpush.msra.mxu0 %v1875
    %1910 = vmatpush.msra.mxu0 %v1872
    %1911 = vmatpush.msra.mxu0 %v1869
    %1912 = vmatpush.msra.mxu0 %v1866
    %1913 = vmatpush.msra.mxu0 %v1863
    %1914 = vmatpush.msra.mxu0 %v1860
    %1915 = vmatpush.msra.mxu0 %v1857
    %1916 = vmatpush.msra.mxu0 %v1854
    %1917 = vmatpush.msra.mxu0 %v1851
    %1918 = vmatpush.msra.mxu0 %v1848
    %1919 = vmatpush.msra.mxu0 %v1845
    %1920 = vmatpush.msra.mxu0 %v1842
    %1921 = vmatpush.msra.mxu0 %v1839
    %1922 = vmatmul.f32.gmra.mxu0 %v1830
    %v1923 = vpop.f32.mrf.mxu0
    %v1924 = vadd.f32 0.0, %v1923
    %1925 = vdwg.mxu0
    %1926 = vmatpush.msra.mxu0 %v1885
    %1927 = vmatpush.msra.mxu0 %v1882
    %1928 = vmatpush.msra.mxu0 %v1879
    %1929 = vmatpush.msra.mxu0 %v1876
    %1930 = vmatpush.msra.mxu0 %v1873
    %1931 = vmatpush.msra.mxu0 %v1870
    %1932 = vmatpush.msra.mxu0 %v1867
    %1933 = vmatpush.msra.mxu0 %v1864
    %1934 = vmatpush.msra.mxu0 %v1861
    %1935 = vmatpush.msra.mxu0 %v1858
    %1936 = vmatpush.msra.mxu0 %v1855
    %1937 = vmatpush.msra.mxu0 %v1852
    %1938 = vmatpush.msra.mxu0 %v1849
    %1939 = vmatpush.msra.mxu0 %v1846
    %1940 = vmatpush.msra.mxu0 %v1843
    %1941 = vmatpush.msra.mxu0 %v1840
    %1942 = vmatmul.f32.gmra.mxu0 %v1830
    %v1943 = vpop.f32.mrf.mxu0
    %v1944 = vadd.f32 0.0, %v1943
    %1945 = vdwg.mxu0
    %v1946 = vadd.f32 %v1835, %v1904
    %v1947 = vxor.u32 %v1946, 2147483648
    %v1948 = vmul.f32 %v1947, 1.442695
    %v1949 = vpow.pop %v1948
    %v1950 = vadd.f32 %v1949, 1.0
    %v1951 = vrcp.pop %v1950
    %v1952 = vmul.f32 %v1950, %v1951
    %v1953 = vsub.f32 1.0, %v1952
    %v1954 = vmul.f32 %v1951, %v1953
    %v1955 = vadd.f32 %v1951, %v1954
    %vm1956 = vweird.f32 %v1950
    %vm1957 = vweird.f32 %v1951
    %vm1958 = vmor %vm1956, %vm1957
    %v1959 = vsel %vm1958, %v1951, %v1955
    %v1960 = vand.u32 2147483647, %v1950
    %vm1961 = vcmp.eq.f32.partialorder %v1960, 8.507059e+37
    %v1962 = vand.u32 %v1950, 2147483648
    %v1963 = vor.u32 1.1754944e-38, %v1962
    %v1964 = vsel %vm1961, %v1963, %v1959
    %v1965 = vmul.f32 1.0, %v1964
    %v1966 = vadd.f32 %v1836, %v1924
    %v1967 = vxor.u32 %v1966, 2147483648
    %v1968 = vmul.f32 %v1967, 1.442695
    %v1969 = vpow.pop %v1968
    %v1970 = vadd.f32 %v1969, 1.0
    %v1971 = vrcp.pop %v1970
    %v1972 = vmul.f32 %v1970, %v1971
    %v1973 = vsub.f32 1.0, %v1972
    %v1974 = vmul.f32 %v1971, %v1973
    %v1975 = vadd.f32 %v1971, %v1974
    %vm1976 = vweird.f32 %v1970
    %vm1977 = vweird.f32 %v1971
    %vm1978 = vmor %vm1976, %vm1977
    %v1979 = vsel %vm1978, %v1971, %v1975
    %v1980 = vand.u32 2147483647, %v1970
    %vm1981 = vcmp.eq.f32.partialorder %v1980, 8.507059e+37
    %v1982 = vand.u32 %v1970, 2147483648
    %v1983 = vor.u32 1.1754944e-38, %v1982
    %v1984 = vsel %vm1981, %v1983, %v1979
    %v1985 = vmul.f32 1.0, %v1984
    %v1986 = vadd.f32 %v1944, %v1833
    %v1987 = vmul.f32 %v1965, %v1986
    %v1988 = vadd.f32 %v1837, %v1987
    %v1989 = vtanh.pop %v1988
    %v1990 = vsub.f32 1.0, %v1985
    %v1991 = vmul.f32 %v1990, %v1989
    %v1992 = vmul.f32 %v1985, %v1830
    %v1993 = vadd.f32 %v1991, %v1992
    %1994 = vst [vmem:[#allocation3] sm:$0xff] %v1993
    %v1995 = vld [vmem:[%s472] sm:$0xff]
    %v1996 = vld [vmem:[%s472 + $0x8] sm:$0xff]
    %v1997 = vld [vmem:[%s472 + $0x10] sm:$0xff]
    %v1998 = vld [vmem:[#allocation11] sm:$0xff]
    %v1999 = vld [vmem:[#allocation11 + $0x8] sm:$0xff]
    %v2000 = vld [vmem:[#allocation11 + $0x10] sm:$0xff]
    %v2001 = vld [vmem:[#allocation11 + $0x18] sm:$0xff]
    %v2002 = vld [vmem:[#allocation11 + $0x20] sm:$0xff]
    %v2003 = vld [vmem:[#allocation11 + $0x28] sm:$0xff]
    %v2004 = vld [vmem:[#allocation11 + $0x30] sm:$0xff]
    %v2005 = vld [vmem:[#allocation11 + $0x38] sm:$0xff]
    %v2006 = vld [vmem:[#allocation11 + $0x40] sm:$0xff]
    %v2007 = vld [vmem:[#allocation11 + $0x48] sm:$0xff]
    %v2008 = vld [vmem:[#allocation11 + $0x50] sm:$0xff]
    %v2009 = vld [vmem:[#allocation11 + $0x58] sm:$0xff]
    %v2010 = vld [vmem:[#allocation11 + $0x60] sm:$0xff]
    %v2011 = vld [vmem:[#allocation11 + $0x68] sm:$0xff]
    %v2012 = vld [vmem:[#allocation11 + $0x70] sm:$0xff]
    %v2013 = vld [vmem:[#allocation11 + $0x78] sm:$0xff]
    %v2014 = vld [vmem:[#allocation11 + $0x80] sm:$0xff]
    %v2015 = vld [vmem:[#allocation11 + $0x88] sm:$0xff]
    %v2016 = vld [vmem:[#allocation11 + $0x90] sm:$0xff]
    %v2017 = vld [vmem:[#allocation11 + $0x98] sm:$0xff]
    %v2018 = vld [vmem:[#allocation11 + $0xa0] sm:$0xff]
    %v2019 = vld [vmem:[#allocation11 + $0xa8] sm:$0xff]
    %v2020 = vld [vmem:[#allocation11 + $0xb0] sm:$0xff]
    %v2021 = vld [vmem:[#allocation11 + $0xb8] sm:$0xff]
    %v2022 = vld [vmem:[#allocation11 + $0xc0] sm:$0xff]
    %v2023 = vld [vmem:[#allocation11 + $0xc8] sm:$0xff]
    %v2024 = vld [vmem:[#allocation11 + $0xd0] sm:$0xff]
    %v2025 = vld [vmem:[#allocation11 + $0xd8] sm:$0xff]
    %v2026 = vld [vmem:[#allocation11 + $0xe0] sm:$0xff]
    %v2027 = vld [vmem:[#allocation11 + $0xe8] sm:$0xff]
    %v2028 = vld [vmem:[#allocation11 + $0xf0] sm:$0xff]
    %v2029 = vld [vmem:[#allocation11 + $0xf8] sm:$0xff]
    %v2030 = vld [vmem:[#allocation11 + $0x100] sm:$0xff]
    %v2031 = vld [vmem:[#allocation11 + $0x108] sm:$0xff]
    %v2032 = vld [vmem:[#allocation11 + $0x110] sm:$0xff]
    %v2033 = vld [vmem:[#allocation11 + $0x118] sm:$0xff]
    %v2034 = vld [vmem:[#allocation11 + $0x120] sm:$0xff]
    %v2035 = vld [vmem:[#allocation11 + $0x128] sm:$0xff]
    %v2036 = vld [vmem:[#allocation11 + $0x130] sm:$0xff]
    %v2037 = vld [vmem:[#allocation11 + $0x138] sm:$0xff]
    %v2038 = vld [vmem:[#allocation11 + $0x140] sm:$0xff]
    %v2039 = vld [vmem:[#allocation11 + $0x148] sm:$0xff]
    %v2040 = vld [vmem:[#allocation11 + $0x150] sm:$0xff]
    %v2041 = vld [vmem:[#allocation11 + $0x158] sm:$0xff]
    %v2042 = vld [vmem:[#allocation11 + $0x160] sm:$0xff]
    %v2043 = vld [vmem:[#allocation11 + $0x168] sm:$0xff]
    %v2044 = vld [vmem:[#allocation11 + $0x170] sm:$0xff]
    %v2045 = vld [vmem:[#allocation11 + $0x178] sm:$0xff]
    %2046 = vmatpush.msra.mxu0 %v2043
    %2047 = vmatpush.msra.mxu0 %v2040
    %2048 = vmatpush.msra.mxu0 %v2037
    %2049 = vmatpush.msra.mxu0 %v2034
    %2050 = vmatpush.msra.mxu0 %v2031
    %2051 = vmatpush.msra.mxu0 %v2028
    %2052 = vmatpush.msra.mxu0 %v2025
    %2053 = vmatpush.msra.mxu0 %v2022
    %2054 = vmatpush.msra.mxu0 %v2019
    %2055 = vmatpush.msra.mxu0 %v2016
    %2056 = vmatpush.msra.mxu0 %v2013
    %2057 = vmatpush.msra.mxu0 %v2010
    %2058 = vmatpush.msra.mxu0 %v2007
    %2059 = vmatpush.msra.mxu0 %v2004
    %2060 = vmatpush.msra.mxu0 %v2001
    %2061 = vmatpush.msra.mxu0 %v1998
    %2062 = vmatmul.f32.gmra.mxu0 %v1993
    %v2063 = vpop.f32.mrf.mxu0
    %v2064 = vadd.f32 0.0, %v2063
    %2065 = vdwg.mxu0
    %2066 = vmatpush.msra.mxu0 %v2044
    %2067 = vmatpush.msra.mxu0 %v2041
    %2068 = vmatpush.msra.mxu0 %v2038
    %2069 = vmatpush.msra.mxu0 %v2035
    %2070 = vmatpush.msra.mxu0 %v2032
    %2071 = vmatpush.msra.mxu0 %v2029
    %2072 = vmatpush.msra.mxu0 %v2026
    %2073 = vmatpush.msra.mxu0 %v2023
    %2074 = vmatpush.msra.mxu0 %v2020
    %2075 = vmatpush.msra.mxu0 %v2017
    %2076 = vmatpush.msra.mxu0 %v2014
    %2077 = vmatpush.msra.mxu0 %v2011
    %2078 = vmatpush.msra.mxu0 %v2008
    %2079 = vmatpush.msra.mxu0 %v2005
    %2080 = vmatpush.msra.mxu0 %v2002
    %2081 = vmatpush.msra.mxu0 %v1999
    %2082 = vmatmul.f32.gmra.mxu0 %v1993
    %v2083 = vpop.f32.mrf.mxu0
    %v2084 = vadd.f32 0.0, %v2083
    %2085 = vdwg.mxu0
    %2086 = vmatpush.msra.mxu0 %v2045
    %2087 = vmatpush.msra.mxu0 %v2042
    %2088 = vmatpush.msra.mxu0 %v2039
    %2089 = vmatpush.msra.mxu0 %v2036
    %2090 = vmatpush.msra.mxu0 %v2033
    %2091 = vmatpush.msra.mxu0 %v2030
    %2092 = vmatpush.msra.mxu0 %v2027
    %2093 = vmatpush.msra.mxu0 %v2024
    %2094 = vmatpush.msra.mxu0 %v2021
    %2095 = vmatpush.msra.mxu0 %v2018
    %2096 = vmatpush.msra.mxu0 %v2015
    %2097 = vmatpush.msra.mxu0 %v2012
    %2098 = vmatpush.msra.mxu0 %v2009
    %2099 = vmatpush.msra.mxu0 %v2006
    %2100 = vmatpush.msra.mxu0 %v2003
    %2101 = vmatpush.msra.mxu0 %v2000
    %2102 = vmatmul.f32.gmra.mxu0 %v1993
    %v2103 = vpop.f32.mrf.mxu0
    %v2104 = vadd.f32 0.0, %v2103
    %2105 = vdwg.mxu0
    %v2106 = vadd.f32 %v1995, %v2064
    %v2107 = vxor.u32 %v2106, 2147483648
    %v2108 = vmul.f32 %v2107, 1.442695
    %v2109 = vpow.pop %v2108
    %v2110 = vadd.f32 %v2109, 1.0
    %v2111 = vrcp.pop %v2110
    %v2112 = vmul.f32 %v2110, %v2111
    %v2113 = vsub.f32 1.0, %v2112
    %v2114 = vmul.f32 %v2111, %v2113
    %v2115 = vadd.f32 %v2111, %v2114
    %vm2116 = vweird.f32 %v2110
    %vm2117 = vweird.f32 %v2111
    %vm2118 = vmor %vm2116, %vm2117
    %v2119 = vsel %vm2118, %v2111, %v2115
    %v2120 = vand.u32 2147483647, %v2110
    %vm2121 = vcmp.eq.f32.partialorder %v2120, 8.507059e+37
    %v2122 = vand.u32 %v2110, 2147483648
    %v2123 = vor.u32 1.1754944e-38, %v2122
    %v2124 = vsel %vm2121, %v2123, %v2119
    %v2125 = vmul.f32 1.0, %v2124
    %v2126 = vadd.f32 %v1996, %v2084
    %v2127 = vxor.u32 %v2126, 2147483648
    %v2128 = vmul.f32 %v2127, 1.442695
    %v2129 = vpow.pop %v2128
    %v2130 = vadd.f32 %v2129, 1.0
    %v2131 = vrcp.pop %v2130
    %v2132 = vmul.f32 %v2130, %v2131
    %v2133 = vsub.f32 1.0, %v2132
    %v2134 = vmul.f32 %v2131, %v2133
    %v2135 = vadd.f32 %v2131, %v2134
    %vm2136 = vweird.f32 %v2130
    %vm2137 = vweird.f32 %v2131
    %vm2138 = vmor %vm2136, %vm2137
    %v2139 = vsel %vm2138, %v2131, %v2135
    %v2140 = vand.u32 2147483647, %v2130
    %vm2141 = vcmp.eq.f32.partialorder %v2140, 8.507059e+37
    %v2142 = vand.u32 %v2130, 2147483648
    %v2143 = vor.u32 1.1754944e-38, %v2142
    %v2144 = vsel %vm2141, %v2143, %v2139
    %v2145 = vmul.f32 1.0, %v2144
    %v2146 = vadd.f32 %v2104, %v1833
    %v2147 = vmul.f32 %v2125, %v2146
    %v2148 = vadd.f32 %v1997, %v2147
    %v2149 = vtanh.pop %v2148
    %v2150 = vsub.f32 1.0, %v2145
    %v2151 = vmul.f32 %v2150, %v2149
    %v2152 = vmul.f32 %v2145, %v1993
    %v2153 = vadd.f32 %v2151, %v2152
    %2154 = vst [vmem:[%s632] sm:$0xff] %v2153
    %v2155 = vld [vmem:[%s636] sm:$0xff]
    %v2156 = vld [vmem:[%s636 + $0x8] sm:$0xff]
    %v2157 = vld [vmem:[%s636 + $0x10] sm:$0xff]
    %v2158 = vld [vmem:[#allocation11] sm:$0xff]
    %v2159 = vld [vmem:[#allocation11 + $0x8] sm:$0xff]
    %v2160 = vld [vmem:[#allocation11 + $0x10] sm:$0xff]
    %v2161 = vld [vmem:[#allocation11 + $0x18] sm:$0xff]
    %v2162 = vld [vmem:[#allocation11 + $0x20] sm:$0xff]
    %v2163 = vld [vmem:[#allocation11 + $0x28] sm:$0xff]
    %v2164 = vld [vmem:[#allocation11 + $0x30] sm:$0xff]
    %v2165 = vld [vmem:[#allocation11 + $0x38] sm:$0xff]
    %v2166 = vld [vmem:[#allocation11 + $0x40] sm:$0xff]
    %v2167 = vld [vmem:[#allocation11 + $0x48] sm:$0xff]
    %v2168 = vld [vmem:[#allocation11 + $0x50] sm:$0xff]
    %v2169 = vld [vmem:[#allocation11 + $0x58] sm:$0xff]
    %v2170 = vld [vmem:[#allocation11 + $0x60] sm:$0xff]
    %v2171 = vld [vmem:[#allocation11 + $0x68] sm:$0xff]
    %v2172 = vld [vmem:[#allocation11 + $0x70] sm:$0xff]
    %v2173 = vld [vmem:[#allocation11 + $0x78] sm:$0xff]
    %v2174 = vld [vmem:[#allocation11 + $0x80] sm:$0xff]
    %v2175 = vld [vmem:[#allocation11 + $0x88] sm:$0xff]
    %v2176 = vld [vmem:[#allocation11 + $0x90] sm:$0xff]
    %v2177 = vld [vmem:[#allocation11 + $0x98] sm:$0xff]
    %v2178 = vld [vmem:[#allocation11 + $0xa0] sm:$0xff]
    %v2179 = vld [vmem:[#allocation11 + $0xa8] sm:$0xff]
    %v2180 = vld [vmem:[#allocation11 + $0xb0] sm:$0xff]
    %v2181 = vld [vmem:[#allocation11 + $0xb8] sm:$0xff]
    %v2182 = vld [vmem:[#allocation11 + $0xc0] sm:$0xff]
    %v2183 = vld [vmem:[#allocation11 + $0xc8] sm:$0xff]
    %v2184 = vld [vmem:[#allocation11 + $0xd0] sm:$0xff]
    %v2185 = vld [vmem:[#allocation11 + $0xd8] sm:$0xff]
    %v2186 = vld [vmem:[#allocation11 + $0xe0] sm:$0xff]
    %v2187 = vld [vmem:[#allocation11 + $0xe8] sm:$0xff]
    %v2188 = vld [vmem:[#allocation11 + $0xf0] sm:$0xff]
    %v2189 = vld [vmem:[#allocation11 + $0xf8] sm:$0xff]
    %v2190 = vld [vmem:[#allocation11 + $0x100] sm:$0xff]
    %v2191 = vld [vmem:[#allocation11 + $0x108] sm:$0xff]
    %v2192 = vld [vmem:[#allocation11 + $0x110] sm:$0xff]
    %v2193 = vld [vmem:[#allocation11 + $0x118] sm:$0xff]
    %v2194 = vld [vmem:[#allocation11 + $0x120] sm:$0xff]
    %v2195 = vld [vmem:[#allocation11 + $0x128] sm:$0xff]
    %v2196 = vld [vmem:[#allocation11 + $0x130] sm:$0xff]
    %v2197 = vld [vmem:[#allocation11 + $0x138] sm:$0xff]
    %v2198 = vld [vmem:[#allocation11 + $0x140] sm:$0xff]
    %v2199 = vld [vmem:[#allocation11 + $0x148] sm:$0xff]
    %v2200 = vld [vmem:[#allocation11 + $0x150] sm:$0xff]
    %v2201 = vld [vmem:[#allocation11 + $0x158] sm:$0xff]
    %v2202 = vld [vmem:[#allocation11 + $0x160] sm:$0xff]
    %v2203 = vld [vmem:[#allocation11 + $0x168] sm:$0xff]
    %v2204 = vld [vmem:[#allocation11 + $0x170] sm:$0xff]
    %v2205 = vld [vmem:[#allocation11 + $0x178] sm:$0xff]
    %2206 = vmatpush.msra.mxu0 %v2203
    %2207 = vmatpush.msra.mxu0 %v2200
    %2208 = vmatpush.msra.mxu0 %v2197
    %2209 = vmatpush.msra.mxu0 %v2194
    %2210 = vmatpush.msra.mxu0 %v2191
    %2211 = vmatpush.msra.mxu0 %v2188
    %2212 = vmatpush.msra.mxu0 %v2185
    %2213 = vmatpush.msra.mxu0 %v2182
    %2214 = vmatpush.msra.mxu0 %v2179
    %2215 = vmatpush.msra.mxu0 %v2176
    %2216 = vmatpush.msra.mxu0 %v2173
    %2217 = vmatpush.msra.mxu0 %v2170
    %2218 = vmatpush.msra.mxu0 %v2167
    %2219 = vmatpush.msra.mxu0 %v2164
    %2220 = vmatpush.msra.mxu0 %v2161
    %2221 = vmatpush.msra.mxu0 %v2158
    %2222 = vmatmul.f32.gmra.mxu0 %v2153
    %v2223 = vpop.f32.mrf.mxu0
    %v2224 = vadd.f32 0.0, %v2223
    %2225 = vdwg.mxu0
    %2226 = vmatpush.msra.mxu0 %v2204
    %2227 = vmatpush.msra.mxu0 %v2201
    %2228 = vmatpush.msra.mxu0 %v2198
    %2229 = vmatpush.msra.mxu0 %v2195
    %2230 = vmatpush.msra.mxu0 %v2192
    %2231 = vmatpush.msra.mxu0 %v2189
    %2232 = vmatpush.msra.mxu0 %v2186
    %2233 = vmatpush.msra.mxu0 %v2183
    %2234 = vmatpush.msra.mxu0 %v2180
    %2235 = vmatpush.msra.mxu0 %v2177
    %2236 = vmatpush.msra.mxu0 %v2174
    %2237 = vmatpush.msra.mxu0 %v2171
    %2238 = vmatpush.msra.mxu0 %v2168
    %2239 = vmatpush.msra.mxu0 %v2165
    %2240 = vmatpush.msra.mxu0 %v2162
    %2241 = vmatpush.msra.mxu0 %v2159
    %2242 = vmatmul.f32.gmra.mxu0 %v2153
    %v2243 = vpop.f32.mrf.mxu0
    %v2244 = vadd.f32 0.0, %v2243
    %2245 = vdwg.mxu0
    %2246 = vmatpush.msra.mxu0 %v2205
    %2247 = vmatpush.msra.mxu0 %v2202
    %2248 = vmatpush.msra.mxu0 %v2199
    %2249 = vmatpush.msra.mxu0 %v2196
    %2250 = vmatpush.msra.mxu0 %v2193
    %2251 = vmatpush.msra.mxu0 %v2190
    %2252 = vmatpush.msra.mxu0 %v2187
    %2253 = vmatpush.msra.mxu0 %v2184
    %2254 = vmatpush.msra.mxu0 %v2181
    %2255 = vmatpush.msra.mxu0 %v2178
    %2256 = vmatpush.msra.mxu0 %v2175
    %2257 = vmatpush.msra.mxu0 %v2172
    %2258 = vmatpush.msra.mxu0 %v2169
    %2259 = vmatpush.msra.mxu0 %v2166
    %2260 = vmatpush.msra.mxu0 %v2163
    %2261 = vmatpush.msra.mxu0 %v2160
    %2262 = vmatmul.f32.gmra.mxu0 %v2153
    %v2263 = vpop.f32.mrf.mxu0
    %v2264 = vadd.f32 0.0, %v2263
    %2265 = vdwg.mxu0
    %v2266 = vadd.f32 %v2155, %v2224
    %v2267 = vxor.u32 %v2266, 2147483648
    %v2268 = vmul.f32 %v2267, 1.442695
    %v2269 = vpow.pop %v2268
    %v2270 = vadd.f32 %v2269, 1.0
    %v2271 = vrcp.pop %v2270
    %v2272 = vmul.f32 %v2270, %v2271
    %v2273 = vsub.f32 1.0, %v2272
    %v2274 = vmul.f32 %v2271, %v2273
    %v2275 = vadd.f32 %v2271, %v2274
    %vm2276 = vweird.f32 %v2270
    %vm2277 = vweird.f32 %v2271
    %vm2278 = vmor %vm2276, %vm2277
    %v2279 = vsel %vm2278, %v2271, %v2275
    %v2280 = vand.u32 2147483647, %v2270
    %vm2281 = vcmp.eq.f32.partialorder %v2280, 8.507059e+37
    %v2282 = vand.u32 %v2270, 2147483648
    %v2283 = vor.u32 1.1754944e-38, %v2282
    %v2284 = vsel %vm2281, %v2283, %v2279
    %v2285 = vmul.f32 1.0, %v2284
    %v2286 = vadd.f32 %v2156, %v2244
    %v2287 = vxor.u32 %v2286, 2147483648
    %v2288 = vmul.f32 %v2287, 1.442695
    %v2289 = vpow.pop %v2288
    %v2290 = vadd.f32 %v2289, 1.0
    %v2291 = vrcp.pop %v2290
    %v2292 = vmul.f32 %v2290, %v2291
    %v2293 = vsub.f32 1.0, %v2292
    %v2294 = vmul.f32 %v2291, %v2293
    %v2295 = vadd.f32 %v2291, %v2294
    %vm2296 = vweird.f32 %v2290
    %vm2297 = vweird.f32 %v2291
    %vm2298 = vmor %vm2296, %vm2297
    %v2299 = vsel %vm2298, %v2291, %v2295
    %v2300 = vand.u32 2147483647, %v2290
    %vm2301 = vcmp.eq.f32.partialorder %v2300, 8.507059e+37
    %v2302 = vand.u32 %v2290, 2147483648
    %v2303 = vor.u32 1.1754944e-38, %v2302
    %v2304 = vsel %vm2301, %v2303, %v2299
    %v2305 = vmul.f32 1.0, %v2304
    %v2306 = vadd.f32 %v2264, %v1833
    %v2307 = vmul.f32 %v2285, %v2306
    %v2308 = vadd.f32 %v2157, %v2307
    %v2309 = vtanh.pop %v2308
    %v2310 = vsub.f32 1.0, %v2305
    %v2311 = vmul.f32 %v2310, %v2309
    %v2312 = vmul.f32 %v2305, %v2153
    %v2313 = vadd.f32 %v2311, %v2312
    %2314 = vst [vmem:[%s796] sm:$0xff] %v2313
    %v2315 = vld [vmem:[%s800] sm:$0xff]
    %v2316 = vld [vmem:[%s800 + $0x8] sm:$0xff]
    %v2317 = vld [vmem:[%s800 + $0x10] sm:$0xff]
    %v2318 = vld [vmem:[#allocation11] sm:$0xff]
    %v2319 = vld [vmem:[#allocation11 + $0x8] sm:$0xff]
    %v2320 = vld [vmem:[#allocation11 + $0x10] sm:$0xff]
    %v2321 = vld [vmem:[#allocation11 + $0x18] sm:$0xff]
    %v2322 = vld [vmem:[#allocation11 + $0x20] sm:$0xff]
    %v2323 = vld [vmem:[#allocation11 + $0x28] sm:$0xff]
    %v2324 = vld [vmem:[#allocation11 + $0x30] sm:$0xff]
    %v2325 = vld [vmem:[#allocation11 + $0x38] sm:$0xff]
    %v2326 = vld [vmem:[#allocation11 + $0x40] sm:$0xff]
    %v2327 = vld [vmem:[#allocation11 + $0x48] sm:$0xff]
    %v2328 = vld [vmem:[#allocation11 + $0x50] sm:$0xff]
    %v2329 = vld [vmem:[#allocation11 + $0x58] sm:$0xff]
    %v2330 = vld [vmem:[#allocation11 + $0x60] sm:$0xff]
    %v2331 = vld [vmem:[#allocation11 + $0x68] sm:$0xff]
    %v2332 = vld [vmem:[#allocation11 + $0x70] sm:$0xff]
    %v2333 = vld [vmem:[#allocation11 + $0x78] sm:$0xff]
    %v2334 = vld [vmem:[#allocation11 + $0x80] sm:$0xff]
    %v2335 = vld [vmem:[#allocation11 + $0x88] sm:$0xff]
    %v2336 = vld [vmem:[#allocation11 + $0x90] sm:$0xff]
    %v2337 = vld [vmem:[#allocation11 + $0x98] sm:$0xff]
    %v2338 = vld [vmem:[#allocation11 + $0xa0] sm:$0xff]
    %v2339 = vld [vmem:[#allocation11 + $0xa8] sm:$0xff]
    %v2340 = vld [vmem:[#allocation11 + $0xb0] sm:$0xff]
    %v2341 = vld [vmem:[#allocation11 + $0xb8] sm:$0xff]
    %v2342 = vld [vmem:[#allocation11 + $0xc0] sm:$0xff]
    %v2343 = vld [vmem:[#allocation11 + $0xc8] sm:$0xff]
    %v2344 = vld [vmem:[#allocation11 + $0xd0] sm:$0xff]
    %v2345 = vld [vmem:[#allocation11 + $0xd8] sm:$0xff]
    %v2346 = vld [vmem:[#allocation11 + $0xe0] sm:$0xff]
    %v2347 = vld [vmem:[#allocation11 + $0xe8] sm:$0xff]
    %v2348 = vld [vmem:[#allocation11 + $0xf0] sm:$0xff]
    %v2349 = vld [vmem:[#allocation11 + $0xf8] sm:$0xff]
    %v2350 = vld [vmem:[#allocation11 + $0x100] sm:$0xff]
    %v2351 = vld [vmem:[#allocation11 + $0x108] sm:$0xff]
    %v2352 = vld [vmem:[#allocation11 + $0x110] sm:$0xff]
    %v2353 = vld [vmem:[#allocation11 + $0x118] sm:$0xff]
    %v2354 = vld [vmem:[#allocation11 + $0x120] sm:$0xff]
    %v2355 = vld [vmem:[#allocation11 + $0x128] sm:$0xff]
    %v2356 = vld [vmem:[#allocation11 + $0x130] sm:$0xff]
    %v2357 = vld [vmem:[#allocation11 + $0x138] sm:$0xff]
    %v2358 = vld [vmem:[#allocation11 + $0x140] sm:$0xff]
    %v2359 = vld [vmem:[#allocation11 + $0x148] sm:$0xff]
    %v2360 = vld [vmem:[#allocation11 + $0x150] sm:$0xff]
    %v2361 = vld [vmem:[#allocation11 + $0x158] sm:$0xff]
    %v2362 = vld [vmem:[#allocation11 + $0x160] sm:$0xff]
    %v2363 = vld [vmem:[#allocation11 + $0x168] sm:$0xff]
    %v2364 = vld [vmem:[#allocation11 + $0x170] sm:$0xff]
    %v2365 = vld [vmem:[#allocation11 + $0x178] sm:$0xff]
    %2366 = vmatpush.msra.mxu0 %v2363
    %2367 = vmatpush.msra.mxu0 %v2360
    %2368 = vmatpush.msra.mxu0 %v2357
    %2369 = vmatpush.msra.mxu0 %v2354
    %2370 = vmatpush.msra.mxu0 %v2351
    %2371 = vmatpush.msra.mxu0 %v2348
    %2372 = vmatpush.msra.mxu0 %v2345
    %2373 = vmatpush.msra.mxu0 %v2342
    %2374 = vmatpush.msra.mxu0 %v2339
    %2375 = vmatpush.msra.mxu0 %v2336
    %2376 = vmatpush.msra.mxu0 %v2333
    %2377 = vmatpush.msra.mxu0 %v2330
    %2378 = vmatpush.msra.mxu0 %v2327
    %2379 = vmatpush.msra.mxu0 %v2324
    %2380 = vmatpush.msra.mxu0 %v2321
    %2381 = vmatpush.msra.mxu0 %v2318
    %2382 = vmatmul.f32.gmra.mxu0 %v2313
    %v2383 = vpop.f32.mrf.mxu0
    %v2384 = vadd.f32 0.0, %v2383
    %2385 = vdwg.mxu0
    %2386 = vmatpush.msra.mxu0 %v2364
    %2387 = vmatpush.msra.mxu0 %v2361
    %2388 = vmatpush.msra.mxu0 %v2358
    %2389 = vmatpush.msra.mxu0 %v2355
    %2390 = vmatpush.msra.mxu0 %v2352
    %2391 = vmatpush.msra.mxu0 %v2349
    %2392 = vmatpush.msra.mxu0 %v2346
    %2393 = vmatpush.msra.mxu0 %v2343
    %2394 = vmatpush.msra.mxu0 %v2340
    %2395 = vmatpush.msra.mxu0 %v2337
    %2396 = vmatpush.msra.mxu0 %v2334
    %2397 = vmatpush.msra.mxu0 %v2331
    %2398 = vmatpush.msra.mxu0 %v2328
    %2399 = vmatpush.msra.mxu0 %v2325
    %2400 = vmatpush.msra.mxu0 %v2322
    %2401 = vmatpush.msra.mxu0 %v2319
    %2402 = vmatmul.f32.gmra.mxu0 %v2313
    %v2403 = vpop.f32.mrf.mxu0
    %v2404 = vadd.f32 0.0, %v2403
    %2405 = vdwg.mxu0
    %2406 = vmatpush.msra.mxu0 %v2365
    %2407 = vmatpush.msra.mxu0 %v2362
    %2408 = vmatpush.msra.mxu0 %v2359
    %2409 = vmatpush.msra.mxu0 %v2356
    %2410 = vmatpush.msra.mxu0 %v2353
    %2411 = vmatpush.msra.mxu0 %v2350
    %2412 = vmatpush.msra.mxu0 %v2347
    %2413 = vmatpush.msra.mxu0 %v2344
    %2414 = vmatpush.msra.mxu0 %v2341
    %2415 = vmatpush.msra.mxu0 %v2338
    %2416 = vmatpush.msra.mxu0 %v2335
    %2417 = vmatpush.msra.mxu0 %v2332
    %2418 = vmatpush.msra.mxu0 %v2329
    %2419 = vmatpush.msra.mxu0 %v2326
    %2420 = vmatpush.msra.mxu0 %v2323
    %2421 = vmatpush.msra.mxu0 %v2320
    %2422 = vmatmul.f32.gmra.mxu0 %v2313
    %v2423 = vpop.f32.mrf.mxu0
    %v2424 = vadd.f32 0.0, %v2423
    %2425 = vdwg.mxu0
    %v2426 = vadd.f32 %v2315, %v2384
    %v2427 = vxor.u32 %v2426, 2147483648
    %v2428 = vmul.f32 %v2427, 1.442695
    %v2429 = vpow.pop %v2428
    %v2430 = vadd.f32 %v2429, 1.0
    %v2431 = vrcp.pop %v2430
    %v2432 = vmul.f32 %v2430, %v2431
    %v2433 = vsub.f32 1.0, %v2432
    %v2434 = vmul.f32 %v2431, %v2433
    %v2435 = vadd.f32 %v2431, %v2434
    %vm2436 = vweird.f32 %v2430
    %vm2437 = vweird.f32 %v2431
    %vm2438 = vmor %vm2436, %vm2437
    %v2439 = vsel %vm2438, %v2431, %v2435
    %v2440 = vand.u32 2147483647, %v2430
    %vm2441 = vcmp.eq.f32.partialorder %v2440, 8.507059e+37
    %v2442 = vand.u32 %v2430, 2147483648
    %v2443 = vor.u32 1.1754944e-38, %v2442
    %v2444 = vsel %vm2441, %v2443, %v2439
    %v2445 = vmul.f32 1.0, %v2444
    %v2446 = vadd.f32 %v2316, %v2404
    %v2447 = vxor.u32 %v2446, 2147483648
    %v2448 = vmul.f32 %v2447, 1.442695
    %v2449 = vpow.pop %v2448
    %v2450 = vadd.f32 %v2449, 1.0
    %v2451 = vrcp.pop %v2450
    %v2452 = vmul.f32 %v2450, %v2451
    %v2453 = vsub.f32 1.0, %v2452
    %v2454 = vmul.f32 %v2451, %v2453
    %v2455 = vadd.f32 %v2451, %v2454
    %vm2456 = vweird.f32 %v2450
    %vm2457 = vweird.f32 %v2451
    %vm2458 = vmor %vm2456, %vm2457
    %v2459 = vsel %vm2458, %v2451, %v2455
    %v2460 = vand.u32 2147483647, %v2450
    %vm2461 = vcmp.eq.f32.partialorder %v2460, 8.507059e+37
    %v2462 = vand.u32 %v2450, 2147483648
    %v2463 = vor.u32 1.1754944e-38, %v2462
    %v2464 = vsel %vm2461, %v2463, %v2459
    %v2465 = vmul.f32 1.0, %v2464
    %v2466 = vadd.f32 %v2424, %v1833
    %v2467 = vmul.f32 %v2445, %v2466
    %v2468 = vadd.f32 %v2317, %v2467
    %v2469 = vtanh.pop %v2468
    %v2470 = vsub.f32 1.0, %v2465
    %v2471 = vmul.f32 %v2470, %v2469
    %v2472 = vmul.f32 %v2465, %v2313
    %v2473 = vadd.f32 %v2471, %v2472
    %2474 = vst [vmem:[%s960] sm:$0xff] %v2473
    %v2475 = vld [vmem:[%s964] sm:$0xff]
    %v2476 = vld [vmem:[%s964 + $0x8] sm:$0xff]
    %v2477 = vld [vmem:[%s964 + $0x10] sm:$0xff]
    %v2478 = vld [vmem:[#allocation11] sm:$0xff]
    %v2479 = vld [vmem:[#allocation11 + $0x8] sm:$0xff]
    %v2480 = vld [vmem:[#allocation11 + $0x10] sm:$0xff]
    %v2481 = vld [vmem:[#allocation11 + $0x18] sm:$0xff]
    %v2482 = vld [vmem:[#allocation11 + $0x20] sm:$0xff]
    %v2483 = vld [vmem:[#allocation11 + $0x28] sm:$0xff]
    %v2484 = vld [vmem:[#allocation11 + $0x30] sm:$0xff]
    %v2485 = vld [vmem:[#allocation11 + $0x38] sm:$0xff]
    %v2486 = vld [vmem:[#allocation11 + $0x40] sm:$0xff]
    %v2487 = vld [vmem:[#allocation11 + $0x48] sm:$0xff]
    %v2488 = vld [vmem:[#allocation11 + $0x50] sm:$0xff]
    %v2489 = vld [vmem:[#allocation11 + $0x58] sm:$0xff]
    %v2490 = vld [vmem:[#allocation11 + $0x60] sm:$0xff]
    %v2491 = vld [vmem:[#allocation11 + $0x68] sm:$0xff]
    %v2492 = vld [vmem:[#allocation11 + $0x70] sm:$0xff]
    %v2493 = vld [vmem:[#allocation11 + $0x78] sm:$0xff]
    %v2494 = vld [vmem:[#allocation11 + $0x80] sm:$0xff]
    %v2495 = vld [vmem:[#allocation11 + $0x88] sm:$0xff]
    %v2496 = vld [vmem:[#allocation11 + $0x90] sm:$0xff]
    %v2497 = vld [vmem:[#allocation11 + $0x98] sm:$0xff]
    %v2498 = vld [vmem:[#allocation11 + $0xa0] sm:$0xff]
    %v2499 = vld [vmem:[#allocation11 + $0xa8] sm:$0xff]
    %v2500 = vld [vmem:[#allocation11 + $0xb0] sm:$0xff]
    %v2501 = vld [vmem:[#allocation11 + $0xb8] sm:$0xff]
    %v2502 = vld [vmem:[#allocation11 + $0xc0] sm:$0xff]
    %v2503 = vld [vmem:[#allocation11 + $0xc8] sm:$0xff]
    %v2504 = vld [vmem:[#allocation11 + $0xd0] sm:$0xff]
    %v2505 = vld [vmem:[#allocation11 + $0xd8] sm:$0xff]
    %v2506 = vld [vmem:[#allocation11 + $0xe0] sm:$0xff]
    %v2507 = vld [vmem:[#allocation11 + $0xe8] sm:$0xff]
    %v2508 = vld [vmem:[#allocation11 + $0xf0] sm:$0xff]
    %v2509 = vld [vmem:[#allocation11 + $0xf8] sm:$0xff]
    %v2510 = vld [vmem:[#allocation11 + $0x100] sm:$0xff]
    %v2511 = vld [vmem:[#allocation11 + $0x108] sm:$0xff]
    %v2512 = vld [vmem:[#allocation11 + $0x110] sm:$0xff]
    %v2513 = vld [vmem:[#allocation11 + $0x118] sm:$0xff]
    %v2514 = vld [vmem:[#allocation11 + $0x120] sm:$0xff]
    %v2515 = vld [vmem:[#allocation11 + $0x128] sm:$0xff]
    %v2516 = vld [vmem:[#allocation11 + $0x130] sm:$0xff]
    %v2517 = vld [vmem:[#allocation11 + $0x138] sm:$0xff]
    %v2518 = vld [vmem:[#allocation11 + $0x140] sm:$0xff]
    %v2519 = vld [vmem:[#allocation11 + $0x148] sm:$0xff]
    %v2520 = vld [vmem:[#allocation11 + $0x150] sm:$0xff]
    %v2521 = vld [vmem:[#allocation11 + $0x158] sm:$0xff]
    %v2522 = vld [vmem:[#allocation11 + $0x160] sm:$0xff]
    %v2523 = vld [vmem:[#allocation11 + $0x168] sm:$0xff]
    %v2524 = vld [vmem:[#allocation11 + $0x170] sm:$0xff]
    %v2525 = vld [vmem:[#allocation11 + $0x178] sm:$0xff]
    %2526 = vmatpush.msra.mxu0 %v2523
    %2527 = vmatpush.msra.mxu0 %v2520
    %2528 = vmatpush.msra.mxu0 %v2517
    %2529 = vmatpush.msra.mxu0 %v2514
    %2530 = vmatpush.msra.mxu0 %v2511
    %2531 = vmatpush.msra.mxu0 %v2508
    %2532 = vmatpush.msra.mxu0 %v2505
    %2533 = vmatpush.msra.mxu0 %v2502
    %2534 = vmatpush.msra.mxu0 %v2499
    %2535 = vmatpush.msra.mxu0 %v2496
    %2536 = vmatpush.msra.mxu0 %v2493
    %2537 = vmatpush.msra.mxu0 %v2490
    %2538 = vmatpush.msra.mxu0 %v2487
    %2539 = vmatpush.msra.mxu0 %v2484
    %2540 = vmatpush.msra.mxu0 %v2481
    %2541 = vmatpush.msra.mxu0 %v2478
    %2542 = vmatmul.f32.gmra.mxu0 %v2473
    %v2543 = vpop.f32.mrf.mxu0
    %v2544 = vadd.f32 0.0, %v2543
    %2545 = vdwg.mxu0
    %2546 = vmatpush.msra.mxu0 %v2524
    %2547 = vmatpush.msra.mxu0 %v2521
    %2548 = vmatpush.msra.mxu0 %v2518
    %2549 = vmatpush.msra.mxu0 %v2515
    %2550 = vmatpush.msra.mxu0 %v2512
    %2551 = vmatpush.msra.mxu0 %v2509
    %2552 = vmatpush.msra.mxu0 %v2506
    %2553 = vmatpush.msra.mxu0 %v2503
    %2554 = vmatpush.msra.mxu0 %v2500
    %2555 = vmatpush.msra.mxu0 %v2497
    %2556 = vmatpush.msra.mxu0 %v2494
    %2557 = vmatpush.msra.mxu0 %v2491
    %2558 = vmatpush.msra.mxu0 %v2488
    %2559 = vmatpush.msra.mxu0 %v2485
    %2560 = vmatpush.msra.mxu0 %v2482
    %2561 = vmatpush.msra.mxu0 %v2479
    %2562 = vmatmul.f32.gmra.mxu0 %v2473
    %v2563 = vpop.f32.mrf.mxu0
    %v2564 = vadd.f32 0.0, %v2563
    %2565 = vdwg.mxu0
    %2566 = vmatpush.msra.mxu0 %v2525
    %2567 = vmatpush.msra.mxu0 %v2522
    %2568 = vmatpush.msra.mxu0 %v2519
    %2569 = vmatpush.msra.mxu0 %v2516
    %2570 = vmatpush.msra.mxu0 %v2513
    %2571 = vmatpush.msra.mxu0 %v2510
    %2572 = vmatpush.msra.mxu0 %v2507
    %2573 = vmatpush.msra.mxu0 %v2504
    %2574 = vmatpush.msra.mxu0 %v2501
    %2575 = vmatpush.msra.mxu0 %v2498
    %2576 = vmatpush.msra.mxu0 %v2495
    %2577 = vmatpush.msra.mxu0 %v2492
    %2578 = vmatpush.msra.mxu0 %v2489
    %2579 = vmatpush.msra.mxu0 %v2486
    %2580 = vmatpush.msra.mxu0 %v2483
    %2581 = vmatpush.msra.mxu0 %v2480
    %2582 = vmatmul.f32.gmra.mxu0 %v2473
    %v2583 = vpop.f32.mrf.mxu0
    %v2584 = vadd.f32 0.0, %v2583
    %2585 = vdwg.mxu0
    %v2586 = vadd.f32 %v2475, %v2544
    %v2587 = vxor.u32 %v2586, 2147483648
    %v2588 = vmul.f32 %v2587, 1.442695
    %v2589 = vpow.pop %v2588
    %v2590 = vadd.f32 %v2589, 1.0
    %v2591 = vrcp.pop %v2590
    %v2592 = vmul.f32 %v2590, %v2591
    %v2593 = vsub.f32 1.0, %v2592
    %v2594 = vmul.f32 %v2591, %v2593
    %v2595 = vadd.f32 %v2591, %v2594
    %vm2596 = vweird.f32 %v2590
    %vm2597 = vweird.f32 %v2591
    %vm2598 = vmor %vm2596, %vm2597
    %v2599 = vsel %vm2598, %v2591, %v2595
    %v2600 = vand.u32 2147483647, %v2590
    %vm2601 = vcmp.eq.f32.partialorder %v2600, 8.507059e+37
    %v2602 = vand.u32 %v2590, 2147483648
    %v2603 = vor.u32 1.1754944e-38, %v2602
    %v2604 = vsel %vm2601, %v2603, %v2599
    %v2605 = vmul.f32 1.0, %v2604
    %v2606 = vadd.f32 %v2476, %v2564
    %v2607 = vxor.u32 %v2606, 2147483648
    %v2608 = vmul.f32 %v2607, 1.442695
    %v2609 = vpow.pop %v2608
    %v2610 = vadd.f32 %v2609, 1.0
    %v2611 = vrcp.pop %v2610
    %v2612 = vmul.f32 %v2610, %v2611
    %v2613 = vsub.f32 1.0, %v2612
    %v2614 = vmul.f32 %v2611, %v2613
    %v2615 = vadd.f32 %v2611, %v2614
    %vm2616 = vweird.f32 %v2610
    %vm2617 = vweird.f32 %v2611
    %vm2618 = vmor %vm2616, %vm2617
    %v2619 = vsel %vm2618, %v2611, %v2615
    %v2620 = vand.u32 2147483647, %v2610
    %vm2621 = vcmp.eq.f32.partialorder %v2620, 8.507059e+37
    %v2622 = vand.u32 %v2610, 2147483648
    %v2623 = vor.u32 1.1754944e-38, %v2622
    %v2624 = vsel %vm2621, %v2623, %v2619
    %v2625 = vmul.f32 1.0, %v2624
    %v2626 = vadd.f32 %v2584, %v1833
    %v2627 = vmul.f32 %v2605, %v2626
    %v2628 = vadd.f32 %v2477, %v2627
    %v2629 = vtanh.pop %v2628
    %v2630 = vsub.f32 1.0, %v2625
    %v2631 = vmul.f32 %v2630, %v2629
    %v2632 = vmul.f32 %v2625, %v2473
    %v2633 = vadd.f32 %v2631, %v2632
    %2634 = vst [vmem:[%s1124] sm:$0xff] %v2633
    %v2635 = vld [vmem:[%s1128] sm:$0xff]
    %v2636 = vld [vmem:[%s1128 + $0x8] sm:$0xff]
    %v2637 = vld [vmem:[%s1128 + $0x10] sm:$0xff]
    %v2638 = vld [vmem:[#allocation11] sm:$0xff]
    %v2639 = vld [vmem:[#allocation11 + $0x8] sm:$0xff]
    %v2640 = vld [vmem:[#allocation11 + $0x10] sm:$0xff]
    %v2641 = vld [vmem:[#allocation11 + $0x18] sm:$0xff]
    %v2642 = vld [vmem:[#allocation11 + $0x20] sm:$0xff]
    %v2643 = vld [vmem:[#allocation11 + $0x28] sm:$0xff]
    %v2644 = vld [vmem:[#allocation11 + $0x30] sm:$0xff]
    %v2645 = vld [vmem:[#allocation11 + $0x38] sm:$0xff]
    %v2646 = vld [vmem:[#allocation11 + $0x40] sm:$0xff]
    %v2647 = vld [vmem:[#allocation11 + $0x48] sm:$0xff]
    %v2648 = vld [vmem:[#allocation11 + $0x50] sm:$0xff]
    %v2649 = vld [vmem:[#allocation11 + $0x58] sm:$0xff]
    %v2650 = vld [vmem:[#allocation11 + $0x60] sm:$0xff]
    %v2651 = vld [vmem:[#allocation11 + $0x68] sm:$0xff]
    %v2652 = vld [vmem:[#allocation11 + $0x70] sm:$0xff]
    %v2653 = vld [vmem:[#allocation11 + $0x78] sm:$0xff]
    %v2654 = vld [vmem:[#allocation11 + $0x80] sm:$0xff]
    %v2655 = vld [vmem:[#allocation11 + $0x88] sm:$0xff]
    %v2656 = vld [vmem:[#allocation11 + $0x90] sm:$0xff]
    %v2657 = vld [vmem:[#allocation11 + $0x98] sm:$0xff]
    %v2658 = vld [vmem:[#allocation11 + $0xa0] sm:$0xff]
    %v2659 = vld [vmem:[#allocation11 + $0xa8] sm:$0xff]
    %v2660 = vld [vmem:[#allocation11 + $0xb0] sm:$0xff]
    %v2661 = vld [vmem:[#allocation11 + $0xb8] sm:$0xff]
    %v2662 = vld [vmem:[#allocation11 + $0xc0] sm:$0xff]
    %v2663 = vld [vmem:[#allocation11 + $0xc8] sm:$0xff]
    %v2664 = vld [vmem:[#allocation11 + $0xd0] sm:$0xff]
    %v2665 = vld [vmem:[#allocation11 + $0xd8] sm:$0xff]
    %v2666 = vld [vmem:[#allocation11 + $0xe0] sm:$0xff]
    %v2667 = vld [vmem:[#allocation11 + $0xe8] sm:$0xff]
    %v2668 = vld [vmem:[#allocation11 + $0xf0] sm:$0xff]
    %v2669 = vld [vmem:[#allocation11 + $0xf8] sm:$0xff]
    %v2670 = vld [vmem:[#allocation11 + $0x100] sm:$0xff]
    %v2671 = vld [vmem:[#allocation11 + $0x108] sm:$0xff]
    %v2672 = vld [vmem:[#allocation11 + $0x110] sm:$0xff]
    %v2673 = vld [vmem:[#allocation11 + $0x118] sm:$0xff]
    %v2674 = vld [vmem:[#allocation11 + $0x120] sm:$0xff]
    %v2675 = vld [vmem:[#allocation11 + $0x128] sm:$0xff]
    %v2676 = vld [vmem:[#allocation11 + $0x130] sm:$0xff]
    %v2677 = vld [vmem:[#allocation11 + $0x138] sm:$0xff]
    %v2678 = vld [vmem:[#allocation11 + $0x140] sm:$0xff]
    %v2679 = vld [vmem:[#allocation11 + $0x148] sm:$0xff]
    %v2680 = vld [vmem:[#allocation11 + $0x150] sm:$0xff]
    %v2681 = vld [vmem:[#allocation11 + $0x158] sm:$0xff]
    %v2682 = vld [vmem:[#allocation11 + $0x160] sm:$0xff]
    %v2683 = vld [vmem:[#allocation11 + $0x168] sm:$0xff]
    %v2684 = vld [vmem:[#allocation11 + $0x170] sm:$0xff]
    %v2685 = vld [vmem:[#allocation11 + $0x178] sm:$0xff]
    %2686 = vmatpush.msra.mxu0 %v2683
    %2687 = vmatpush.msra.mxu0 %v2680
    %2688 = vmatpush.msra.mxu0 %v2677
    %2689 = vmatpush.msra.mxu0 %v2674
    %2690 = vmatpush.msra.mxu0 %v2671
    %2691 = vmatpush.msra.mxu0 %v2668
    %2692 = vmatpush.msra.mxu0 %v2665
    %2693 = vmatpush.msra.mxu0 %v2662
    %2694 = vmatpush.msra.mxu0 %v2659
    %2695 = vmatpush.msra.mxu0 %v2656
    %2696 = vmatpush.msra.mxu0 %v2653
    %2697 = vmatpush.msra.mxu0 %v2650
    %2698 = vmatpush.msra.mxu0 %v2647
    %2699 = vmatpush.msra.mxu0 %v2644
    %2700 = vmatpush.msra.mxu0 %v2641
    %2701 = vmatpush.msra.mxu0 %v2638
    %2702 = vmatmul.f32.gmra.mxu0 %v2633
    %v2703 = vpop.f32.mrf.mxu0
    %v2704 = vadd.f32 0.0, %v2703
    %2705 = vdwg.mxu0
    %2706 = vmatpush.msra.mxu0 %v2684
    %2707 = vmatpush.msra.mxu0 %v2681
    %2708 = vmatpush.msra.mxu0 %v2678
    %2709 = vmatpush.msra.mxu0 %v2675
    %2710 = vmatpush.msra.mxu0 %v2672
    %2711 = vmatpush.msra.mxu0 %v2669
    %2712 = vmatpush.msra.mxu0 %v2666
    %2713 = vmatpush.msra.mxu0 %v2663
    %2714 = vmatpush.msra.mxu0 %v2660
    %2715 = vmatpush.msra.mxu0 %v2657
    %2716 = vmatpush.msra.mxu0 %v2654
    %2717 = vmatpush.msra.mxu0 %v2651
    %2718 = vmatpush.msra.mxu0 %v2648
    %2719 = vmatpush.msra.mxu0 %v2645
    %2720 = vmatpush.msra.mxu0 %v2642
    %2721 = vmatpush.msra.mxu0 %v2639
    %2722 = vmatmul.f32.gmra.mxu0 %v2633
    %v2723 = vpop.f32.mrf.mxu0
    %v2724 = vadd.f32 0.0, %v2723
    %2725 = vdwg.mxu0
    %2726 = vmatpush.msra.mxu0 %v2685
    %2727 = vmatpush.msra.mxu0 %v2682
    %2728 = vmatpush.msra.mxu0 %v2679
    %2729 = vmatpush.msra.mxu0 %v2676
    %2730 = vmatpush.msra.mxu0 %v2673
    %2731 = vmatpush.msra.mxu0 %v2670
    %2732 = vmatpush.msra.mxu0 %v2667
    %2733 = vmatpush.msra.mxu0 %v2664
    %2734 = vmatpush.msra.mxu0 %v2661
    %2735 = vmatpush.msra.mxu0 %v2658
    %2736 = vmatpush.msra.mxu0 %v2655
    %2737 = vmatpush.msra.mxu0 %v2652
    %2738 = vmatpush.msra.mxu0 %v2649
    %2739 = vmatpush.msra.mxu0 %v2646
    %2740 = vmatpush.msra.mxu0 %v2643
    %2741 = vmatpush.msra.mxu0 %v2640
    %2742 = vmatmul.f32.gmra.mxu0 %v2633
    %v2743 = vpop.f32.mrf.mxu0
    %v2744 = vadd.f32 0.0, %v2743
    %2745 = vdwg.mxu0
    %v2746 = vadd.f32 %v2635, %v2704
    %v2747 = vxor.u32 %v2746, 2147483648
    %v2748 = vmul.f32 %v2747, 1.442695
    %v2749 = vpow.pop %v2748
    %v2750 = vadd.f32 %v2749, 1.0
    %v2751 = vrcp.pop %v2750
    %v2752 = vmul.f32 %v2750, %v2751
    %v2753 = vsub.f32 1.0, %v2752
    %v2754 = vmul.f32 %v2751, %v2753
    %v2755 = vadd.f32 %v2751, %v2754
    %vm2756 = vweird.f32 %v2750
    %vm2757 = vweird.f32 %v2751
    %vm2758 = vmor %vm2756, %vm2757
    %v2759 = vsel %vm2758, %v2751, %v2755
    %v2760 = vand.u32 2147483647, %v2750
    %vm2761 = vcmp.eq.f32.partialorder %v2760, 8.507059e+37
    %v2762 = vand.u32 %v2750, 2147483648
    %v2763 = vor.u32 1.1754944e-38, %v2762
    %v2764 = vsel %vm2761, %v2763, %v2759
    %v2765 = vmul.f32 1.0, %v2764
    %v2766 = vadd.f32 %v2636, %v2724
    %v2767 = vxor.u32 %v2766, 2147483648
    %v2768 = vmul.f32 %v2767, 1.442695
    %v2769 = vpow.pop %v2768
    %v2770 = vadd.f32 %v2769, 1.0
    %v2771 = vrcp.pop %v2770
    %v2772 = vmul.f32 %v2770, %v2771
    %v2773 = vsub.f32 1.0, %v2772
    %v2774 = vmul.f32 %v2771, %v2773
    %v2775 = vadd.f32 %v2771, %v2774
    %vm2776 = vweird.f32 %v2770
    %vm2777 = vweird.f32 %v2771
    %vm2778 = vmor %vm2776, %vm2777
    %v2779 = vsel %vm2778, %v2771, %v2775
    %v2780 = vand.u32 2147483647, %v2770
    %vm2781 = vcmp.eq.f32.partialorder %v2780, 8.507059e+37
    %v2782 = vand.u32 %v2770, 2147483648
    %v2783 = vor.u32 1.1754944e-38, %v2782
    %v2784 = vsel %vm2781, %v2783, %v2779
    %v2785 = vmul.f32 1.0, %v2784
    %v2786 = vadd.f32 %v2744, %v1833
    %v2787 = vmul.f32 %v2765, %v2786
    %v2788 = vadd.f32 %v2637, %v2787
    %v2789 = vtanh.pop %v2788
    %v2790 = vsub.f32 1.0, %v2785
    %v2791 = vmul.f32 %v2790, %v2789
    %v2792 = vmul.f32 %v2785, %v2633
    %v2793 = vadd.f32 %v2791, %v2792
    %2794 = vst [vmem:[%s1288] sm:$0xff] %v2793
    %v2795 = vld [vmem:[%s1292] sm:$0xff]
    %v2796 = vld [vmem:[%s1292 + $0x8] sm:$0xff]
    %v2797 = vld [vmem:[%s1292 + $0x10] sm:$0xff]
    %v2798 = vld [vmem:[#allocation11] sm:$0xff]
    %v2799 = vld [vmem:[#allocation11 + $0x8] sm:$0xff]
    %v2800 = vld [vmem:[#allocation11 + $0x10] sm:$0xff]
    %v2801 = vld [vmem:[#allocation11 + $0x18] sm:$0xff]
    %v2802 = vld [vmem:[#allocation11 + $0x20] sm:$0xff]
    %v2803 = vld [vmem:[#allocation11 + $0x28] sm:$0xff]
    %v2804 = vld [vmem:[#allocation11 + $0x30] sm:$0xff]
    %v2805 = vld [vmem:[#allocation11 + $0x38] sm:$0xff]
    %v2806 = vld [vmem:[#allocation11 + $0x40] sm:$0xff]
    %v2807 = vld [vmem:[#allocation11 + $0x48] sm:$0xff]
    %v2808 = vld [vmem:[#allocation11 + $0x50] sm:$0xff]
    %v2809 = vld [vmem:[#allocation11 + $0x58] sm:$0xff]
    %v2810 = vld [vmem:[#allocation11 + $0x60] sm:$0xff]
    %v2811 = vld [vmem:[#allocation11 + $0x68] sm:$0xff]
    %v2812 = vld [vmem:[#allocation11 + $0x70] sm:$0xff]
    %v2813 = vld [vmem:[#allocation11 + $0x78] sm:$0xff]
    %v2814 = vld [vmem:[#allocation11 + $0x80] sm:$0xff]
    %v2815 = vld [vmem:[#allocation11 + $0x88] sm:$0xff]
    %v2816 = vld [vmem:[#allocation11 + $0x90] sm:$0xff]
    %v2817 = vld [vmem:[#allocation11 + $0x98] sm:$0xff]
    %v2818 = vld [vmem:[#allocation11 + $0xa0] sm:$0xff]
    %v2819 = vld [vmem:[#allocation11 + $0xa8] sm:$0xff]
    %v2820 = vld [vmem:[#allocation11 + $0xb0] sm:$0xff]
    %v2821 = vld [vmem:[#allocation11 + $0xb8] sm:$0xff]
    %v2822 = vld [vmem:[#allocation11 + $0xc0] sm:$0xff]
    %v2823 = vld [vmem:[#allocation11 + $0xc8] sm:$0xff]
    %v2824 = vld [vmem:[#allocation11 + $0xd0] sm:$0xff]
    %v2825 = vld [vmem:[#allocation11 + $0xd8] sm:$0xff]
    %v2826 = vld [vmem:[#allocation11 + $0xe0] sm:$0xff]
    %v2827 = vld [vmem:[#allocation11 + $0xe8] sm:$0xff]
    %v2828 = vld [vmem:[#allocation11 + $0xf0] sm:$0xff]
    %v2829 = vld [vmem:[#allocation11 + $0xf8] sm:$0xff]
    %v2830 = vld [vmem:[#allocation11 + $0x100] sm:$0xff]
    %v2831 = vld [vmem:[#allocation11 + $0x108] sm:$0xff]
    %v2832 = vld [vmem:[#allocation11 + $0x110] sm:$0xff]
    %v2833 = vld [vmem:[#allocation11 + $0x118] sm:$0xff]
    %v2834 = vld [vmem:[#allocation11 + $0x120] sm:$0xff]
    %v2835 = vld [vmem:[#allocation11 + $0x128] sm:$0xff]
    %v2836 = vld [vmem:[#allocation11 + $0x130] sm:$0xff]
    %v2837 = vld [vmem:[#allocation11 + $0x138] sm:$0xff]
    %v2838 = vld [vmem:[#allocation11 + $0x140] sm:$0xff]
    %v2839 = vld [vmem:[#allocation11 + $0x148] sm:$0xff]
    %v2840 = vld [vmem:[#allocation11 + $0x150] sm:$0xff]
    %v2841 = vld [vmem:[#allocation11 + $0x158] sm:$0xff]
    %v2842 = vld [vmem:[#allocation11 + $0x160] sm:$0xff]
    %v2843 = vld [vmem:[#allocation11 + $0x168] sm:$0xff]
    %v2844 = vld [vmem:[#allocation11 + $0x170] sm:$0xff]
    %v2845 = vld [vmem:[#allocation11 + $0x178] sm:$0xff]
    %2846 = vmatpush.msra.mxu0 %v2843
    %2847 = vmatpush.msra.mxu0 %v2840
    %2848 = vmatpush.msra.mxu0 %v2837
    %2849 = vmatpush.msra.mxu0 %v2834
    %2850 = vmatpush.msra.mxu0 %v2831
    %2851 = vmatpush.msra.mxu0 %v2828
    %2852 = vmatpush.msra.mxu0 %v2825
    %2853 = vmatpush.msra.mxu0 %v2822
    %2854 = vmatpush.msra.mxu0 %v2819
    %2855 = vmatpush.msra.mxu0 %v2816
    %2856 = vmatpush.msra.mxu0 %v2813
    %2857 = vmatpush.msra.mxu0 %v2810
    %2858 = vmatpush.msra.mxu0 %v2807
    %2859 = vmatpush.msra.mxu0 %v2804
    %2860 = vmatpush.msra.mxu0 %v2801
    %2861 = vmatpush.msra.mxu0 %v2798
    %2862 = vmatmul.f32.gmra.mxu0 %v2793
    %v2863 = vpop.f32.mrf.mxu0
    %v2864 = vadd.f32 0.0, %v2863
    %2865 = vdwg.mxu0
    %2866 = vmatpush.msra.mxu0 %v2844
    %2867 = vmatpush.msra.mxu0 %v2841
    %2868 = vmatpush.msra.mxu0 %v2838
    %2869 = vmatpush.msra.mxu0 %v2835
    %2870 = vmatpush.msra.mxu0 %v2832
    %2871 = vmatpush.msra.mxu0 %v2829
    %2872 = vmatpush.msra.mxu0 %v2826
    %2873 = vmatpush.msra.mxu0 %v2823
    %2874 = vmatpush.msra.mxu0 %v2820
    %2875 = vmatpush.msra.mxu0 %v2817
    %2876 = vmatpush.msra.mxu0 %v2814
    %2877 = vmatpush.msra.mxu0 %v2811
    %2878 = vmatpush.msra.mxu0 %v2808
    %2879 = vmatpush.msra.mxu0 %v2805
    %2880 = vmatpush.msra.mxu0 %v2802
    %2881 = vmatpush.msra.mxu0 %v2799
    %2882 = vmatmul.f32.gmra.mxu0 %v2793
    %v2883 = vpop.f32.mrf.mxu0
    %v2884 = vadd.f32 0.0, %v2883
    %2885 = vdwg.mxu0
    %2886 = vmatpush.msra.mxu0 %v2845
    %2887 = vmatpush.msra.mxu0 %v2842
    %2888 = vmatpush.msra.mxu0 %v2839
    %2889 = vmatpush.msra.mxu0 %v2836
    %2890 = vmatpush.msra.mxu0 %v2833
    %2891 = vmatpush.msra.mxu0 %v2830
    %2892 = vmatpush.msra.mxu0 %v2827
    %2893 = vmatpush.msra.mxu0 %v2824
    %2894 = vmatpush.msra.mxu0 %v2821
    %2895 = vmatpush.msra.mxu0 %v2818
    %2896 = vmatpush.msra.mxu0 %v2815
    %2897 = vmatpush.msra.mxu0 %v2812
    %2898 = vmatpush.msra.mxu0 %v2809
    %2899 = vmatpush.msra.mxu0 %v2806
    %2900 = vmatpush.msra.mxu0 %v2803
    %2901 = vmatpush.msra.mxu0 %v2800
    %2902 = vmatmul.f32.gmra.mxu0 %v2793
    %v2903 = vpop.f32.mrf.mxu0
    %v2904 = vadd.f32 0.0, %v2903
    %2905 = vdwg.mxu0
    %v2906 = vadd.f32 %v2795, %v2864
    %v2907 = vxor.u32 %v2906, 2147483648
    %v2908 = vmul.f32 %v2907, 1.442695
    %v2909 = vpow.pop %v2908
    %v2910 = vadd.f32 %v2909, 1.0
    %v2911 = vrcp.pop %v2910
    %v2912 = vmul.f32 %v2910, %v2911
    %v2913 = vsub.f32 1.0, %v2912
    %v2914 = vmul.f32 %v2911, %v2913
    %v2915 = vadd.f32 %v2911, %v2914
    %vm2916 = vweird.f32 %v2910
    %vm2917 = vweird.f32 %v2911
    %vm2918 = vmor %vm2916, %vm2917
    %v2919 = vsel %vm2918, %v2911, %v2915
    %v2920 = vand.u32 2147483647, %v2910
    %vm2921 = vcmp.eq.f32.partialorder %v2920, 8.507059e+37
    %v2922 = vand.u32 %v2910, 2147483648
    %v2923 = vor.u32 1.1754944e-38, %v2922
    %v2924 = vsel %vm2921, %v2923, %v2919
    %v2925 = vmul.f32 1.0, %v2924
    %v2926 = vadd.f32 %v2796, %v2884
    %v2927 = vxor.u32 %v2926, 2147483648
    %v2928 = vmul.f32 %v2927, 1.442695
    %v2929 = vpow.pop %v2928
    %v2930 = vadd.f32 %v2929, 1.0
    %v2931 = vrcp.pop %v2930
    %v2932 = vmul.f32 %v2930, %v2931
    %v2933 = vsub.f32 1.0, %v2932
    %v2934 = vmul.f32 %v2931, %v2933
    %v2935 = vadd.f32 %v2931, %v2934
    %vm2936 = vweird.f32 %v2930
    %vm2937 = vweird.f32 %v2931
    %vm2938 = vmor %vm2936, %vm2937
    %v2939 = vsel %vm2938, %v2931, %v2935
    %v2940 = vand.u32 2147483647, %v2930
    %vm2941 = vcmp.eq.f32.partialorder %v2940, 8.507059e+37
    %v2942 = vand.u32 %v2930, 2147483648
    %v2943 = vor.u32 1.1754944e-38, %v2942
    %v2944 = vsel %vm2941, %v2943, %v2939
    %v2945 = vmul.f32 1.0, %v2944
    %v2946 = vadd.f32 %v2904, %v1833
    %v2947 = vmul.f32 %v2925, %v2946
    %v2948 = vadd.f32 %v2797, %v2947
    %v2949 = vtanh.pop %v2948
    %v2950 = vsub.f32 1.0, %v2945
    %v2951 = vmul.f32 %v2950, %v2949
    %v2952 = vmul.f32 %v2945, %v2793
    %v2953 = vadd.f32 %v2951, %v2952
    %2954 = vst [vmem:[%s1452] sm:$0xff] %v2953
    %v2955 = vld [vmem:[%s1456] sm:$0xff]
    %v2956 = vld [vmem:[%s1456 + $0x8] sm:$0xff]
    %v2957 = vld [vmem:[%s1456 + $0x10] sm:$0xff]
    %v2958 = vld [vmem:[#allocation11] sm:$0xff]
    %v2959 = vld [vmem:[#allocation11 + $0x8] sm:$0xff]
    %v2960 = vld [vmem:[#allocation11 + $0x10] sm:$0xff]
    %v2961 = vld [vmem:[#allocation11 + $0x18] sm:$0xff]
    %v2962 = vld [vmem:[#allocation11 + $0x20] sm:$0xff]
    %v2963 = vld [vmem:[#allocation11 + $0x28] sm:$0xff]
    %v2964 = vld [vmem:[#allocation11 + $0x30] sm:$0xff]
    %v2965 = vld [vmem:[#allocation11 + $0x38] sm:$0xff]
    %v2966 = vld [vmem:[#allocation11 + $0x40] sm:$0xff]
    %v2967 = vld [vmem:[#allocation11 + $0x48] sm:$0xff]
    %v2968 = vld [vmem:[#allocation11 + $0x50] sm:$0xff]
    %v2969 = vld [vmem:[#allocation11 + $0x58] sm:$0xff]
    %v2970 = vld [vmem:[#allocation11 + $0x60] sm:$0xff]
    %v2971 = vld [vmem:[#allocation11 + $0x68] sm:$0xff]
    %v2972 = vld [vmem:[#allocation11 + $0x70] sm:$0xff]
    %v2973 = vld [vmem:[#allocation11 + $0x78] sm:$0xff]
    %v2974 = vld [vmem:[#allocation11 + $0x80] sm:$0xff]
    %v2975 = vld [vmem:[#allocation11 + $0x88] sm:$0xff]
    %v2976 = vld [vmem:[#allocation11 + $0x90] sm:$0xff]
    %v2977 = vld [vmem:[#allocation11 + $0x98] sm:$0xff]
    %v2978 = vld [vmem:[#allocation11 + $0xa0] sm:$0xff]
    %v2979 = vld [vmem:[#allocation11 + $0xa8] sm:$0xff]
    %v2980 = vld [vmem:[#allocation11 + $0xb0] sm:$0xff]
    %v2981 = vld [vmem:[#allocation11 + $0xb8] sm:$0xff]
    %v2982 = vld [vmem:[#allocation11 + $0xc0] sm:$0xff]
    %v2983 = vld [vmem:[#allocation11 + $0xc8] sm:$0xff]
    %v2984 = vld [vmem:[#allocation11 + $0xd0] sm:$0xff]
    %v2985 = vld [vmem:[#allocation11 + $0xd8] sm:$0xff]
    %v2986 = vld [vmem:[#allocation11 + $0xe0] sm:$0xff]
    %v2987 = vld [vmem:[#allocation11 + $0xe8] sm:$0xff]
    %v2988 = vld [vmem:[#allocation11 + $0xf0] sm:$0xff]
    %v2989 = vld [vmem:[#allocation11 + $0xf8] sm:$0xff]
    %v2990 = vld [vmem:[#allocation11 + $0x100] sm:$0xff]
    %v2991 = vld [vmem:[#allocation11 + $0x108] sm:$0xff]
    %v2992 = vld [vmem:[#allocation11 + $0x110] sm:$0xff]
    %v2993 = vld [vmem:[#allocation11 + $0x118] sm:$0xff]
    %v2994 = vld [vmem:[#allocation11 + $0x120] sm:$0xff]
    %v2995 = vld [vmem:[#allocation11 + $0x128] sm:$0xff]
    %v2996 = vld [vmem:[#allocation11 + $0x130] sm:$0xff]
    %v2997 = vld [vmem:[#allocation11 + $0x138] sm:$0xff]
    %v2998 = vld [vmem:[#allocation11 + $0x140] sm:$0xff]
    %v2999 = vld [vmem:[#allocation11 + $0x148] sm:$0xff]
    %v3000 = vld [vmem:[#allocation11 + $0x150] sm:$0xff]
    %v3001 = vld [vmem:[#allocation11 + $0x158] sm:$0xff]
    %v3002 = vld [vmem:[#allocation11 + $0x160] sm:$0xff]
    %v3003 = vld [vmem:[#allocation11 + $0x168] sm:$0xff]
    %v3004 = vld [vmem:[#allocation11 + $0x170] sm:$0xff]
    %v3005 = vld [vmem:[#allocation11 + $0x178] sm:$0xff]
    %3006 = vmatpush.msra.mxu0 %v3003
    %3007 = vmatpush.msra.mxu0 %v3000
    %3008 = vmatpush.msra.mxu0 %v2997
    %3009 = vmatpush.msra.mxu0 %v2994
    %3010 = vmatpush.msra.mxu0 %v2991
    %3011 = vmatpush.msra.mxu0 %v2988
    %3012 = vmatpush.msra.mxu0 %v2985
    %3013 = vmatpush.msra.mxu0 %v2982
    %3014 = vmatpush.msra.mxu0 %v2979
    %3015 = vmatpush.msra.mxu0 %v2976
    %3016 = vmatpush.msra.mxu0 %v2973
    %3017 = vmatpush.msra.mxu0 %v2970
    %3018 = vmatpush.msra.mxu0 %v2967
    %3019 = vmatpush.msra.mxu0 %v2964
    %3020 = vmatpush.msra.mxu0 %v2961
    %3021 = vmatpush.msra.mxu0 %v2958
    %3022 = vmatmul.f32.gmra.mxu0 %v2953
    %v3023 = vpop.f32.mrf.mxu0
    %v3024 = vadd.f32 0.0, %v3023
    %3025 = vdwg.mxu0
    %3026 = vmatpush.msra.mxu0 %v3004
    %3027 = vmatpush.msra.mxu0 %v3001
    %3028 = vmatpush.msra.mxu0 %v2998
    %3029 = vmatpush.msra.mxu0 %v2995
    %3030 = vmatpush.msra.mxu0 %v2992
    %3031 = vmatpush.msra.mxu0 %v2989
    %3032 = vmatpush.msra.mxu0 %v2986
    %3033 = vmatpush.msra.mxu0 %v2983
    %3034 = vmatpush.msra.mxu0 %v2980
    %3035 = vmatpush.msra.mxu0 %v2977
    %3036 = vmatpush.msra.mxu0 %v2974
    %3037 = vmatpush.msra.mxu0 %v2971
    %3038 = vmatpush.msra.mxu0 %v2968
    %3039 = vmatpush.msra.mxu0 %v2965
    %3040 = vmatpush.msra.mxu0 %v2962
    %3041 = vmatpush.msra.mxu0 %v2959
    %3042 = vmatmul.f32.gmra.mxu0 %v2953
    %v3043 = vpop.f32.mrf.mxu0
    %v3044 = vadd.f32 0.0, %v3043
    %3045 = vdwg.mxu0
    %3046 = vmatpush.msra.mxu0 %v3005
    %3047 = vmatpush.msra.mxu0 %v3002
    %3048 = vmatpush.msra.mxu0 %v2999
    %3049 = vmatpush.msra.mxu0 %v2996
    %3050 = vmatpush.msra.mxu0 %v2993
    %3051 = vmatpush.msra.mxu0 %v2990
    %3052 = vmatpush.msra.mxu0 %v2987
    %3053 = vmatpush.msra.mxu0 %v2984
    %3054 = vmatpush.msra.mxu0 %v2981
    %3055 = vmatpush.msra.mxu0 %v2978
    %3056 = vmatpush.msra.mxu0 %v2975
    %3057 = vmatpush.msra.mxu0 %v2972
    %3058 = vmatpush.msra.mxu0 %v2969
    %3059 = vmatpush.msra.mxu0 %v2966
    %3060 = vmatpush.msra.mxu0 %v2963
    %3061 = vmatpush.msra.mxu0 %v2960
    %3062 = vmatmul.f32.gmra.mxu0 %v2953
    %v3063 = vpop.f32.mrf.mxu0
    %v3064 = vadd.f32 0.0, %v3063
    %3065 = vdwg.mxu0
    %v3066 = vadd.f32 %v2955, %v3024
    %v3067 = vxor.u32 %v3066, 2147483648
    %v3068 = vmul.f32 %v3067, 1.442695
    %v3069 = vpow.pop %v3068
    %v3070 = vadd.f32 %v3069, 1.0
    %v3071 = vrcp.pop %v3070
    %v3072 = vmul.f32 %v3070, %v3071
    %v3073 = vsub.f32 1.0, %v3072
    %v3074 = vmul.f32 %v3071, %v3073
    %v3075 = vadd.f32 %v3071, %v3074
    %vm3076 = vweird.f32 %v3070
    %vm3077 = vweird.f32 %v3071
    %vm3078 = vmor %vm3076, %vm3077
    %v3079 = vsel %vm3078, %v3071, %v3075
    %v3080 = vand.u32 2147483647, %v3070
    %vm3081 = vcmp.eq.f32.partialorder %v3080, 8.507059e+37
    %v3082 = vand.u32 %v3070, 2147483648
    %v3083 = vor.u32 1.1754944e-38, %v3082
    %v3084 = vsel %vm3081, %v3083, %v3079
    %v3085 = vmul.f32 1.0, %v3084
    %v3086 = vadd.f32 %v2956, %v3044
    %v3087 = vxor.u32 %v3086, 2147483648
    %v3088 = vmul.f32 %v3087, 1.442695
    %v3089 = vpow.pop %v3088
    %v3090 = vadd.f32 %v3089, 1.0
    %v3091 = vrcp.pop %v3090
    %v3092 = vmul.f32 %v3090, %v3091
    %v3093 = vsub.f32 1.0, %v3092
    %v3094 = vmul.f32 %v3091, %v3093
    %v3095 = vadd.f32 %v3091, %v3094
    %vm3096 = vweird.f32 %v3090
    %vm3097 = vweird.f32 %v3091
    %vm3098 = vmor %vm3096, %vm3097
    %v3099 = vsel %vm3098, %v3091, %v3095
    %v3100 = vand.u32 2147483647, %v3090
    %vm3101 = vcmp.eq.f32.partialorder %v3100, 8.507059e+37
    %v3102 = vand.u32 %v3090, 2147483648
    %v3103 = vor.u32 1.1754944e-38, %v3102
    %v3104 = vsel %vm3101, %v3103, %v3099
    %v3105 = vmul.f32 1.0, %v3104
    %v3106 = vadd.f32 %v3064, %v1833
    %v3107 = vmul.f32 %v3085, %v3106
    %v3108 = vadd.f32 %v2957, %v3107
    %v3109 = vtanh.pop %v3108
    %v3110 = vsub.f32 1.0, %v3105
    %v3111 = vmul.f32 %v3110, %v3109
    %v3112 = vmul.f32 %v3105, %v2953
    %v3113 = vadd.f32 %v3111, %v3112
    %3114 = vst [vmem:[%s1616] sm:$0xff] %v3113
    %3115 = vst [vmem:[#allocation5] sm:$0xff] %v3113
    %v3116 = vld [vmem:[#allocation3] sm:$0xff]
    %v3117 = vld [vmem:[#allocation3 + $0x8] sm:$0xff]
    %v3118 = vld [vmem:[#allocation3 + $0x10] sm:$0xff]
    %v3119 = vld [vmem:[#allocation3 + $0x18] sm:$0xff]
    %v3120 = vld [vmem:[#allocation3 + $0x20] sm:$0xff]
    %v3121 = vld [vmem:[#allocation3 + $0x28] sm:$0xff]
    %v3122 = vld [vmem:[#allocation3 + $0x30] sm:$0xff]
    %v3123 = vld [vmem:[#allocation3 + $0x38] sm:$0xff]
    %v3124 = vld [vmem:[#allocation12] sm:$0xff]
    %v3125 = vld [vmem:[#allocation12 + $0x8] sm:$0xff]
    %v3126 = vld [vmem:[#allocation12 + $0x10] sm:$0xff]
    %v3127 = vld [vmem:[#allocation12 + $0x18] sm:$0xff]
    %v3128 = vld [vmem:[#allocation12 + $0x20] sm:$0xff]
    %v3129 = vld [vmem:[#allocation12 + $0x28] sm:$0xff]
    %v3130 = vld [vmem:[#allocation12 + $0x30] sm:$0xff]
    %v3131 = vld [vmem:[#allocation12 + $0x38] sm:$0xff]
    %v3132 = vld [vmem:[#allocation12 + $0x40] sm:$0xff]
    %v3133 = vld [vmem:[#allocation12 + $0x48] sm:$0xff]
    %v3134 = vld [vmem:[#allocation12 + $0x50] sm:$0xff]
    %v3135 = vld [vmem:[#allocation12 + $0x58] sm:$0xff]
    %v3136 = vld [vmem:[#allocation12 + $0x60] sm:$0xff]
    %v3137 = vld [vmem:[#allocation12 + $0x68] sm:$0xff]
    %v3138 = vld [vmem:[#allocation12 + $0x70] sm:$0xff]
    %v3139 = vld [vmem:[#allocation12 + $0x78] sm:$0xff]
    %v3140 = vld [vmem:[%s10] sm:$0x1]
    %v3142 = vperm.slane %v3140, 0
    %3144 = vmatpush.msra.mxu0 %v3139
    %3145 = vmatpush.msra.mxu0 %v3138
    %3146 = vmatpush.msra.mxu0 %v3137
    %3147 = vmatpush.msra.mxu0 %v3136
    %3148 = vmatpush.msra.mxu0 %v3135
    %3149 = vmatpush.msra.mxu0 %v3134
    %3150 = vmatpush.msra.mxu0 %v3133
    %3151 = vmatpush.msra.mxu0 %v3132
    %3152 = vmatpush.msra.mxu0 %v3131
    %3153 = vmatpush.msra.mxu0 %v3130
    %3154 = vmatpush.msra.mxu0 %v3129
    %3155 = vmatpush.msra.mxu0 %v3128
    %3156 = vmatpush.msra.mxu0 %v3127
    %3157 = vmatpush.msra.mxu0 %v3126
    %3158 = vmatpush.msra.mxu0 %v3125
    %3159 = vmatpush.msra.mxu0 %v3124
    %3160 = vmatmul.f32.gmra.mxu0 %v3116
    %v3161 = vpop.f32.mrf.mxu0
    %v3162 = vadd.f32 %v3142, %v3161
    %3163 = vmatmul.f32.gmra.mxu0 %v3117
    %v3164 = vpop.f32.mrf.mxu0
    %v3165 = vadd.f32 %v3142, %v3164
    %3166 = vmatmul.f32.gmra.mxu0 %v3118
    %v3167 = vpop.f32.mrf.mxu0
    %v3168 = vadd.f32 %v3142, %v3167
    %3169 = vmatmul.f32.gmra.mxu0 %v3119
    %v3170 = vpop.f32.mrf.mxu0
    %v3171 = vadd.f32 %v3142, %v3170
    %3172 = vmatmul.f32.gmra.mxu0 %v3120
    %v3173 = vpop.f32.mrf.mxu0
    %v3174 = vadd.f32 %v3142, %v3173
    %3175 = vmatmul.f32.gmra.mxu0 %v3121
    %v3176 = vpop.f32.mrf.mxu0
    %v3177 = vadd.f32 %v3142, %v3176
    %3178 = vmatmul.f32.gmra.mxu0 %v3122
    %v3179 = vpop.f32.mrf.mxu0
    %v3180 = vadd.f32 %v3142, %v3179
    %3181 = vmatmul.f32.gmra.mxu0 %v3123
    %v3182 = vpop.f32.mrf.mxu0
    %v3183 = vadd.f32 %v3142, %v3182
    %3184 = vdwg.mxu0
    %3185 = vst [vmem:[#allocation14] sm:$0xff] %v3162
    %3186 = vst [vmem:[#allocation14 + $0x8] sm:$0xff] %v3165
    %3187 = vst [vmem:[#allocation14 + $0x10] sm:$0xff] %v3168
    %3188 = vst [vmem:[#allocation14 + $0x18] sm:$0xff] %v3171
    %3189 = vst [vmem:[#allocation14 + $0x20] sm:$0xff] %v3174
    %3190 = vst [vmem:[#allocation14 + $0x28] sm:$0xff] %v3177
    %3191 = vst [vmem:[#allocation14 + $0x30] sm:$0xff] %v3180
    %3192 = vst [vmem:[#allocation14 + $0x38] sm:$0xff] %v3183
    // Predicated region
    $region66: #{tpu_custom_call.1} parent=1 // pred_check
      _
    $region67: #{tpu_custom_call.1} parent=1 // pred_check_branch
      %3194 = sbr.rel (0) target = $region69
    $region68: #{tpu_custom_call.1} parent=1 // pred_region
      %3196 = vsyncadd [#allocation8], 0
      %s3197 = sshll.u32 [#allocation14], 4
      %s3198 = int_to_ptr.vmem [resolvable:$true] %s3197
      %s3199 = sshll.u32 %s11, 4
      %s3200 = int_to_ptr.hbm [resolvable:$true] %s3199
      %3205 = dma.vmem_to_hbm [thread:$0]  %s3198, 1024, %s3200, [#allocation8], 128, 128, 8
    $region69: #{tpu_custom_call.1} parent=1 // pred_fallthru
      _
    // Predicated region
    $region70: #{tpu_custom_call.1} parent=1 // pred_check
      _
    $region71: #{tpu_custom_call.1} parent=1 // pred_check_branch
      %3207 = sbr.rel (0) target = $region73
    $region72: #{tpu_custom_call.1} parent=1 // pred_region
      %3209 = dma.done [#allocation8], 1024
    $region73: #{tpu_custom_call.1} parent=1 // pred_fallthru
      _
    %3210 = vsyncpa [#allocation7], 1
    %3211 = vsyncpa [#allocation10], 1
    %3212 = vsyncpa [#allocation13], 1
    %3213 = vsyncpa [#allocation8], 1

</llo_original>
